<compile_context>
chip_gen: v5e
topology: v5e:2x2
jax: 0.10.0
libtpu: 0.0.40
codegen_flags: <defaults>
</compile_context>

<pallas_src>
import math

import jax
import jax.numpy as jnp
from jax import lax
from jax.experimental import pallas as pl
from jax.experimental.pallas import tpu as pltpu

MP_SILU_SCALE = 0.596     # EDM2 magnitude-preserving SiLU:  silu(x) / 0.596
PIXEL_NORM_EPS = 1e-8     # PixelNorm: x * rsqrt(mean(x^2, channel) + eps)
MP_CONV_EPS = 1e-4        # MPConv weight-normalization epsilon
INV_SQRT2 = 1.0 / math.sqrt(2.0)


# ----------------------------- in-kernel helpers -----------------------------

def _silu(x):
    # mp_silu without the 1/0.596 scale: that constant is folded into the
    # following conv's weights in the wrapper (linearity of the conv).
    return x * jax.nn.sigmoid(x)


def _conv3(x, w_ref, *, dilation):
    """'same' 1-D conv, kernel size 3, padding == dilation, NLC activations.

    x:     (B, L, Cin) f32
    w_ref: (Cin, 3*Cout) bf16  -- the 3 tap weights concatenated along Cout, so
           the whole conv is ONE (B*L, Cin) @ (Cin, 3*Cout) bf16 MXU matmul
           with f32 accumulation.
    The +/- dilation offsets are applied afterwards to the per-tap outputs
    with overlapping-slice adds + a single 3-piece concat (no zero-padded
    full-size tensors), so nothing bleeds across batch elements.
      y[b, l] = p0[b, l-d] + p1[b, l] + p2[b, l+d]
    """
    B, L, cin = x.shape
    d = dilation
    w = w_ref[...]                                     # (cin, 3*cout) bf16
    cout = w.shape[-1] // 3

    xf = x.reshape(B * L, cin).astype(jnp.bfloat16)    # bf16 MXU operands
    p = jnp.dot(xf, w, preferred_element_type=jnp.float32).reshape(B, L, 3 * cout)
    p0 = p[..., :cout]              # tap 0: contributes at l from x[l-d]
    p1 = p[..., cout:2 * cout]      # center tap
    p2 = p[..., 2 * cout:]          # tap 2: contributes at l from x[l+d]

    if L > 2 * d:
        # Overlapping-slice accumulation (review item): edge strips are tiny.
        top = p1[:, :d, :] + p2[:, d:2 * d, :]                              # l in [0, d)
        mid = p1[:, d:L - d, :] + p0[:, :L - 2 * d, :] + p2[:, 2 * d:, :]   # l in [d, L-d)
        bot = p1[:, L - d:, :] + p0[:, L - 2 * d:L - d, :]                  # l in [L-d, L)
        return jnp.concatenate([top, mid, bot], axis=1)

    # Tiny-L fallback: zero-edge shifts (correct for any L > d).
    zeros = jnp.zeros((B, d, cout), p1.dtype)
    p0_s = jnp.concatenate([zeros, p0[:, : L - d, :]], axis=1)
    p2_s = jnp.concatenate([p2[:, d:, :], zeros], axis=1)
    return p0_s + p1 + p2_s


# --------------------------------- the kernel --------------------------------

def encoder_block_kernel(x_ref, gate_ref, w1a_ref, w1b_ref, w2_ref, o_ref):
    # x_ref/o_ref: (B, C, L) NCL blocks (PyTorch layout -- no wrapper HBM
    #              transposes; NCL<->NLC happens in VMEM on the XLU).
    # gate_ref:    (B, 1, C) f32, precomputed (emb_gain * emb_conv(emb) + 1).
    # w*_ref:      (C, 3C) bf16 fused-tap MP-normalized conv weights with the
    #              1/0.596 mp_silu scale folded in.
    x = jnp.transpose(x_ref[...].astype(jnp.float32), (0, 2, 1))   # (B, L, C)

    # PixelNorm over the channel (lane) axis.
    x = x * lax.rsqrt(jnp.mean(x * x, axis=-1, keepdims=True) + PIXEL_NORM_EPS)
    # Skip stays live for the whole kernel -> keep it 16-bit to shrink VMEM.
    x_skip = x.astype(jnp.bfloat16)

    # conv1 = SiLU -> MPConv1d(3, dilation=3, pad=3) -> SiLU -> MPConv1d(3, pad=1)
    h = _conv3(_silu(x), w1a_ref, dilation=3)
    h = _conv3(_silu(h), w1b_ref, dilation=1)

    # Timestep modulation: (B, 1, C) gate broadcast over L.
    h = h * gate_ref[...]

    # conv2 = SiLU -> MPConv1d(3, pad=1)
    h = _conv3(_silu(h), w2_ref, dilation=1)

    # mp_sum(a, b, t=0.5) = (a + b) / sqrt(2), then back to NCL for the store.
    y = (h + x_skip.astype(jnp.float32)) * INV_SQRT2
    o_ref[...] = jnp.transpose(y, (0, 2, 1)).astype(o_ref.dtype)

    # TODO(synk): downsample (strided MPConv1d) and SelfAttention branches are
    # disabled by the module defaults (downsample=None, attn=False) and are not
    # lowered here.


# ----------------------------- parameter setup --------------------------------

def mp_conv_weight(w):
    """EDM2 MPConv forced weight normalization.

    w: (out, in, k).  Effective weight per output channel:
    w[o] / (eps*sqrt(fan_in) + ||w[o]||).
    """
    fan_in = w.shape[1] * w.shape[2]
    norm = jnp.sqrt(jnp.sum(w.astype(jnp.float32) ** 2, axis=(1, 2), keepdims=True))
    return w.astype(jnp.float32) / (MP_CONV_EPS * math.sqrt(fan_in) + norm)


def _fused_tap_weight(w, scale):
    """(out, in, 3) raw weight -> (in, 3*out) bf16, MP-normalized, taps
    concatenated along the output axis, SiLU scale folded in."""
    wn = mp_conv_weight(w) * scale                  # (out, in, 3) f32
    w_taps = jnp.transpose(wn, (2, 1, 0))           # (3, in, out): W_t[i,o]=w[o,i,t]
    w_cat = jnp.concatenate([w_taps[0], w_taps[1], w_taps[2]], axis=1)  # (in, 3*out)
    return w_cat.astype(jnp.bfloat16)


def _choose_block(N, L, C, weight_bytes):
    """Batch elements per grid step sized from the chip's actual VMEM."""
    vmem_cap = 64 << 20          # conservative fallback == v7x per-core VMEM
    two_cores = False
    try:
        vmem_cap = int(pltpu.get_tpu_info().vmem_capacity_bytes)
    except Exception:
        pass
    try:
        # v7x has 2 TensorCores per chip; v5e/v6e have 1 (grid is serial there).
        two_cores = "7" in jax.devices()[0].device_kind.lower()
    except Exception:
        pass
    budget = int(vmem_cap * 0.6)     # headroom for compiler scratch / spills
    # ~18 f32 (L, C)-sized live values per batch element: 2x-buffered NCL
    # in/out blocks, the in-VMEM transposes, silu/matmul operands, the (L, 3C)
    # fused-tap product and the shifted-sum pieces.
    per_elem = max(int(L * C * 4 * 18), 1)
    avail = max(budget - 2 * weight_bytes, per_elem)   # weights are 2x-buffered
    B = max(1, min(N, avail // per_elem))
    if two_cores and N >= 2:
        B = min(B, pl.cdiv(N, 2))    # keep >= 2 grid steps so both TCs get work
    return B, budget


def encoder_block_forward(x_ncl, emb_ncl, params):
    """x_ncl: (N, C, L), emb_ncl: (N, 4C, 1) — PyTorch NCL layout, NCL output."""
    N, C, L = x_ncl.shape
    cdt = x_ncl.dtype

    # Hoisted emb path: one batched (N,4C)@(4C,C) matmul outside the kernel
    # (an M=1 matmul per grid step is pure MXU latency); "+1" pre-added; f32.
    w_emb = mp_conv_weight(params["w_emb"])[:, :, 0] * params["emb_gain"]   # (C, 4C)
    gate = emb_ncl[:, :, 0].astype(jnp.float32) @ w_emb.T + 1.0             # (N, C)
    gate = gate[:, None, :]                                                  # (N, 1, C)

    # MP-normalized fused-tap conv weights, bf16, SiLU scale folded in.
    s = jnp.float32(1.0 / MP_SILU_SCALE)
    w1a = _fused_tap_weight(params["w1a"], s)
    w1b = _fused_tap_weight(params["w1b"], s)
    w2 = _fused_tap_weight(params["w2"], s)

    weight_bytes = 3 * w1a.size * w1a.dtype.itemsize
    B, vmem_budget = _choose_block(N, L, C, weight_bytes)
    steps = pl.cdiv(N, B)
    N_pad = steps * B
    x_in = x_ncl
    if N_pad != N:
        # Non-divisor batch: pad instead of collapsing B to 1 (padded rows
        # compute finite garbage and are sliced off below).
        x_in = jnp.pad(x_ncl, ((0, N_pad - N), (0, 0), (0, 0)))
        gate = jnp.pad(gate, ((0, N_pad - N), (0, 0), (0, 0)))

    itemsize = jnp.dtype(cdt).itemsize
    cost = pl.CostEstimate(
        flops=int(2 * 9 * N_pad * L * C * C),               # 3 convs x 3 taps
        transcendentals=int(3 * N_pad * L * C),             # 3 SiLU sigmoid passes
        bytes_accessed=int((2 * N_pad * L * C + N_pad * C) * itemsize
                           + 3 * (C * 3 * C) * 2),
    )

    out = pl.pallas_call(
        encoder_block_kernel,
        out_shape=jax.ShapeDtypeStruct((N_pad, C, L), cdt),
        grid_spec=pltpu.PrefetchScalarGridSpec(
            num_scalar_prefetch=0,
            grid=(steps,),
            in_specs=[
                pl.BlockSpec((B, C, L), lambda n: (n, 0, 0)),
                pl.BlockSpec((B, 1, C), lambda n: (n, 0, 0)),
                pl.BlockSpec((C, 3 * C), lambda n: (0, 0)),
                pl.BlockSpec((C, 3 * C), lambda n: (0, 0)),
                pl.BlockSpec((C, 3 * C), lambda n: (0, 0)),
            ],
            out_specs=pl.BlockSpec((B, C, L), lambda n: (n, 0, 0)),
        ),
        compiler_params=pltpu.CompilerParams(
            dimension_semantics=("parallel",),
            vmem_limit_bytes=int(vmem_budget),
        ),
        cost_estimate=cost,
    )(x_in, gate, w1a, w1b, w2)

    return out[:N] if N_pad != N else out


# ------------------------------ pure-JAX reference ----------------------------

def _mp_silu_ref(x):
    return (x * jax.nn.sigmoid(x)) / MP_SILU_SCALE


def encoder_block_reference(x, emb, params):
    """Same math in NCL layout via lax.conv_general_dilated (no Pallas, f32)."""
    def conv1d(h, w, dilation, padding):
        return lax.conv_general_dilated(
            h, w, window_strides=(1,), padding=[(padding, padding)],
            rhs_dilation=(dilation,),
            dimension_numbers=("NCH", "OIH", "NCH"))

    e = params["emb_gain"] * conv1d(emb, mp_conv_weight(params["w_emb"]), 1, 0)
    h = x * lax.rsqrt(jnp.mean(x * x, axis=1, keepdims=True) + PIXEL_NORM_EPS)
    skip = h
    h = _mp_silu_ref(h)
    h = conv1d(h, mp_conv_weight(params["w1a"]), 3, 3)
    h = _mp_silu_ref(h)
    h = conv1d(h, mp_conv_weight(params["w1b"]), 1, 1)
    h = h * (e + 1.0)
    h = _mp_silu_ref(h)
    h = conv1d(h, mp_conv_weight(params["w2"]), 1, 1)
    return (h + skip) * INV_SQRT2


# ------------------------------------ main ------------------------------------

if __name__ == "__main__":
    # L kept at a multiple of 128 so the NCL in/out blocks are lane-dense and
    # the (B,L,C)<->(B*L,C) reshapes never cross (8,128) tile boundaries.
    N, DIM, L = 2, 32, 128

    key = jax.random.PRNGKey(0)
    k_x, k_e, k_w0, k_w1, k_w2, k_w3 = jax.random.split(key, 6)

    x = jax.random.normal(k_x, (N, DIM, L), dtype=jnp.float32)        # NCL
    emb = jax.random.normal(k_e, (N, 4 * DIM, 1), dtype=jnp.float32)  # NCL

    params = {
        # MPConv1d raw weights are standard-normal at init (shapes from __init__).
        "w_emb": jax.random.normal(k_w0, (DIM, 4 * DIM, 1), dtype=jnp.float32),
        "w1a":   jax.random.normal(k_w1, (DIM, DIM, 3), dtype=jnp.float32),
        "w1b":   jax.random.normal(k_w2, (DIM, DIM, 3), dtype=jnp.float32),
        "w2":    jax.random.normal(k_w3, (DIM, DIM, 3), dtype=jnp.float32),
        # Module inits emb_gain to 0.0; use a nonzero value so the emb path is
        # actually exercised numerically.
        "emb_gain": jnp.float32(0.25),
    }

    out = jax.block_until_ready(encoder_block_forward(x, emb, params))
    ref = jax.block_until_ready(encoder_block_reference(x, emb, params))

    assert out.shape == (N, DIM, L), out.shape
    max_err = float(jnp.max(jnp.abs(out - ref)))
    # bf16 MXU operands (f32 accumulation) vs the all-f32 reference -> ~1e-2 level.
    assert jnp.allclose(out, ref, rtol=5e-2, atol=5e-2), max_err

    print("KERNEL_OK")
</pallas_src>

<mosaic_0001>
module attributes {stable_mosaic.version = 11 : i64} {
  func.func @encoder_block_kernel(%arg0: i32, %arg1: memref<2x32x128xf32, #tpu.memory_space<vmem>>, %arg2: memref<2x1x32xf32, #tpu.memory_space<vmem>>, %arg3: memref<32x96xbf16, #tpu.memory_space<vmem>>, %arg4: memref<32x96xbf16, #tpu.memory_space<vmem>>, %arg5: memref<32x96xbf16, #tpu.memory_space<vmem>>, %arg6: memref<2x32x128xf32, #tpu.memory_space<vmem>>) attributes {dimension_semantics = [#tpu.dimension_semantics<parallel>], iteration_bounds = array<i64: 1>, scalar_prefetch = 0 : i64, scratch_operands = 0 : i64, tpu.core_type = #tpu.core_type<tc>, window_params = [{transform_indices = @transform_0, window_bounds = array<i64: 2, 32, 128>}, {transform_indices = @transform_1, window_bounds = array<i64: 2, 1, 32>}, {pipeline_mode = #tpu.pipeline_mode<synchronous>, transform_indices = @transform_2, window_bounds = array<i64: 32, 96>}, {pipeline_mode = #tpu.pipeline_mode<synchronous>, transform_indices = @transform_3, window_bounds = array<i64: 32, 96>}, {pipeline_mode = #tpu.pipeline_mode<synchronous>, transform_indices = @transform_4, window_bounds = array<i64: 32, 96>}, {transform_indices = @transform_5, window_bounds = array<i64: 2, 32, 128>}]} {
    %c0 = arith.constant 0 : index
    %c0_0 = arith.constant 0 : index
    %c0_1 = arith.constant 0 : index
    %0 = vector.load %arg1[%c0, %c0_0, %c0_1] : memref<2x32x128xf32, #tpu.memory_space<vmem>>, vector<2x32x128xf32>
    %1 = tpu.transpose %0, [0, 2, 1] : vector<2x32x128xf32> -> vector<2x128x32xf32>
    %2 = arith.mulf %1, %1 : vector<2x128x32xf32>
    %cst = arith.constant dense<0.000000e+00> : vector<2x128xf32>
    %3 = vector.multi_reduction <add>, %2, %cst [2] : vector<2x128x32xf32> to vector<2x128xf32>
    %4 = vector.shape_cast %3 : vector<2x128xf32> to vector<2x128x1xf32>
    %cst_2 = arith.constant 3.200000e+01 : f32
    %5 = vector.broadcast %cst_2 : f32 to vector<2x128x1xf32>
    %6 = arith.divf %4, %5 : vector<2x128x1xf32>
    %cst_3 = arith.constant 9.99999993E-9 : f32
    %7 = vector.broadcast %cst_3 : f32 to vector<2x128x1xf32>
    %8 = arith.addf %6, %7 : vector<2x128x1xf32>
    %9 = math.rsqrt %8 : vector<2x128x1xf32>
    %10 = vector.broadcast %9 : vector<2x128x1xf32> to vector<2x128x32xf32>
    %11 = arith.mulf %1, %10 : vector<2x128x32xf32>
    %12 = arith.truncf %11 : vector<2x128x32xf32> to vector<2x128x32xbf16>
    %13 = arith.negf %11 : vector<2x128x32xf32>
    %14 = math.exp %13 : vector<2x128x32xf32>
    %cst_4 = arith.constant 1.000000e+00 : f32
    %15 = vector.broadcast %cst_4 : f32 to vector<2x128x32xf32>
    %16 = arith.addf %15, %14 : vector<2x128x32xf32>
    %17 = arith.divf %15, %16 : vector<2x128x32xf32>
    %18 = arith.mulf %11, %17 : vector<2x128x32xf32>
    %c0_5 = arith.constant 0 : index
    %c0_6 = arith.constant 0 : index
    %19 = vector.load %arg3[%c0_5, %c0_6] : memref<32x96xbf16, #tpu.memory_space<vmem>>, vector<32x96xbf16>
    %20 = vector.shape_cast %18 : vector<2x128x32xf32> to vector<256x32xf32>
    %21 = arith.truncf %20 : vector<256x32xf32> to vector<256x32xbf16>
    %cst_7 = arith.constant dense<0.000000e+00> : vector<256x96xf32>
    %22 = tpu.matmul %21, %19, %cst_7 {dimension_numbers = #tpu.dot_dimension_numbers<[1], [0], [0], [1], [0, 0, 1, 1], [], []>} : vector<256x32xbf16>, vector<32x96xbf16>, vector<256x96xf32> -> vector<256x96xf32>
    %23 = vector.shape_cast %22 : vector<256x96xf32> to vector<2x128x96xf32>
    %24 = vector.extract_strided_slice %23 {offsets = [0, 0, 0], sizes = [2, 128, 32], strides = [1, 1, 1]} : vector<2x128x96xf32> to vector<2x128x32xf32>
    %25 = vector.extract_strided_slice %23 {offsets = [0, 0, 32], sizes = [2, 128, 32], strides = [1, 1, 1]} : vector<2x128x96xf32> to vector<2x128x32xf32>
    %26 = vector.extract_strided_slice %23 {offsets = [0, 0, 64], sizes = [2, 128, 32], strides = [1, 1, 1]} : vector<2x128x96xf32> to vector<2x128x32xf32>
    %27 = vector.extract_strided_slice %25 {offsets = [0, 0, 0], sizes = [2, 3, 32], strides = [1, 1, 1]} : vector<2x128x32xf32> to vector<2x3x32xf32>
    %28 = vector.extract_strided_slice %26 {offsets = [0, 3, 0], sizes = [2, 3, 32], strides = [1, 1, 1]} : vector<2x128x32xf32> to vector<2x3x32xf32>
    %29 = arith.addf %27, %28 : vector<2x3x32xf32>
    %30 = vector.extract_strided_slice %25 {offsets = [0, 3, 0], sizes = [2, 122, 32], strides = [1, 1, 1]} : vector<2x128x32xf32> to vector<2x122x32xf32>
    %31 = vector.extract_strided_slice %24 {offsets = [0, 0, 0], sizes = [2, 122, 32], strides = [1, 1, 1]} : vector<2x128x32xf32> to vector<2x122x32xf32>
    %32 = arith.addf %30, %31 : vector<2x122x32xf32>
    %33 = vector.extract_strided_slice %26 {offsets = [0, 6, 0], sizes = [2, 122, 32], strides = [1, 1, 1]} : vector<2x128x32xf32> to vector<2x122x32xf32>
    %34 = arith.addf %32, %33 : vector<2x122x32xf32>
    %35 = vector.extract_strided_slice %25 {offsets = [0, 125, 0], sizes = [2, 3, 32], strides = [1, 1, 1]} : vector<2x128x32xf32> to vector<2x3x32xf32>
    %36 = vector.extract_strided_slice %24 {offsets = [0, 122, 0], sizes = [2, 3, 32], strides = [1, 1, 1]} : vector<2x128x32xf32> to vector<2x3x32xf32>
    %37 = arith.addf %35, %36 : vector<2x3x32xf32>
    %38 = tpu.concatenate %29, %34, %37 in 1 : vector<2x3x32xf32>, vector<2x122x32xf32>, vector<2x3x32xf32> -> vector<2x128x32xf32>
    %39 = arith.negf %38 : vector<2x128x32xf32>
    %40 = math.exp %39 : vector<2x128x32xf32>
    %cst_8 = arith.constant 1.000000e+00 : f32
    %41 = vector.broadcast %cst_8 : f32 to vector<2x128x32xf32>
    %42 = arith.addf %41, %40 : vector<2x128x32xf32>
    %43 = arith.divf %41, %42 : vector<2x128x32xf32>
    %44 = arith.mulf %38, %43 : vector<2x128x32xf32>
    %c0_9 = arith.constant 0 : index
    %c0_10 = arith.constant 0 : index
    %45 = vector.load %arg4[%c0_9, %c0_10] : memref<32x96xbf16, #tpu.memory_space<vmem>>, vector<32x96xbf16>
    %46 = vector.shape_cast %44 : vector<2x128x32xf32> to vector<256x32xf32>
    %47 = arith.truncf %46 : vector<256x32xf32> to vector<256x32xbf16>
    %cst_11 = arith.constant dense<0.000000e+00> : vector<256x96xf32>
    %48 = tpu.matmul %47, %45, %cst_11 {dimension_numbers = #tpu.dot_dimension_numbers<[1], [0], [0], [1], [0, 0, 1, 1], [], []>} : vector<256x32xbf16>, vector<32x96xbf16>, vector<256x96xf32> -> vector<256x96xf32>
    %49 = vector.shape_cast %48 : vector<256x96xf32> to vector<2x128x96xf32>
    %50 = vector.extract_strided_slice %49 {offsets = [0, 0, 0], sizes = [2, 128, 32], strides = [1, 1, 1]} : vector<2x128x96xf32> to vector<2x128x32xf32>
    %51 = vector.extract_strided_slice %49 {offsets = [0, 0, 32], sizes = [2, 128, 32], strides = [1, 1, 1]} : vector<2x128x96xf32> to vector<2x128x32xf32>
    %52 = vector.extract_strided_slice %49 {offsets = [0, 0, 64], sizes = [2, 128, 32], strides = [1, 1, 1]} : vector<2x128x96xf32> to vector<2x128x32xf32>
    %53 = vector.extract_strided_slice %51 {offsets = [0, 0, 0], sizes = [2, 1, 32], strides = [1, 1, 1]} : vector<2x128x32xf32> to vector<2x1x32xf32>
    %54 = vector.extract_strided_slice %52 {offsets = [0, 1, 0], sizes = [2, 1, 32], strides = [1, 1, 1]} : vector<2x128x32xf32> to vector<2x1x32xf32>
    %55 = arith.addf %53, %54 : vector<2x1x32xf32>
    %56 = vector.extract_strided_slice %51 {offsets = [0, 1, 0], sizes = [2, 126, 32], strides = [1, 1, 1]} : vector<2x128x32xf32> to vector<2x126x32xf32>
    %57 = vector.extract_strided_slice %50 {offsets = [0, 0, 0], sizes = [2, 126, 32], strides = [1, 1, 1]} : vector<2x128x32xf32> to vector<2x126x32xf32>
    %58 = arith.addf %56, %57 : vector<2x126x32xf32>
    %59 = vector.extract_strided_slice %52 {offsets = [0, 2, 0], sizes = [2, 126, 32], strides = [1, 1, 1]} : vector<2x128x32xf32> to vector<2x126x32xf32>
    %60 = arith.addf %58, %59 : vector<2x126x32xf32>
    %61 = vector.extract_strided_slice %51 {offsets = [0, 127, 0], sizes = [2, 1, 32], strides = [1, 1, 1]} : vector<2x128x32xf32> to vector<2x1x32xf32>
    %62 = vector.extract_strided_slice %50 {offsets = [0, 126, 0], sizes = [2, 1, 32], strides = [1, 1, 1]} : vector<2x128x32xf32> to vector<2x1x32xf32>
    %63 = arith.addf %61, %62 : vector<2x1x32xf32>
    %64 = tpu.concatenate %55, %60, %63 in 1 : vector<2x1x32xf32>, vector<2x126x32xf32>, vector<2x1x32xf32> -> vector<2x128x32xf32>
    %c0_12 = arith.constant 0 : index
    %c0_13 = arith.constant 0 : index
    %c0_14 = arith.constant 0 : index
    %65 = vector.load %arg2[%c0_12, %c0_13, %c0_14] : memref<2x1x32xf32, #tpu.memory_space<vmem>>, vector<2x1x32xf32>
    %66 = vector.broadcast %65 : vector<2x1x32xf32> to vector<2x128x32xf32>
    %67 = arith.mulf %64, %66 : vector<2x128x32xf32>
    %68 = arith.negf %67 : vector<2x128x32xf32>
    %69 = math.exp %68 : vector<2x128x32xf32>
    %cst_15 = arith.constant 1.000000e+00 : f32
    %70 = vector.broadcast %cst_15 : f32 to vector<2x128x32xf32>
    %71 = arith.addf %70, %69 : vector<2x128x32xf32>
    %72 = arith.divf %70, %71 : vector<2x128x32xf32>
    %73 = arith.mulf %67, %72 : vector<2x128x32xf32>
    %c0_16 = arith.constant 0 : index
    %c0_17 = arith.constant 0 : index
    %74 = vector.load %arg5[%c0_16, %c0_17] : memref<32x96xbf16, #tpu.memory_space<vmem>>, vector<32x96xbf16>
    %75 = vector.shape_cast %73 : vector<2x128x32xf32> to vector<256x32xf32>
    %76 = arith.truncf %75 : vector<256x32xf32> to vector<256x32xbf16>
    %cst_18 = arith.constant dense<0.000000e+00> : vector<256x96xf32>
    %77 = tpu.matmul %76, %74, %cst_18 {dimension_numbers = #tpu.dot_dimension_numbers<[1], [0], [0], [1], [0, 0, 1, 1], [], []>} : vector<256x32xbf16>, vector<32x96xbf16>, vector<256x96xf32> -> vector<256x96xf32>
    %78 = vector.shape_cast %77 : vector<256x96xf32> to vector<2x128x96xf32>
    %79 = vector.extract_strided_slice %78 {offsets = [0, 0, 0], sizes = [2, 128, 32], strides = [1, 1, 1]} : vector<2x128x96xf32> to vector<2x128x32xf32>
    %80 = vector.extract_strided_slice %78 {offsets = [0, 0, 32], sizes = [2, 128, 32], strides = [1, 1, 1]} : vector<2x128x96xf32> to vector<2x128x32xf32>
    %81 = vector.extract_strided_slice %78 {offsets = [0, 0, 64], sizes = [2, 128, 32], strides = [1, 1, 1]} : vector<2x128x96xf32> to vector<2x128x32xf32>
    %82 = vector.extract_strided_slice %80 {offsets = [0, 0, 0], sizes = [2, 1, 32], strides = [1, 1, 1]} : vector<2x128x32xf32> to vector<2x1x32xf32>
    %83 = vector.extract_strided_slice %81 {offsets = [0, 1, 0], sizes = [2, 1, 32], strides = [1, 1, 1]} : vector<2x128x32xf32> to vector<2x1x32xf32>
    %84 = arith.addf %82, %83 : vector<2x1x32xf32>
    %85 = vector.extract_strided_slice %80 {offsets = [0, 1, 0], sizes = [2, 126, 32], strides = [1, 1, 1]} : vector<2x128x32xf32> to vector<2x126x32xf32>
    %86 = vector.extract_strided_slice %79 {offsets = [0, 0, 0], sizes = [2, 126, 32], strides = [1, 1, 1]} : vector<2x128x32xf32> to vector<2x126x32xf32>
    %87 = arith.addf %85, %86 : vector<2x126x32xf32>
    %88 = vector.extract_strided_slice %81 {offsets = [0, 2, 0], sizes = [2, 126, 32], strides = [1, 1, 1]} : vector<2x128x32xf32> to vector<2x126x32xf32>
    %89 = arith.addf %87, %88 : vector<2x126x32xf32>
    %90 = vector.extract_strided_slice %80 {offsets = [0, 127, 0], sizes = [2, 1, 32], strides = [1, 1, 1]} : vector<2x128x32xf32> to vector<2x1x32xf32>
    %91 = vector.extract_strided_slice %79 {offsets = [0, 126, 0], sizes = [2, 1, 32], strides = [1, 1, 1]} : vector<2x128x32xf32> to vector<2x1x32xf32>
    %92 = arith.addf %90, %91 : vector<2x1x32xf32>
    %93 = tpu.concatenate %84, %89, %92 in 1 : vector<2x1x32xf32>, vector<2x126x32xf32>, vector<2x1x32xf32> -> vector<2x128x32xf32>
    %94 = arith.extf %12 : vector<2x128x32xbf16> to vector<2x128x32xf32>
    %95 = arith.addf %93, %94 : vector<2x128x32xf32>
    %cst_19 = arith.constant 0.707106769 : f32
    %96 = vector.broadcast %cst_19 : f32 to vector<2x128x32xf32>
    %97 = arith.mulf %95, %96 : vector<2x128x32xf32>
    %98 = tpu.transpose %97, [0, 2, 1] : vector<2x128x32xf32> -> vector<2x32x128xf32>
    %c0_20 = arith.constant 0 : index
    %c0_21 = arith.constant 0 : index
    %c0_22 = arith.constant 0 : index
    %99 = vector.load %arg6[%c0_20, %c0_21, %c0_22] : memref<2x32x128xf32, #tpu.memory_space<vmem>>, vector<2x32x128xf32>
    tpu.vector_store %arg6[%c0_20, %c0_21, %c0_22], %98 {strides = array<i32>} : memref<2x32x128xf32, #tpu.memory_space<vmem>>, vector<2x32x128xf32>,
    return
  }
  func.func @transform_0(%arg0: i32) -> (i32, i32, i32) {
    %c0_i32 = arith.constant 0 : i32
    %c0_i32_0 = arith.constant 0 : i32
    %c0_i32_1 = arith.constant 0 : i32
    return %arg0, %c0_i32, %c0_i32_0 : i32, i32, i32
  }
  func.func @transform_1(%arg0: i32) -> (i32, i32, i32) {
    %c0_i32 = arith.constant 0 : i32
    %c0_i32_0 = arith.constant 0 : i32
    %c0_i32_1 = arith.constant 0 : i32
    return %arg0, %c0_i32, %c0_i32_0 : i32, i32, i32
  }
  func.func @transform_2(%arg0: i32) -> (i32, i32) {
    %c0_i32 = arith.constant 0 : i32
    %c0_i32_0 = arith.constant 0 : i32
    %c0_i32_1 = arith.constant 0 : i32
    return %c0_i32, %c0_i32_0 : i32, i32
  }
  func.func @transform_3(%arg0: i32) -> (i32, i32) {
    %c0_i32 = arith.constant 0 : i32
    %c0_i32_0 = arith.constant 0 : i32
    %c0_i32_1 = arith.constant 0 : i32
    return %c0_i32, %c0_i32_0 : i32, i32
  }
  func.func @transform_4(%arg0: i32) -> (i32, i32) {
    %c0_i32 = arith.constant 0 : i32
    %c0_i32_0 = arith.constant 0 : i32
    %c0_i32_1 = arith.constant 0 : i32
    return %c0_i32, %c0_i32_0 : i32, i32
  }
  func.func @transform_5(%arg0: i32) -> (i32, i32, i32) {
    %c0_i32 = arith.constant 0 : i32
    %c0_i32_0 = arith.constant 0 : i32
    %c0_i32_1 = arith.constant 0 : i32
    return %arg0, %c0_i32, %c0_i32_0 : i32, i32, i32
  }
}

</mosaic_0001>

<llo_original>
// kernel: tpu_custom_call.1
$region0: #{tpu_custom_call.1}
  #allocation0 [shape = 'u32[]', space=smem, size = 0x4, offset = 0x4, fixed_abs, tag = 'smem constant byte address 0x4 - core index']
  #allocation1 [shape = 'u32[72,128]{1,0:T(1,128)}', space=vmem, size = 0x9000, scoped, tag = 'internal scratch']
  %s0 = inlined_call_operand.hbm [shape: f32[2,32,128], index: 0, kind: input, shape index: {}]
  %s1 = inlined_call_operand.hbm [shape: f32[2,1,32], index: 1, kind: input, shape index: {}]
  %s2 = inlined_call_operand.hbm [shape: bf16[32,96], index: 2, kind: input, shape index: {}]
  %s3 = inlined_call_operand.hbm [shape: bf16[32,96], index: 3, kind: input, shape index: {}]
  %s4 = inlined_call_operand.hbm [shape: bf16[32,96], index: 4, kind: input, shape index: {}]
  %s5 = inlined_call_operand.hbm [shape: f32[2,32,128], index: 5, kind: output, shape index: {}]
  %s6 = sld [smem:[#allocation0]]
  $region50: #{tpu_custom_call.1} parent=0
    _
  %s8 = ssub.s32 1, %s6
  %s9 = scalar_select 0, %s8, %s6
  $region1: #{tpu_custom_call.1} parent=0
    #allocation2 [shape = 'u8[32768]{0}', space=vmem, size = 0x8000, scoped, tag = 'input window, operand 0, single buffered']
    #allocation3 [shape = 's32[1]{0}', space=sflag, size = 0x4, scoped, tag = 'scoped memory for tpu_custom_call.1']
    #allocation4 [shape = 's32[1]{0}', space=sflag, size = 0x4, scoped, tag = 'scoped memory for tpu_custom_call.1']
    #allocation5 [shape = 'u8[1024]{0}', space=vmem, size = 0x400, scoped, tag = 'input window, operand 1, single buffered']
    #allocation6 [shape = 's32[1]{0}', space=sflag, size = 0x4, scoped, tag = 'scoped memory for tpu_custom_call.1']
    #allocation7 [shape = 'u8[8192]{0}', space=vmem, size = 0x2000, scoped, tag = 'input window, operand 2, single buffered']
    #allocation8 [shape = 'u8[8192]{0}', space=vmem, size = 0x2000, scoped, tag = 'input window, operand 3, single buffered']
    #allocation9 [shape = 's32[1]{0}', space=sflag, size = 0x4, scoped, tag = 'scoped memory for tpu_custom_call.1']
    #allocation10 [shape = 'u8[8192]{0}', space=vmem, size = 0x2000, scoped, tag = 'input window, operand 4, single buffered']
    #allocation11 [shape = 'u8[32768]{0}', space=vmem, size = 0x8000, scoped, tag = 'output window, operand 0, single buffered']
    %10 = vsyncpa [#allocation3], 0
    %11 = vsyncpa [#allocation6], 0
    %12 = vsyncpa [#allocation9], 0
    %13 = vsyncpa [#allocation4], 0
    // Predicated region
    $region2: #{tpu_custom_call.1} parent=1 // pred_check
      _
    $region3: #{tpu_custom_call.1} parent=1 // pred_check_branch
      %15 = sbr.rel (0) target = $region5
    $region4: #{tpu_custom_call.1} parent=1 // pred_region
      %17 = vsyncadd [#allocation3], 0
      %s18 = sshll.u32 %s0, 4
      %s19 = int_to_ptr.hbm [resolvable:$true] %s18
      %s20 = sshll.u32 [#allocation2], 4
      %s21 = int_to_ptr.vmem [resolvable:$true] %s20
      %26 = dma.hbm_to_vmem [thread:$0]  %s19, 1024, %s21, [#allocation3], 128, 128, 8
    $region5: #{tpu_custom_call.1} parent=1 // pred_fallthru
      _
    // Predicated region
    $region6: #{tpu_custom_call.1} parent=1 // pred_check
      _
    $region7: #{tpu_custom_call.1} parent=1 // pred_check_branch
      %28 = sbr.rel (0) target = $region9
    $region8: #{tpu_custom_call.1} parent=1 // pred_region
      %30 = vsyncadd [#allocation6], 0
      %s31 = sshll.u32 %s1, 4
      %s32 = int_to_ptr.hbm [resolvable:$true] %s31
      %s33 = sshll.u32 [#allocation5], 4
      %s34 = int_to_ptr.vmem [resolvable:$true] %s33
      %39 = dma.hbm_to_vmem [thread:$0]  %s32, 32, %s34, [#allocation6], 16, 16, 1
    $region9: #{tpu_custom_call.1} parent=1 // pred_fallthru
      _
    // Predicated region
    $region10: #{tpu_custom_call.1} parent=1 // pred_check
      _
    $region11: #{tpu_custom_call.1} parent=1 // pred_check_branch
      %41 = sbr.rel (0) target = $region13
    $region12: #{tpu_custom_call.1} parent=1 // pred_region
      %43 = vsyncadd [#allocation6], 0
      %s44 = sshll.u32 %s2, 4
      %s45 = int_to_ptr.hbm [resolvable:$true] %s44
      %s46 = sshll.u32 [#allocation7], 4
      %s47 = int_to_ptr.vmem [resolvable:$true] %s46
      %52 = dma.hbm_to_vmem [thread:$0]  %s45, 256, %s47, [#allocation6], 64, 64, 4
    $region13: #{tpu_custom_call.1} parent=1 // pred_fallthru
      _
    // Predicated region
    $region14: #{tpu_custom_call.1} parent=1 // pred_check
      _
    $region15: #{tpu_custom_call.1} parent=1 // pred_check_branch
      %54 = sbr.rel (0) target = $region17
    $region16: #{tpu_custom_call.1} parent=1 // pred_region
      %56 = vsyncadd [#allocation9], 0
      %s57 = sshll.u32 %s3, 4
      %s58 = int_to_ptr.hbm [resolvable:$true] %s57
      %s59 = sshll.u32 [#allocation8], 4
      %s60 = int_to_ptr.vmem [resolvable:$true] %s59
      %65 = dma.hbm_to_vmem [thread:$0]  %s58, 256, %s60, [#allocation9], 64, 64, 4
    $region17: #{tpu_custom_call.1} parent=1 // pred_fallthru
      _
    // Predicated region
    $region18: #{tpu_custom_call.1} parent=1 // pred_check
      _
    $region19: #{tpu_custom_call.1} parent=1 // pred_check_branch
      %67 = sbr.rel (0) target = $region21
    $region20: #{tpu_custom_call.1} parent=1 // pred_region
      %69 = vsyncadd [#allocation9], 0
      %s70 = sshll.u32 %s4, 4
      %s71 = int_to_ptr.hbm [resolvable:$true] %s70
      %s72 = sshll.u32 [#allocation10], 4
      %s73 = int_to_ptr.vmem [resolvable:$true] %s72
      %78 = dma.hbm_to_vmem [thread:$0]  %s71, 256, %s73, [#allocation9], 64, 64, 4
    $region21: #{tpu_custom_call.1} parent=1 // pred_fallthru
      _
    // Predicated region
    $region22: #{tpu_custom_call.1} parent=1 // pred_check
      _
    $region23: #{tpu_custom_call.1} parent=1 // pred_check_branch
      %80 = sbr.rel (0) target = $region25
    $region24: #{tpu_custom_call.1} parent=1 // pred_region
      %82 = dma.done [#allocation3], 1024
    $region25: #{tpu_custom_call.1} parent=1 // pred_fallthru
      _
    // Predicated region
    $region26: #{tpu_custom_call.1} parent=1 // pred_check
      _
    $region27: #{tpu_custom_call.1} parent=1 // pred_check_branch
      %84 = sbr.rel (0) target = $region29
    $region28: #{tpu_custom_call.1} parent=1 // pred_region
      %86 = dma.done [#allocation6], 32
    $region29: #{tpu_custom_call.1} parent=1 // pred_fallthru
      _
    // Predicated region
    $region30: #{tpu_custom_call.1} parent=1 // pred_check
      _
    $region31: #{tpu_custom_call.1} parent=1 // pred_check_branch
      %88 = sbr.rel (0) target = $region33
    $region32: #{tpu_custom_call.1} parent=1 // pred_region
      %90 = dma.done [#allocation6], 256
    $region33: #{tpu_custom_call.1} parent=1 // pred_fallthru
      _
    // Predicated region
    $region34: #{tpu_custom_call.1} parent=1 // pred_check
      _
    $region35: #{tpu_custom_call.1} parent=1 // pred_check_branch
      %92 = sbr.rel (0) target = $region37
    $region36: #{tpu_custom_call.1} parent=1 // pred_region
      %94 = dma.done [#allocation9], 256
    $region37: #{tpu_custom_call.1} parent=1 // pred_fallthru
      _
    // Predicated region
    $region38: #{tpu_custom_call.1} parent=1 // pred_check
      _
    $region39: #{tpu_custom_call.1} parent=1 // pred_check_branch
      %96 = sbr.rel (0) target = $region41
    $region40: #{tpu_custom_call.1} parent=1 // pred_region
      %98 = dma.done [#allocation9], 256
    $region41: #{tpu_custom_call.1} parent=1 // pred_fallthru
      _
    %v100 = vld [vmem:[#allocation2] sm:$0xff]
    %v101 = vld [vmem:[#allocation2 + $0x8] sm:$0xff]
    %v102 = vld [vmem:[#allocation2 + $0x10] sm:$0xff]
    %v103 = vld [vmem:[#allocation2 + $0x18] sm:$0xff]
    %v104 = vld [vmem:[#allocation2 + $0x20] sm:$0xff]
    %v105 = vld [vmem:[#allocation2 + $0x28] sm:$0xff]
    %v106 = vld [vmem:[#allocation2 + $0x30] sm:$0xff]
    %v107 = vld [vmem:[#allocation2 + $0x38] sm:$0xff]
    %108 = vxpose.xlu0.b32.start [1/16] %v100, 128
    %109 = vxpose.xlu0.b32.cont [2/16] %v101, 128
    %110 = vxpose.xlu0.b32.cont [3/16] %v102, 128
    %111 = vxpose.xlu0.b32.cont [4/16] %v103, 128
    %112 = vxpose.xlu0.b32.cont [5/16] 0.0, 128
    %113 = vxpose.xlu0.b32.cont [6/16] 0.0, 128
    %114 = vxpose.xlu0.b32.cont [7/16] 0.0, 128
    %115 = vxpose.xlu0.b32.cont [8/16] 0.0, 128
    %116 = vxpose.xlu0.b32.cont [9/16] 0.0, 128
    %117 = vxpose.xlu0.b32.cont [10/16] 0.0, 128
    %118 = vxpose.xlu0.b32.cont [11/16] 0.0, 128
    %119 = vxpose.xlu0.b32.cont [12/16] 0.0, 128
    %120 = vxpose.xlu0.b32.cont [13/16] 0.0, 128
    %121 = vxpose.xlu0.b32.cont [14/16] 0.0, 128
    %122 = vxpose.xlu0.b32.cont [15/16] 0.0, 128
    %123 = vxpose.xlu0.b32.end [16/16] 0.0, 128
    %v124 = vpop.trf.xlu0
    %v125 = vpop.trf.xlu0
    %v126 = vpop.trf.xlu0
    %v127 = vpop.trf.xlu0
    %v128 = vpop.trf.xlu0
    %v129 = vpop.trf.xlu0
    %v130 = vpop.trf.xlu0
    %v131 = vpop.trf.xlu0
    %v132 = vpop.trf.xlu0
    %v133 = vpop.trf.xlu0
    %v134 = vpop.trf.xlu0
    %v135 = vpop.trf.xlu0
    %v136 = vpop.trf.xlu0
    %v137 = vpop.trf.xlu0
    %v138 = vpop.trf.xlu0
    %v139 = vpop.trf.xlu0
    %140 = vxpose.xlu0.b32.start [1/16] %v104, 128
    %141 = vxpose.xlu0.b32.cont [2/16] %v105, 128
    %142 = vxpose.xlu0.b32.cont [3/16] %v106, 128
    %143 = vxpose.xlu0.b32.cont [4/16] %v107, 128
    %144 = vxpose.xlu0.b32.cont [5/16] 0.0, 128
    %145 = vxpose.xlu0.b32.cont [6/16] 0.0, 128
    %146 = vxpose.xlu0.b32.cont [7/16] 0.0, 128
    %147 = vxpose.xlu0.b32.cont [8/16] 0.0, 128
    %148 = vxpose.xlu0.b32.cont [9/16] 0.0, 128
    %149 = vxpose.xlu0.b32.cont [10/16] 0.0, 128
    %150 = vxpose.xlu0.b32.cont [11/16] 0.0, 128
    %151 = vxpose.xlu0.b32.cont [12/16] 0.0, 128
    %152 = vxpose.xlu0.b32.cont [13/16] 0.0, 128
    %153 = vxpose.xlu0.b32.cont [14/16] 0.0, 128
    %154 = vxpose.xlu0.b32.cont [15/16] 0.0, 128
    %155 = vxpose.xlu0.b32.end [16/16] 0.0, 128
    %v156 = vpop.trf.xlu0
    %v157 = vpop.trf.xlu0
    %v158 = vpop.trf.xlu0
    %v159 = vpop.trf.xlu0
    %v160 = vpop.trf.xlu0
    %v161 = vpop.trf.xlu0
    %v162 = vpop.trf.xlu0
    %v163 = vpop.trf.xlu0
    %v164 = vpop.trf.xlu0
    %v165 = vpop.trf.xlu0
    %v166 = vpop.trf.xlu0
    %v167 = vpop.trf.xlu0
    %v168 = vpop.trf.xlu0
    %v169 = vpop.trf.xlu0
    %v170 = vpop.trf.xlu0
    %v171 = vpop.trf.xlu0
    %v172 = vmul.f32 %v124, %v124
    %v173 = vmul.f32 %v125, %v125
    %v174 = vmul.f32 %v126, %v126
    %v175 = vmul.f32 %v127, %v127
    %v176 = vmul.f32 %v128, %v128
    %v177 = vmul.f32 %v129, %v129
    %v178 = vmul.f32 %v130, %v130
    %v179 = vmul.f32 %v131, %v131
    %v180 = vmul.f32 %v132, %v132
    %v181 = vmul.f32 %v133, %v133
    %v182 = vmul.f32 %v134, %v134
    %v183 = vmul.f32 %v135, %v135
    %v184 = vmul.f32 %v136, %v136
    %v185 = vmul.f32 %v137, %v137
    %v186 = vmul.f32 %v138, %v138
    %v187 = vmul.f32 %v139, %v139
    %v188 = vmul.f32 %v156, %v156
    %v189 = vmul.f32 %v157, %v157
    %v190 = vmul.f32 %v158, %v158
    %v191 = vmul.f32 %v159, %v159
    %v192 = vmul.f32 %v160, %v160
    %v193 = vmul.f32 %v161, %v161
    %v194 = vmul.f32 %v162, %v162
    %v195 = vmul.f32 %v163, %v163
    %v196 = vmul.f32 %v164, %v164
    %v197 = vmul.f32 %v165, %v165
    %v198 = vmul.f32 %v166, %v166
    %v199 = vmul.f32 %v167, %v167
    %v200 = vmul.f32 %v168, %v168
    %v201 = vmul.f32 %v169, %v169
    %v202 = vmul.f32 %v170, %v170
    %v203 = vmul.f32 %v171, %v171
    %vm204 = vcmask 261120
    %v205 = vsel %vm204, %v172, 0.0
    %206 = vadd.xlane.f32.xlu0 %v205
    %v207 = vpop.xlane.xlu0 %206
    %v208 = vsel %vm204, %v173, 0.0
    %209 = vadd.xlane.f32.xlu0 %v208
    %v210 = vpop.xlane.xlu0 %209
    %v211 = vsel %vm204, %v174, 0.0
    %212 = vadd.xlane.f32.xlu0 %v211
    %v213 = vpop.xlane.xlu0 %212
    %v214 = vsel %vm204, %v175, 0.0
    %215 = vadd.xlane.f32.xlu0 %v214
    %v216 = vpop.xlane.xlu0 %215
    %v217 = vsel %vm204, %v176, 0.0
    %218 = vadd.xlane.f32.xlu0 %v217
    %v219 = vpop.xlane.xlu0 %218
    %v220 = vsel %vm204, %v177, 0.0
    %221 = vadd.xlane.f32.xlu0 %v220
    %v222 = vpop.xlane.xlu0 %221
    %v223 = vsel %vm204, %v178, 0.0
    %224 = vadd.xlane.f32.xlu0 %v223
    %v225 = vpop.xlane.xlu0 %224
    %v226 = vsel %vm204, %v179, 0.0
    %227 = vadd.xlane.f32.xlu0 %v226
    %v228 = vpop.xlane.xlu0 %227
    %v229 = vsel %vm204, %v180, 0.0
    %230 = vadd.xlane.f32.xlu0 %v229
    %v231 = vpop.xlane.xlu0 %230
    %v232 = vsel %vm204, %v181, 0.0
    %233 = vadd.xlane.f32.xlu0 %v232
    %v234 = vpop.xlane.xlu0 %233
    %v235 = vsel %vm204, %v182, 0.0
    %236 = vadd.xlane.f32.xlu0 %v235
    %v237 = vpop.xlane.xlu0 %236
    %v238 = vsel %vm204, %v183, 0.0
    %239 = vadd.xlane.f32.xlu0 %v238
    %v240 = vpop.xlane.xlu0 %239
    %v241 = vsel %vm204, %v184, 0.0
    %242 = vadd.xlane.f32.xlu0 %v241
    %v243 = vpop.xlane.xlu0 %242
    %v244 = vsel %vm204, %v185, 0.0
    %245 = vadd.xlane.f32.xlu0 %v244
    %v246 = vpop.xlane.xlu0 %245
    %v247 = vsel %vm204, %v186, 0.0
    %248 = vadd.xlane.f32.xlu0 %v247
    %v249 = vpop.xlane.xlu0 %248
    %v250 = vsel %vm204, %v187, 0.0
    %251 = vadd.xlane.f32.xlu0 %v250
    %v252 = vpop.xlane.xlu0 %251
    %v253 = vsel %vm204, %v188, 0.0
    %254 = vadd.xlane.f32.xlu0 %v253
    %v255 = vpop.xlane.xlu0 %254
    %v256 = vsel %vm204, %v189, 0.0
    %257 = vadd.xlane.f32.xlu0 %v256
    %v258 = vpop.xlane.xlu0 %257
    %v259 = vsel %vm204, %v190, 0.0
    %260 = vadd.xlane.f32.xlu0 %v259
    %v261 = vpop.xlane.xlu0 %260
    %v262 = vsel %vm204, %v191, 0.0
    %263 = vadd.xlane.f32.xlu0 %v262
    %v264 = vpop.xlane.xlu0 %263
    %v265 = vsel %vm204, %v192, 0.0
    %266 = vadd.xlane.f32.xlu0 %v265
    %v267 = vpop.xlane.xlu0 %266
    %v268 = vsel %vm204, %v193, 0.0
    %269 = vadd.xlane.f32.xlu0 %v268
    %v270 = vpop.xlane.xlu0 %269
    %v271 = vsel %vm204, %v194, 0.0
    %272 = vadd.xlane.f32.xlu0 %v271
    %v273 = vpop.xlane.xlu0 %272
    %v274 = vsel %vm204, %v195, 0.0
    %275 = vadd.xlane.f32.xlu0 %v274
    %v276 = vpop.xlane.xlu0 %275
    %v277 = vsel %vm204, %v196, 0.0
    %278 = vadd.xlane.f32.xlu0 %v277
    %v279 = vpop.xlane.xlu0 %278
    %v280 = vsel %vm204, %v197, 0.0
    %281 = vadd.xlane.f32.xlu0 %v280
    %v282 = vpop.xlane.xlu0 %281
    %v283 = vsel %vm204, %v198, 0.0
    %284 = vadd.xlane.f32.xlu0 %v283
    %v285 = vpop.xlane.xlu0 %284
    %v286 = vsel %vm204, %v199, 0.0
    %287 = vadd.xlane.f32.xlu0 %v286
    %v288 = vpop.xlane.xlu0 %287
    %v289 = vsel %vm204, %v200, 0.0
    %290 = vadd.xlane.f32.xlu0 %v289
    %v291 = vpop.xlane.xlu0 %290
    %v292 = vsel %vm204, %v201, 0.0
    %293 = vadd.xlane.f32.xlu0 %v292
    %v294 = vpop.xlane.xlu0 %293
    %v295 = vsel %vm204, %v202, 0.0
    %296 = vadd.xlane.f32.xlu0 %v295
    %v297 = vpop.xlane.xlu0 %296
    %v298 = vsel %vm204, %v203, 0.0
    %299 = vadd.xlane.f32.xlu0 %v298
    %v300 = vpop.xlane.xlu0 %299
    %v301 = vrcp.pop 32.0
    %v302 = vmul.f32 32.0, %v301
    %v303 = vsub.f32 1.0, %v302
    %v304 = vmul.f32 %v301, %v303
    %v305 = vadd.f32 %v301, %v304
    %vm306 = vweird.f32 %v301
    %v307 = vsel %vm306, %v301, %v305
    %v308 = vmul.f32 %v207, %v307
    %v309 = vmul.f32 %v210, %v307
    %v310 = vmul.f32 %v213, %v307
    %v311 = vmul.f32 %v216, %v307
    %v312 = vmul.f32 %v219, %v307
    %v313 = vmul.f32 %v222, %v307
    %v314 = vmul.f32 %v225, %v307
    %v315 = vmul.f32 %v228, %v307
    %v316 = vmul.f32 %v231, %v307
    %v317 = vmul.f32 %v234, %v307
    %v318 = vmul.f32 %v237, %v307
    %v319 = vmul.f32 %v240, %v307
    %v320 = vmul.f32 %v243, %v307
    %v321 = vmul.f32 %v246, %v307
    %v322 = vmul.f32 %v249, %v307
    %v323 = vmul.f32 %v252, %v307
    %v324 = vmul.f32 %v255, %v307
    %v325 = vmul.f32 %v258, %v307
    %v326 = vmul.f32 %v261, %v307
    %v327 = vmul.f32 %v264, %v307
    %v328 = vmul.f32 %v267, %v307
    %v329 = vmul.f32 %v270, %v307
    %v330 = vmul.f32 %v273, %v307
    %v331 = vmul.f32 %v276, %v307
    %v332 = vmul.f32 %v279, %v307
    %v333 = vmul.f32 %v282, %v307
    %v334 = vmul.f32 %v285, %v307
    %v335 = vmul.f32 %v288, %v307
    %v336 = vmul.f32 %v291, %v307
    %v337 = vmul.f32 %v294, %v307
    %v338 = vmul.f32 %v297, %v307
    %v339 = vmul.f32 %v300, %v307
    %v340 = vadd.f32 %v308, 1e-08
    %v341 = vadd.f32 %v309, 1e-08
    %v342 = vadd.f32 %v310, 1e-08
    %v343 = vadd.f32 %v311, 1e-08
    %v344 = vadd.f32 %v312, 1e-08
    %v345 = vadd.f32 %v313, 1e-08
    %v346 = vadd.f32 %v314, 1e-08
    %v347 = vadd.f32 %v315, 1e-08
    %v348 = vadd.f32 %v316, 1e-08
    %v349 = vadd.f32 %v317, 1e-08
    %v350 = vadd.f32 %v318, 1e-08
    %v351 = vadd.f32 %v319, 1e-08
    %v352 = vadd.f32 %v320, 1e-08
    %v353 = vadd.f32 %v321, 1e-08
    %v354 = vadd.f32 %v322, 1e-08
    %v355 = vadd.f32 %v323, 1e-08
    %v356 = vadd.f32 %v324, 1e-08
    %v357 = vadd.f32 %v325, 1e-08
    %v358 = vadd.f32 %v326, 1e-08
    %v359 = vadd.f32 %v327, 1e-08
    %v360 = vadd.f32 %v328, 1e-08
    %v361 = vadd.f32 %v329, 1e-08
    %v362 = vadd.f32 %v330, 1e-08
    %v363 = vadd.f32 %v331, 1e-08
    %v364 = vadd.f32 %v332, 1e-08
    %v365 = vadd.f32 %v333, 1e-08
    %v366 = vadd.f32 %v334, 1e-08
    %v367 = vadd.f32 %v335, 1e-08
    %v368 = vadd.f32 %v336, 1e-08
    %v369 = vadd.f32 %v337, 1e-08
    %v370 = vadd.f32 %v338, 1e-08
    %v371 = vadd.f32 %v339, 1e-08
    %v372 = vrsqrt.pop %v340
    %v373 = vmul.f32 %v372, %v340
    %v374 = vmul.f32 %v373, %v372
    %v375 = vmul.f32 0.5, %v374
    %v376 = vsub.f32 1.5, %v375
    %v377 = vmul.f32 %v372, %v376
    %vm378 = vweird.f32 %v340
    %vm379 = vweird.f32 %v372
    %vm380 = vmor %vm378, %vm379
    %v381 = vsel %vm380, %v372, %v377
    %v382 = vrsqrt.pop %v341
    %v383 = vmul.f32 %v382, %v341
    %v384 = vmul.f32 %v383, %v382
    %v385 = vmul.f32 0.5, %v384
    %v386 = vsub.f32 1.5, %v385
    %v387 = vmul.f32 %v382, %v386
    %vm388 = vweird.f32 %v341
    %vm389 = vweird.f32 %v382
    %vm390 = vmor %vm388, %vm389
    %v391 = vsel %vm390, %v382, %v387
    %v392 = vrsqrt.pop %v342
    %v393 = vmul.f32 %v392, %v342
    %v394 = vmul.f32 %v393, %v392
    %v395 = vmul.f32 0.5, %v394
    %v396 = vsub.f32 1.5, %v395
    %v397 = vmul.f32 %v392, %v396
    %vm398 = vweird.f32 %v342
    %vm399 = vweird.f32 %v392
    %vm400 = vmor %vm398, %vm399
    %v401 = vsel %vm400, %v392, %v397
    %v402 = vrsqrt.pop %v343
    %v403 = vmul.f32 %v402, %v343
    %v404 = vmul.f32 %v403, %v402
    %v405 = vmul.f32 0.5, %v404
    %v406 = vsub.f32 1.5, %v405
    %v407 = vmul.f32 %v402, %v406
    %vm408 = vweird.f32 %v343
    %vm409 = vweird.f32 %v402
    %vm410 = vmor %vm408, %vm409
    %v411 = vsel %vm410, %v402, %v407
    %v412 = vrsqrt.pop %v344
    %v413 = vmul.f32 %v412, %v344
    %v414 = vmul.f32 %v413, %v412
    %v415 = vmul.f32 0.5, %v414
    %v416 = vsub.f32 1.5, %v415
    %v417 = vmul.f32 %v412, %v416
    %vm418 = vweird.f32 %v344
    %vm419 = vweird.f32 %v412
    %vm420 = vmor %vm418, %vm419
    %v421 = vsel %vm420, %v412, %v417
    %v422 = vrsqrt.pop %v345
    %v423 = vmul.f32 %v422, %v345
    %v424 = vmul.f32 %v423, %v422
    %v425 = vmul.f32 0.5, %v424
    %v426 = vsub.f32 1.5, %v425
    %v427 = vmul.f32 %v422, %v426
    %vm428 = vweird.f32 %v345
    %vm429 = vweird.f32 %v422
    %vm430 = vmor %vm428, %vm429
    %v431 = vsel %vm430, %v422, %v427
    %v432 = vrsqrt.pop %v346
    %v433 = vmul.f32 %v432, %v346
    %v434 = vmul.f32 %v433, %v432
    %v435 = vmul.f32 0.5, %v434
    %v436 = vsub.f32 1.5, %v435
    %v437 = vmul.f32 %v432, %v436
    %vm438 = vweird.f32 %v346
    %vm439 = vweird.f32 %v432
    %vm440 = vmor %vm438, %vm439
    %v441 = vsel %vm440, %v432, %v437
    %v442 = vrsqrt.pop %v347
    %v443 = vmul.f32 %v442, %v347
    %v444 = vmul.f32 %v443, %v442
    %v445 = vmul.f32 0.5, %v444
    %v446 = vsub.f32 1.5, %v445
    %v447 = vmul.f32 %v442, %v446
    %vm448 = vweird.f32 %v347
    %vm449 = vweird.f32 %v442
    %vm450 = vmor %vm448, %vm449
    %v451 = vsel %vm450, %v442, %v447
    %v452 = vrsqrt.pop %v348
    %v453 = vmul.f32 %v452, %v348
    %v454 = vmul.f32 %v453, %v452
    %v455 = vmul.f32 0.5, %v454
    %v456 = vsub.f32 1.5, %v455
    %v457 = vmul.f32 %v452, %v456
    %vm458 = vweird.f32 %v348
    %vm459 = vweird.f32 %v452
    %vm460 = vmor %vm458, %vm459
    %v461 = vsel %vm460, %v452, %v457
    %v462 = vrsqrt.pop %v349
    %v463 = vmul.f32 %v462, %v349
    %v464 = vmul.f32 %v463, %v462
    %v465 = vmul.f32 0.5, %v464
    %v466 = vsub.f32 1.5, %v465
    %v467 = vmul.f32 %v462, %v466
    %vm468 = vweird.f32 %v349
    %vm469 = vweird.f32 %v462
    %vm470 = vmor %vm468, %vm469
    %v471 = vsel %vm470, %v462, %v467
    %v472 = vrsqrt.pop %v350
    %v473 = vmul.f32 %v472, %v350
    %v474 = vmul.f32 %v473, %v472
    %v475 = vmul.f32 0.5, %v474
    %v476 = vsub.f32 1.5, %v475
    %v477 = vmul.f32 %v472, %v476
    %vm478 = vweird.f32 %v350
    %vm479 = vweird.f32 %v472
    %vm480 = vmor %vm478, %vm479
    %v481 = vsel %vm480, %v472, %v477
    %v482 = vrsqrt.pop %v351
    %v483 = vmul.f32 %v482, %v351
    %v484 = vmul.f32 %v483, %v482
    %v485 = vmul.f32 0.5, %v484
    %v486 = vsub.f32 1.5, %v485
    %v487 = vmul.f32 %v482, %v486
    %vm488 = vweird.f32 %v351
    %vm489 = vweird.f32 %v482
    %vm490 = vmor %vm488, %vm489
    %v491 = vsel %vm490, %v482, %v487
    %v492 = vrsqrt.pop %v352
    %v493 = vmul.f32 %v492, %v352
    %v494 = vmul.f32 %v493, %v492
    %v495 = vmul.f32 0.5, %v494
    %v496 = vsub.f32 1.5, %v495
    %v497 = vmul.f32 %v492, %v496
    %vm498 = vweird.f32 %v352
    %vm499 = vweird.f32 %v492
    %vm500 = vmor %vm498, %vm499
    %v501 = vsel %vm500, %v492, %v497
    %v502 = vrsqrt.pop %v353
    %v503 = vmul.f32 %v502, %v353
    %v504 = vmul.f32 %v503, %v502
    %v505 = vmul.f32 0.5, %v504
    %v506 = vsub.f32 1.5, %v505
    %v507 = vmul.f32 %v502, %v506
    %vm508 = vweird.f32 %v353
    %vm509 = vweird.f32 %v502
    %vm510 = vmor %vm508, %vm509
    %v511 = vsel %vm510, %v502, %v507
    %v512 = vrsqrt.pop %v354
    %v513 = vmul.f32 %v512, %v354
    %v514 = vmul.f32 %v513, %v512
    %v515 = vmul.f32 0.5, %v514
    %v516 = vsub.f32 1.5, %v515
    %v517 = vmul.f32 %v512, %v516
    %vm518 = vweird.f32 %v354
    %vm519 = vweird.f32 %v512
    %vm520 = vmor %vm518, %vm519
    %v521 = vsel %vm520, %v512, %v517
    %v522 = vrsqrt.pop %v355
    %v523 = vmul.f32 %v522, %v355
    %v524 = vmul.f32 %v523, %v522
    %v525 = vmul.f32 0.5, %v524
    %v526 = vsub.f32 1.5, %v525
    %v527 = vmul.f32 %v522, %v526
    %vm528 = vweird.f32 %v355
    %vm529 = vweird.f32 %v522
    %vm530 = vmor %vm528, %vm529
    %v531 = vsel %vm530, %v522, %v527
    %v532 = vrsqrt.pop %v356
    %v533 = vmul.f32 %v532, %v356
    %v534 = vmul.f32 %v533, %v532
    %v535 = vmul.f32 0.5, %v534
    %v536 = vsub.f32 1.5, %v535
    %v537 = vmul.f32 %v532, %v536
    %vm538 = vweird.f32 %v356
    %vm539 = vweird.f32 %v532
    %vm540 = vmor %vm538, %vm539
    %v541 = vsel %vm540, %v532, %v537
    %v542 = vrsqrt.pop %v357
    %v543 = vmul.f32 %v542, %v357
    %v544 = vmul.f32 %v543, %v542
    %v545 = vmul.f32 0.5, %v544
    %v546 = vsub.f32 1.5, %v545
    %v547 = vmul.f32 %v542, %v546
    %vm548 = vweird.f32 %v357
    %vm549 = vweird.f32 %v542
    %vm550 = vmor %vm548, %vm549
    %v551 = vsel %vm550, %v542, %v547
    %v552 = vrsqrt.pop %v358
    %v553 = vmul.f32 %v552, %v358
    %v554 = vmul.f32 %v553, %v552
    %v555 = vmul.f32 0.5, %v554
    %v556 = vsub.f32 1.5, %v555
    %v557 = vmul.f32 %v552, %v556
    %vm558 = vweird.f32 %v358
    %vm559 = vweird.f32 %v552
    %vm560 = vmor %vm558, %vm559
    %v561 = vsel %vm560, %v552, %v557
    %v562 = vrsqrt.pop %v359
    %v563 = vmul.f32 %v562, %v359
    %v564 = vmul.f32 %v563, %v562
    %v565 = vmul.f32 0.5, %v564
    %v566 = vsub.f32 1.5, %v565
    %v567 = vmul.f32 %v562, %v566
    %vm568 = vweird.f32 %v359
    %vm569 = vweird.f32 %v562
    %vm570 = vmor %vm568, %vm569
    %v571 = vsel %vm570, %v562, %v567
    %v572 = vrsqrt.pop %v360
    %v573 = vmul.f32 %v572, %v360
    %v574 = vmul.f32 %v573, %v572
    %v575 = vmul.f32 0.5, %v574
    %v576 = vsub.f32 1.5, %v575
    %v577 = vmul.f32 %v572, %v576
    %vm578 = vweird.f32 %v360
    %vm579 = vweird.f32 %v572
    %vm580 = vmor %vm578, %vm579
    %v581 = vsel %vm580, %v572, %v577
    %v582 = vrsqrt.pop %v361
    %v583 = vmul.f32 %v582, %v361
    %v584 = vmul.f32 %v583, %v582
    %v585 = vmul.f32 0.5, %v584
    %v586 = vsub.f32 1.5, %v585
    %v587 = vmul.f32 %v582, %v586
    %vm588 = vweird.f32 %v361
    %vm589 = vweird.f32 %v582
    %vm590 = vmor %vm588, %vm589
    %v591 = vsel %vm590, %v582, %v587
    %v592 = vrsqrt.pop %v362
    %v593 = vmul.f32 %v592, %v362
    %v594 = vmul.f32 %v593, %v592
    %v595 = vmul.f32 0.5, %v594
    %v596 = vsub.f32 1.5, %v595
    %v597 = vmul.f32 %v592, %v596
    %vm598 = vweird.f32 %v362
    %vm599 = vweird.f32 %v592
    %vm600 = vmor %vm598, %vm599
    %v601 = vsel %vm600, %v592, %v597
    %v602 = vrsqrt.pop %v363
    %v603 = vmul.f32 %v602, %v363
    %v604 = vmul.f32 %v603, %v602
    %v605 = vmul.f32 0.5, %v604
    %v606 = vsub.f32 1.5, %v605
    %v607 = vmul.f32 %v602, %v606
    %vm608 = vweird.f32 %v363
    %vm609 = vweird.f32 %v602
    %vm610 = vmor %vm608, %vm609
    %v611 = vsel %vm610, %v602, %v607
    %v612 = vrsqrt.pop %v364
    %v613 = vmul.f32 %v612, %v364
    %v614 = vmul.f32 %v613, %v612
    %v615 = vmul.f32 0.5, %v614
    %v616 = vsub.f32 1.5, %v615
    %v617 = vmul.f32 %v612, %v616
    %vm618 = vweird.f32 %v364
    %vm619 = vweird.f32 %v612
    %vm620 = vmor %vm618, %vm619
    %v621 = vsel %vm620, %v612, %v617
    %v622 = vrsqrt.pop %v365
    %v623 = vmul.f32 %v622, %v365
    %v624 = vmul.f32 %v623, %v622
    %v625 = vmul.f32 0.5, %v624
    %v626 = vsub.f32 1.5, %v625
    %v627 = vmul.f32 %v622, %v626
    %vm628 = vweird.f32 %v365
    %vm629 = vweird.f32 %v622
    %vm630 = vmor %vm628, %vm629
    %v631 = vsel %vm630, %v622, %v627
    %v632 = vrsqrt.pop %v366
    %v633 = vmul.f32 %v632, %v366
    %v634 = vmul.f32 %v633, %v632
    %v635 = vmul.f32 0.5, %v634
    %v636 = vsub.f32 1.5, %v635
    %v637 = vmul.f32 %v632, %v636
    %vm638 = vweird.f32 %v366
    %vm639 = vweird.f32 %v632
    %vm640 = vmor %vm638, %vm639
    %v641 = vsel %vm640, %v632, %v637
    %v642 = vrsqrt.pop %v367
    %v643 = vmul.f32 %v642, %v367
    %v644 = vmul.f32 %v643, %v642
    %v645 = vmul.f32 0.5, %v644
    %v646 = vsub.f32 1.5, %v645
    %v647 = vmul.f32 %v642, %v646
    %vm648 = vweird.f32 %v367
    %vm649 = vweird.f32 %v642
    %vm650 = vmor %vm648, %vm649
    %v651 = vsel %vm650, %v642, %v647
    %v652 = vrsqrt.pop %v368
    %v653 = vmul.f32 %v652, %v368
    %v654 = vmul.f32 %v653, %v652
    %v655 = vmul.f32 0.5, %v654
    %v656 = vsub.f32 1.5, %v655
    %v657 = vmul.f32 %v652, %v656
    %vm658 = vweird.f32 %v368
    %vm659 = vweird.f32 %v652
    %vm660 = vmor %vm658, %vm659
    %v661 = vsel %vm660, %v652, %v657
    %v662 = vrsqrt.pop %v369
    %v663 = vmul.f32 %v662, %v369
    %v664 = vmul.f32 %v663, %v662
    %v665 = vmul.f32 0.5, %v664
    %v666 = vsub.f32 1.5, %v665
    %v667 = vmul.f32 %v662, %v666
    %vm668 = vweird.f32 %v369
    %vm669 = vweird.f32 %v662
    %vm670 = vmor %vm668, %vm669
    %v671 = vsel %vm670, %v662, %v667
    %v672 = vrsqrt.pop %v370
    %v673 = vmul.f32 %v672, %v370
    %v674 = vmul.f32 %v673, %v672
    %v675 = vmul.f32 0.5, %v674
    %v676 = vsub.f32 1.5, %v675
    %v677 = vmul.f32 %v672, %v676
    %vm678 = vweird.f32 %v370
    %vm679 = vweird.f32 %v672
    %vm680 = vmor %vm678, %vm679
    %v681 = vsel %vm680, %v672, %v677
    %v682 = vrsqrt.pop %v371
    %v683 = vmul.f32 %v682, %v371
    %v684 = vmul.f32 %v683, %v682
    %v685 = vmul.f32 0.5, %v684
    %v686 = vsub.f32 1.5, %v685
    %v687 = vmul.f32 %v682, %v686
    %vm688 = vweird.f32 %v371
    %vm689 = vweird.f32 %v682
    %vm690 = vmor %vm688, %vm689
    %v691 = vsel %vm690, %v682, %v687
    %v692 = vmul.f32 %v124, %v381
    %v693 = vmul.f32 %v125, %v391
    %v694 = vmul.f32 %v126, %v401
    %v695 = vmul.f32 %v127, %v411
    %v696 = vmul.f32 %v128, %v421
    %v697 = vmul.f32 %v129, %v431
    %v698 = vmul.f32 %v130, %v441
    %v699 = vmul.f32 %v131, %v451
    %v700 = vmul.f32 %v132, %v461
    %v701 = vmul.f32 %v133, %v471
    %v702 = vmul.f32 %v134, %v481
    %v703 = vmul.f32 %v135, %v491
    %v704 = vmul.f32 %v136, %v501
    %v705 = vmul.f32 %v137, %v511
    %v706 = vmul.f32 %v138, %v521
    %v707 = vmul.f32 %v139, %v531
    %v708 = vmul.f32 %v156, %v541
    %v709 = vmul.f32 %v157, %v551
    %v710 = vmul.f32 %v158, %v561
    %v711 = vmul.f32 %v159, %v571
    %v712 = vmul.f32 %v160, %v581
    %v713 = vmul.f32 %v161, %v591
    %v714 = vmul.f32 %v162, %v601
    %v715 = vmul.f32 %v163, %v611
    %v716 = vmul.f32 %v164, %v621
    %v717 = vmul.f32 %v165, %v631
    %v718 = vmul.f32 %v166, %v641
    %v719 = vmul.f32 %v167, %v651
    %v720 = vmul.f32 %v168, %v661
    %v721 = vmul.f32 %v169, %v671
    %v722 = vmul.f32 %v170, %v681
    %v723 = vmul.f32 %v171, %v691
    %v724 = vpack.c.bf16 %v692, %v692
    %v725 = vpack.c.bf16 %v693, %v693
    %v726 = vpack.c.bf16 %v694, %v694
    %v727 = vpack.c.bf16 %v695, %v695
    %v728 = vpack.c.bf16 %v696, %v696
    %v729 = vpack.c.bf16 %v697, %v697
    %v730 = vpack.c.bf16 %v698, %v698
    %v731 = vpack.c.bf16 %v699, %v699
    %v732 = vpack.c.bf16 %v700, %v700
    %v733 = vpack.c.bf16 %v701, %v701
    %v734 = vpack.c.bf16 %v702, %v702
    %v735 = vpack.c.bf16 %v703, %v703
    %v736 = vpack.c.bf16 %v704, %v704
    %v737 = vpack.c.bf16 %v705, %v705
    %v738 = vpack.c.bf16 %v706, %v706
    %v739 = vpack.c.bf16 %v707, %v707
    %v740 = vpack.c.bf16 %v708, %v708
    %v741 = vpack.c.bf16 %v709, %v709
    %v742 = vpack.c.bf16 %v710, %v710
    %v743 = vpack.c.bf16 %v711, %v711
    %v744 = vpack.c.bf16 %v712, %v712
    %v745 = vpack.c.bf16 %v713, %v713
    %v746 = vpack.c.bf16 %v714, %v714
    %v747 = vpack.c.bf16 %v715, %v715
    %v748 = vpack.c.bf16 %v716, %v716
    %v749 = vpack.c.bf16 %v717, %v717
    %v750 = vpack.c.bf16 %v718, %v718
    %v751 = vpack.c.bf16 %v719, %v719
    %v752 = vpack.c.bf16 %v720, %v720
    %v753 = vpack.c.bf16 %v721, %v721
    %v754 = vpack.c.bf16 %v722, %v722
    %v755 = vpack.c.bf16 %v723, %v723
    %v756 = vxor.u32 %v692, 2147483648
    %v757 = vxor.u32 %v693, 2147483648
    %v758 = vxor.u32 %v694, 2147483648
    %v759 = vxor.u32 %v695, 2147483648
    %v760 = vxor.u32 %v696, 2147483648
    %v761 = vxor.u32 %v697, 2147483648
    %v762 = vxor.u32 %v698, 2147483648
    %v763 = vxor.u32 %v699, 2147483648
    %v764 = vxor.u32 %v700, 2147483648
    %v765 = vxor.u32 %v701, 2147483648
    %v766 = vxor.u32 %v702, 2147483648
    %v767 = vxor.u32 %v703, 2147483648
    %v768 = vxor.u32 %v704, 2147483648
    %v769 = vxor.u32 %v705, 2147483648
    %v770 = vxor.u32 %v706, 2147483648
    %v771 = vxor.u32 %v707, 2147483648
    %v772 = vxor.u32 %v708, 2147483648
    %v773 = vxor.u32 %v709, 2147483648
    %v774 = vxor.u32 %v710, 2147483648
    %v775 = vxor.u32 %v711, 2147483648
    %v776 = vxor.u32 %v712, 2147483648
    %v777 = vxor.u32 %v713, 2147483648
    %v778 = vxor.u32 %v714, 2147483648
    %v779 = vxor.u32 %v715, 2147483648
    %v780 = vxor.u32 %v716, 2147483648
    %v781 = vxor.u32 %v717, 2147483648
    %v782 = vxor.u32 %v718, 2147483648
    %v783 = vxor.u32 %v719, 2147483648
    %v784 = vxor.u32 %v720, 2147483648
    %v785 = vxor.u32 %v721, 2147483648
    %v786 = vxor.u32 %v722, 2147483648
    %v787 = vxor.u32 %v723, 2147483648
    %v788 = vmul.f32 %v756, 1.442695
    %v789 = vpow.pop %v788
    %v790 = vmul.f32 %v757, 1.442695
    %v791 = vpow.pop %v790
    %v792 = vmul.f32 %v758, 1.442695
    %v793 = vpow.pop %v792
    %v794 = vmul.f32 %v759, 1.442695
    %v795 = vpow.pop %v794
    %v796 = vmul.f32 %v760, 1.442695
    %v797 = vpow.pop %v796
    %v798 = vmul.f32 %v761, 1.442695
    %v799 = vpow.pop %v798
    %v800 = vmul.f32 %v762, 1.442695
    %v801 = vpow.pop %v800
    %v802 = vmul.f32 %v763, 1.442695
    %v803 = vpow.pop %v802
    %v804 = vmul.f32 %v764, 1.442695
    %v805 = vpow.pop %v804
    %v806 = vmul.f32 %v765, 1.442695
    %v807 = vpow.pop %v806
    %v808 = vmul.f32 %v766, 1.442695
    %v809 = vpow.pop %v808
    %v810 = vmul.f32 %v767, 1.442695
    %v811 = vpow.pop %v810
    %v812 = vmul.f32 %v768, 1.442695
    %v813 = vpow.pop %v812
    %v814 = vmul.f32 %v769, 1.442695
    %v815 = vpow.pop %v814
    %v816 = vmul.f32 %v770, 1.442695
    %v817 = vpow.pop %v816
    %v818 = vmul.f32 %v771, 1.442695
    %v819 = vpow.pop %v818
    %v820 = vmul.f32 %v772, 1.442695
    %v821 = vpow.pop %v820
    %v822 = vmul.f32 %v773, 1.442695
    %v823 = vpow.pop %v822
    %v824 = vmul.f32 %v774, 1.442695
    %v825 = vpow.pop %v824
    %v826 = vmul.f32 %v775, 1.442695
    %v827 = vpow.pop %v826
    %v828 = vmul.f32 %v776, 1.442695
    %v829 = vpow.pop %v828
    %v830 = vmul.f32 %v777, 1.442695
    %v831 = vpow.pop %v830
    %v832 = vmul.f32 %v778, 1.442695
    %v833 = vpow.pop %v832
    %v834 = vmul.f32 %v779, 1.442695
    %v835 = vpow.pop %v834
    %v836 = vmul.f32 %v780, 1.442695
    %v837 = vpow.pop %v836
    %v838 = vmul.f32 %v781, 1.442695
    %v839 = vpow.pop %v838
    %v840 = vmul.f32 %v782, 1.442695
    %v841 = vpow.pop %v840
    %v842 = vmul.f32 %v783, 1.442695
    %v843 = vpow.pop %v842
    %v844 = vmul.f32 %v784, 1.442695
    %v845 = vpow.pop %v844
    %v846 = vmul.f32 %v785, 1.442695
    %v847 = vpow.pop %v846
    %v848 = vmul.f32 %v786, 1.442695
    %v849 = vpow.pop %v848
    %v850 = vmul.f32 %v787, 1.442695
    %v851 = vpow.pop %v850
    %v852 = vadd.f32 %v789, 1.0
    %v853 = vadd.f32 %v791, 1.0
    %v854 = vadd.f32 %v793, 1.0
    %v855 = vadd.f32 %v795, 1.0
    %v856 = vadd.f32 %v797, 1.0
    %v857 = vadd.f32 %v799, 1.0
    %v858 = vadd.f32 %v801, 1.0
    %v859 = vadd.f32 %v803, 1.0
    %v860 = vadd.f32 %v805, 1.0
    %v861 = vadd.f32 %v807, 1.0
    %v862 = vadd.f32 %v809, 1.0
    %v863 = vadd.f32 %v811, 1.0
    %v864 = vadd.f32 %v813, 1.0
    %v865 = vadd.f32 %v815, 1.0
    %v866 = vadd.f32 %v817, 1.0
    %v867 = vadd.f32 %v819, 1.0
    %v868 = vadd.f32 %v821, 1.0
    %v869 = vadd.f32 %v823, 1.0
    %v870 = vadd.f32 %v825, 1.0
    %v871 = vadd.f32 %v827, 1.0
    %v872 = vadd.f32 %v829, 1.0
    %v873 = vadd.f32 %v831, 1.0
    %v874 = vadd.f32 %v833, 1.0
    %v875 = vadd.f32 %v835, 1.0
    %v876 = vadd.f32 %v837, 1.0
    %v877 = vadd.f32 %v839, 1.0
    %v878 = vadd.f32 %v841, 1.0
    %v879 = vadd.f32 %v843, 1.0
    %v880 = vadd.f32 %v845, 1.0
    %v881 = vadd.f32 %v847, 1.0
    %v882 = vadd.f32 %v849, 1.0
    %v883 = vadd.f32 %v851, 1.0
    %v884 = vrcp.pop %v852
    %v885 = vmul.f32 %v852, %v884
    %v886 = vsub.f32 1.0, %v885
    %v887 = vmul.f32 %v884, %v886
    %v888 = vadd.f32 %v884, %v887
    %vm889 = vweird.f32 %v852
    %vm890 = vweird.f32 %v884
    %vm891 = vmor %vm889, %vm890
    %v892 = vsel %vm891, %v884, %v888
    %v893 = vand.u32 2147483647, %v852
    %vm894 = vcmp.eq.f32.partialorder %v893, 8.507059e+37
    %v895 = vand.u32 %v852, 2147483648
    %v896 = vor.u32 1.1754944e-38, %v895
    %v897 = vsel %vm894, %v896, %v892
    %v898 = vmul.f32 1.0, %v897
    %v899 = vrcp.pop %v853
    %v900 = vmul.f32 %v853, %v899
    %v901 = vsub.f32 1.0, %v900
    %v902 = vmul.f32 %v899, %v901
    %v903 = vadd.f32 %v899, %v902
    %vm904 = vweird.f32 %v853
    %vm905 = vweird.f32 %v899
    %vm906 = vmor %vm904, %vm905
    %v907 = vsel %vm906, %v899, %v903
    %v908 = vand.u32 2147483647, %v853
    %vm909 = vcmp.eq.f32.partialorder %v908, 8.507059e+37
    %v910 = vand.u32 %v853, 2147483648
    %v911 = vor.u32 1.1754944e-38, %v910
    %v912 = vsel %vm909, %v911, %v907
    %v913 = vmul.f32 1.0, %v912
    %v914 = vrcp.pop %v854
    %v915 = vmul.f32 %v854, %v914
    %v916 = vsub.f32 1.0, %v915
    %v917 = vmul.f32 %v914, %v916
    %v918 = vadd.f32 %v914, %v917
    %vm919 = vweird.f32 %v854
    %vm920 = vweird.f32 %v914
    %vm921 = vmor %vm919, %vm920
    %v922 = vsel %vm921, %v914, %v918
    %v923 = vand.u32 2147483647, %v854
    %vm924 = vcmp.eq.f32.partialorder %v923, 8.507059e+37
    %v925 = vand.u32 %v854, 2147483648
    %v926 = vor.u32 1.1754944e-38, %v925
    %v927 = vsel %vm924, %v926, %v922
    %v928 = vmul.f32 1.0, %v927
    %v929 = vrcp.pop %v855
    %v930 = vmul.f32 %v855, %v929
    %v931 = vsub.f32 1.0, %v930
    %v932 = vmul.f32 %v929, %v931
    %v933 = vadd.f32 %v929, %v932
    %vm934 = vweird.f32 %v855
    %vm935 = vweird.f32 %v929
    %vm936 = vmor %vm934, %vm935
    %v937 = vsel %vm936, %v929, %v933
    %v938 = vand.u32 2147483647, %v855
    %vm939 = vcmp.eq.f32.partialorder %v938, 8.507059e+37
    %v940 = vand.u32 %v855, 2147483648
    %v941 = vor.u32 1.1754944e-38, %v940
    %v942 = vsel %vm939, %v941, %v937
    %v943 = vmul.f32 1.0, %v942
    %v944 = vrcp.pop %v856
    %v945 = vmul.f32 %v856, %v944
    %v946 = vsub.f32 1.0, %v945
    %v947 = vmul.f32 %v944, %v946
    %v948 = vadd.f32 %v944, %v947
    %vm949 = vweird.f32 %v856
    %vm950 = vweird.f32 %v944
    %vm951 = vmor %vm949, %vm950
    %v952 = vsel %vm951, %v944, %v948
    %v953 = vand.u32 2147483647, %v856
    %vm954 = vcmp.eq.f32.partialorder %v953, 8.507059e+37
    %v955 = vand.u32 %v856, 2147483648
    %v956 = vor.u32 1.1754944e-38, %v955
    %v957 = vsel %vm954, %v956, %v952
    %v958 = vmul.f32 1.0, %v957
    %v959 = vrcp.pop %v857
    %v960 = vmul.f32 %v857, %v959
    %v961 = vsub.f32 1.0, %v960
    %v962 = vmul.f32 %v959, %v961
    %v963 = vadd.f32 %v959, %v962
    %vm964 = vweird.f32 %v857
    %vm965 = vweird.f32 %v959
    %vm966 = vmor %vm964, %vm965
    %v967 = vsel %vm966, %v959, %v963
    %v968 = vand.u32 2147483647, %v857
    %vm969 = vcmp.eq.f32.partialorder %v968, 8.507059e+37
    %v970 = vand.u32 %v857, 2147483648
    %v971 = vor.u32 1.1754944e-38, %v970
    %v972 = vsel %vm969, %v971, %v967
    %v973 = vmul.f32 1.0, %v972
    %v974 = vrcp.pop %v858
    %v975 = vmul.f32 %v858, %v974
    %v976 = vsub.f32 1.0, %v975
    %v977 = vmul.f32 %v974, %v976
    %v978 = vadd.f32 %v974, %v977
    %vm979 = vweird.f32 %v858
    %vm980 = vweird.f32 %v974
    %vm981 = vmor %vm979, %vm980
    %v982 = vsel %vm981, %v974, %v978
    %v983 = vand.u32 2147483647, %v858
    %vm984 = vcmp.eq.f32.partialorder %v983, 8.507059e+37
    %v985 = vand.u32 %v858, 2147483648
    %v986 = vor.u32 1.1754944e-38, %v985
    %v987 = vsel %vm984, %v986, %v982
    %v988 = vmul.f32 1.0, %v987
    %v989 = vrcp.pop %v859
    %v990 = vmul.f32 %v859, %v989
    %v991 = vsub.f32 1.0, %v990
    %v992 = vmul.f32 %v989, %v991
    %v993 = vadd.f32 %v989, %v992
    %vm994 = vweird.f32 %v859
    %vm995 = vweird.f32 %v989
    %vm996 = vmor %vm994, %vm995
    %v997 = vsel %vm996, %v989, %v993
    %v998 = vand.u32 2147483647, %v859
    %vm999 = vcmp.eq.f32.partialorder %v998, 8.507059e+37
    %v1000 = vand.u32 %v859, 2147483648
    %v1001 = vor.u32 1.1754944e-38, %v1000
    %v1002 = vsel %vm999, %v1001, %v997
    %v1003 = vmul.f32 1.0, %v1002
    %v1004 = vrcp.pop %v860
    %v1005 = vmul.f32 %v860, %v1004
    %v1006 = vsub.f32 1.0, %v1005
    %v1007 = vmul.f32 %v1004, %v1006
    %v1008 = vadd.f32 %v1004, %v1007
    %vm1009 = vweird.f32 %v860
    %vm1010 = vweird.f32 %v1004
    %vm1011 = vmor %vm1009, %vm1010
    %v1012 = vsel %vm1011, %v1004, %v1008
    %v1013 = vand.u32 2147483647, %v860
    %vm1014 = vcmp.eq.f32.partialorder %v1013, 8.507059e+37
    %v1015 = vand.u32 %v860, 2147483648
    %v1016 = vor.u32 1.1754944e-38, %v1015
    %v1017 = vsel %vm1014, %v1016, %v1012
    %v1018 = vmul.f32 1.0, %v1017
    %v1019 = vrcp.pop %v861
    %v1020 = vmul.f32 %v861, %v1019
    %v1021 = vsub.f32 1.0, %v1020
    %v1022 = vmul.f32 %v1019, %v1021
    %v1023 = vadd.f32 %v1019, %v1022
    %vm1024 = vweird.f32 %v861
    %vm1025 = vweird.f32 %v1019
    %vm1026 = vmor %vm1024, %vm1025
    %v1027 = vsel %vm1026, %v1019, %v1023
    %v1028 = vand.u32 2147483647, %v861
    %vm1029 = vcmp.eq.f32.partialorder %v1028, 8.507059e+37
    %v1030 = vand.u32 %v861, 2147483648
    %v1031 = vor.u32 1.1754944e-38, %v1030
    %v1032 = vsel %vm1029, %v1031, %v1027
    %v1033 = vmul.f32 1.0, %v1032
    %v1034 = vrcp.pop %v862
    %v1035 = vmul.f32 %v862, %v1034
    %v1036 = vsub.f32 1.0, %v1035
    %v1037 = vmul.f32 %v1034, %v1036
    %v1038 = vadd.f32 %v1034, %v1037
    %vm1039 = vweird.f32 %v862
    %vm1040 = vweird.f32 %v1034
    %vm1041 = vmor %vm1039, %vm1040
    %v1042 = vsel %vm1041, %v1034, %v1038
    %v1043 = vand.u32 2147483647, %v862
    %vm1044 = vcmp.eq.f32.partialorder %v1043, 8.507059e+37
    %v1045 = vand.u32 %v862, 2147483648
    %v1046 = vor.u32 1.1754944e-38, %v1045
    %v1047 = vsel %vm1044, %v1046, %v1042
    %v1048 = vmul.f32 1.0, %v1047
    %v1049 = vrcp.pop %v863
    %v1050 = vmul.f32 %v863, %v1049
    %v1051 = vsub.f32 1.0, %v1050
    %v1052 = vmul.f32 %v1049, %v1051
    %v1053 = vadd.f32 %v1049, %v1052
    %vm1054 = vweird.f32 %v863
    %vm1055 = vweird.f32 %v1049
    %vm1056 = vmor %vm1054, %vm1055
    %v1057 = vsel %vm1056, %v1049, %v1053
    %v1058 = vand.u32 2147483647, %v863
    %vm1059 = vcmp.eq.f32.partialorder %v1058, 8.507059e+37
    %v1060 = vand.u32 %v863, 2147483648
    %v1061 = vor.u32 1.1754944e-38, %v1060
    %v1062 = vsel %vm1059, %v1061, %v1057
    %v1063 = vmul.f32 1.0, %v1062
    %v1064 = vrcp.pop %v864
    %v1065 = vmul.f32 %v864, %v1064
    %v1066 = vsub.f32 1.0, %v1065
    %v1067 = vmul.f32 %v1064, %v1066
    %v1068 = vadd.f32 %v1064, %v1067
    %vm1069 = vweird.f32 %v864
    %vm1070 = vweird.f32 %v1064
    %vm1071 = vmor %vm1069, %vm1070
    %v1072 = vsel %vm1071, %v1064, %v1068
    %v1073 = vand.u32 2147483647, %v864
    %vm1074 = vcmp.eq.f32.partialorder %v1073, 8.507059e+37
    %v1075 = vand.u32 %v864, 2147483648
    %v1076 = vor.u32 1.1754944e-38, %v1075
    %v1077 = vsel %vm1074, %v1076, %v1072
    %v1078 = vmul.f32 1.0, %v1077
    %v1079 = vrcp.pop %v865
    %v1080 = vmul.f32 %v865, %v1079
    %v1081 = vsub.f32 1.0, %v1080
    %v1082 = vmul.f32 %v1079, %v1081
    %v1083 = vadd.f32 %v1079, %v1082
    %vm1084 = vweird.f32 %v865
    %vm1085 = vweird.f32 %v1079
    %vm1086 = vmor %vm1084, %vm1085
    %v1087 = vsel %vm1086, %v1079, %v1083
    %v1088 = vand.u32 2147483647, %v865
    %vm1089 = vcmp.eq.f32.partialorder %v1088, 8.507059e+37
    %v1090 = vand.u32 %v865, 2147483648
    %v1091 = vor.u32 1.1754944e-38, %v1090
    %v1092 = vsel %vm1089, %v1091, %v1087
    %v1093 = vmul.f32 1.0, %v1092
    %v1094 = vrcp.pop %v866
    %v1095 = vmul.f32 %v866, %v1094
    %v1096 = vsub.f32 1.0, %v1095
    %v1097 = vmul.f32 %v1094, %v1096
    %v1098 = vadd.f32 %v1094, %v1097
    %vm1099 = vweird.f32 %v866
    %vm1100 = vweird.f32 %v1094
    %vm1101 = vmor %vm1099, %vm1100
    %v1102 = vsel %vm1101, %v1094, %v1098
    %v1103 = vand.u32 2147483647, %v866
    %vm1104 = vcmp.eq.f32.partialorder %v1103, 8.507059e+37
    %v1105 = vand.u32 %v866, 2147483648
    %v1106 = vor.u32 1.1754944e-38, %v1105
    %v1107 = vsel %vm1104, %v1106, %v1102
    %v1108 = vmul.f32 1.0, %v1107
    %v1109 = vrcp.pop %v867
    %v1110 = vmul.f32 %v867, %v1109
    %v1111 = vsub.f32 1.0, %v1110
    %v1112 = vmul.f32 %v1109, %v1111
    %v1113 = vadd.f32 %v1109, %v1112
    %vm1114 = vweird.f32 %v867
    %vm1115 = vweird.f32 %v1109
    %vm1116 = vmor %vm1114, %vm1115
    %v1117 = vsel %vm1116, %v1109, %v1113
    %v1118 = vand.u32 2147483647, %v867
    %vm1119 = vcmp.eq.f32.partialorder %v1118, 8.507059e+37
    %v1120 = vand.u32 %v867, 2147483648
    %v1121 = vor.u32 1.1754944e-38, %v1120
    %v1122 = vsel %vm1119, %v1121, %v1117
    %v1123 = vmul.f32 1.0, %v1122
    %v1124 = vrcp.pop %v868
    %v1125 = vmul.f32 %v868, %v1124
    %v1126 = vsub.f32 1.0, %v1125
    %v1127 = vmul.f32 %v1124, %v1126
    %v1128 = vadd.f32 %v1124, %v1127
    %vm1129 = vweird.f32 %v868
    %vm1130 = vweird.f32 %v1124
    %vm1131 = vmor %vm1129, %vm1130
    %v1132 = vsel %vm1131, %v1124, %v1128
    %v1133 = vand.u32 2147483647, %v868
    %vm1134 = vcmp.eq.f32.partialorder %v1133, 8.507059e+37
    %v1135 = vand.u32 %v868, 2147483648
    %v1136 = vor.u32 1.1754944e-38, %v1135
    %v1137 = vsel %vm1134, %v1136, %v1132
    %v1138 = vmul.f32 1.0, %v1137
    %v1139 = vrcp.pop %v869
    %v1140 = vmul.f32 %v869, %v1139
    %v1141 = vsub.f32 1.0, %v1140
    %v1142 = vmul.f32 %v1139, %v1141
    %v1143 = vadd.f32 %v1139, %v1142
    %vm1144 = vweird.f32 %v869
    %vm1145 = vweird.f32 %v1139
    %vm1146 = vmor %vm1144, %vm1145
    %v1147 = vsel %vm1146, %v1139, %v1143
    %v1148 = vand.u32 2147483647, %v869
    %vm1149 = vcmp.eq.f32.partialorder %v1148, 8.507059e+37
    %v1150 = vand.u32 %v869, 2147483648
    %v1151 = vor.u32 1.1754944e-38, %v1150
    %v1152 = vsel %vm1149, %v1151, %v1147
    %v1153 = vmul.f32 1.0, %v1152
    %v1154 = vrcp.pop %v870
    %v1155 = vmul.f32 %v870, %v1154
    %v1156 = vsub.f32 1.0, %v1155
    %v1157 = vmul.f32 %v1154, %v1156
    %v1158 = vadd.f32 %v1154, %v1157
    %vm1159 = vweird.f32 %v870
    %vm1160 = vweird.f32 %v1154
    %vm1161 = vmor %vm1159, %vm1160
    %v1162 = vsel %vm1161, %v1154, %v1158
    %v1163 = vand.u32 2147483647, %v870
    %vm1164 = vcmp.eq.f32.partialorder %v1163, 8.507059e+37
    %v1165 = vand.u32 %v870, 2147483648
    %v1166 = vor.u32 1.1754944e-38, %v1165
    %v1167 = vsel %vm1164, %v1166, %v1162
    %v1168 = vmul.f32 1.0, %v1167
    %v1169 = vrcp.pop %v871
    %v1170 = vmul.f32 %v871, %v1169
    %v1171 = vsub.f32 1.0, %v1170
    %v1172 = vmul.f32 %v1169, %v1171
    %v1173 = vadd.f32 %v1169, %v1172
    %vm1174 = vweird.f32 %v871
    %vm1175 = vweird.f32 %v1169
    %vm1176 = vmor %vm1174, %vm1175
    %v1177 = vsel %vm1176, %v1169, %v1173
    %v1178 = vand.u32 2147483647, %v871
    %vm1179 = vcmp.eq.f32.partialorder %v1178, 8.507059e+37
    %v1180 = vand.u32 %v871, 2147483648
    %v1181 = vor.u32 1.1754944e-38, %v1180
    %v1182 = vsel %vm1179, %v1181, %v1177
    %v1183 = vmul.f32 1.0, %v1182
    %v1184 = vrcp.pop %v872
    %v1185 = vmul.f32 %v872, %v1184
    %v1186 = vsub.f32 1.0, %v1185
    %v1187 = vmul.f32 %v1184, %v1186
    %v1188 = vadd.f32 %v1184, %v1187
    %vm1189 = vweird.f32 %v872
    %vm1190 = vweird.f32 %v1184
    %vm1191 = vmor %vm1189, %vm1190
    %v1192 = vsel %vm1191, %v1184, %v1188
    %v1193 = vand.u32 2147483647, %v872
    %vm1194 = vcmp.eq.f32.partialorder %v1193, 8.507059e+37
    %v1195 = vand.u32 %v872, 2147483648
    %v1196 = vor.u32 1.1754944e-38, %v1195
    %v1197 = vsel %vm1194, %v1196, %v1192
    %v1198 = vmul.f32 1.0, %v1197
    %v1199 = vrcp.pop %v873
    %v1200 = vmul.f32 %v873, %v1199
    %v1201 = vsub.f32 1.0, %v1200
    %v1202 = vmul.f32 %v1199, %v1201
    %v1203 = vadd.f32 %v1199, %v1202
    %vm1204 = vweird.f32 %v873
    %vm1205 = vweird.f32 %v1199
    %vm1206 = vmor %vm1204, %vm1205
    %v1207 = vsel %vm1206, %v1199, %v1203
    %v1208 = vand.u32 2147483647, %v873
    %vm1209 = vcmp.eq.f32.partialorder %v1208, 8.507059e+37
    %v1210 = vand.u32 %v873, 2147483648
    %v1211 = vor.u32 1.1754944e-38, %v1210
    %v1212 = vsel %vm1209, %v1211, %v1207
    %v1213 = vmul.f32 1.0, %v1212
    %v1214 = vrcp.pop %v874
    %v1215 = vmul.f32 %v874, %v1214
    %v1216 = vsub.f32 1.0, %v1215
    %v1217 = vmul.f32 %v1214, %v1216
    %v1218 = vadd.f32 %v1214, %v1217
    %vm1219 = vweird.f32 %v874
    %vm1220 = vweird.f32 %v1214
    %vm1221 = vmor %vm1219, %vm1220
    %v1222 = vsel %vm1221, %v1214, %v1218
    %v1223 = vand.u32 2147483647, %v874
    %vm1224 = vcmp.eq.f32.partialorder %v1223, 8.507059e+37
    %v1225 = vand.u32 %v874, 2147483648
    %v1226 = vor.u32 1.1754944e-38, %v1225
    %v1227 = vsel %vm1224, %v1226, %v1222
    %v1228 = vmul.f32 1.0, %v1227
    %v1229 = vrcp.pop %v875
    %v1230 = vmul.f32 %v875, %v1229
    %v1231 = vsub.f32 1.0, %v1230
    %v1232 = vmul.f32 %v1229, %v1231
    %v1233 = vadd.f32 %v1229, %v1232
    %vm1234 = vweird.f32 %v875
    %vm1235 = vweird.f32 %v1229
    %vm1236 = vmor %vm1234, %vm1235
    %v1237 = vsel %vm1236, %v1229, %v1233
    %v1238 = vand.u32 2147483647, %v875
    %vm1239 = vcmp.eq.f32.partialorder %v1238, 8.507059e+37
    %v1240 = vand.u32 %v875, 2147483648
    %v1241 = vor.u32 1.1754944e-38, %v1240
    %v1242 = vsel %vm1239, %v1241, %v1237
    %v1243 = vmul.f32 1.0, %v1242
    %v1244 = vrcp.pop %v876
    %v1245 = vmul.f32 %v876, %v1244
    %v1246 = vsub.f32 1.0, %v1245
    %v1247 = vmul.f32 %v1244, %v1246
    %v1248 = vadd.f32 %v1244, %v1247
    %vm1249 = vweird.f32 %v876
    %vm1250 = vweird.f32 %v1244
    %vm1251 = vmor %vm1249, %vm1250
    %v1252 = vsel %vm1251, %v1244, %v1248
    %v1253 = vand.u32 2147483647, %v876
    %vm1254 = vcmp.eq.f32.partialorder %v1253, 8.507059e+37
    %v1255 = vand.u32 %v876, 2147483648
    %v1256 = vor.u32 1.1754944e-38, %v1255
    %v1257 = vsel %vm1254, %v1256, %v1252
    %v1258 = vmul.f32 1.0, %v1257
    %v1259 = vrcp.pop %v877
    %v1260 = vmul.f32 %v877, %v1259
    %v1261 = vsub.f32 1.0, %v1260
    %v1262 = vmul.f32 %v1259, %v1261
    %v1263 = vadd.f32 %v1259, %v1262
    %vm1264 = vweird.f32 %v877
    %vm1265 = vweird.f32 %v1259
    %vm1266 = vmor %vm1264, %vm1265
    %v1267 = vsel %vm1266, %v1259, %v1263
    %v1268 = vand.u32 2147483647, %v877
    %vm1269 = vcmp.eq.f32.partialorder %v1268, 8.507059e+37
    %v1270 = vand.u32 %v877, 2147483648
    %v1271 = vor.u32 1.1754944e-38, %v1270
    %v1272 = vsel %vm1269, %v1271, %v1267
    %v1273 = vmul.f32 1.0, %v1272
    %v1274 = vrcp.pop %v878
    %v1275 = vmul.f32 %v878, %v1274
    %v1276 = vsub.f32 1.0, %v1275
    %v1277 = vmul.f32 %v1274, %v1276
    %v1278 = vadd.f32 %v1274, %v1277
    %vm1279 = vweird.f32 %v878
    %vm1280 = vweird.f32 %v1274
    %vm1281 = vmor %vm1279, %vm1280
    %v1282 = vsel %vm1281, %v1274, %v1278
    %v1283 = vand.u32 2147483647, %v878
    %vm1284 = vcmp.eq.f32.partialorder %v1283, 8.507059e+37
    %v1285 = vand.u32 %v878, 2147483648
    %v1286 = vor.u32 1.1754944e-38, %v1285
    %v1287 = vsel %vm1284, %v1286, %v1282
    %v1288 = vmul.f32 1.0, %v1287
    %v1289 = vrcp.pop %v879
    %v1290 = vmul.f32 %v879, %v1289
    %v1291 = vsub.f32 1.0, %v1290
    %v1292 = vmul.f32 %v1289, %v1291
    %v1293 = vadd.f32 %v1289, %v1292
    %vm1294 = vweird.f32 %v879
    %vm1295 = vweird.f32 %v1289
    %vm1296 = vmor %vm1294, %vm1295
    %v1297 = vsel %vm1296, %v1289, %v1293
    %v1298 = vand.u32 2147483647, %v879
    %vm1299 = vcmp.eq.f32.partialorder %v1298, 8.507059e+37
    %v1300 = vand.u32 %v879, 2147483648
    %v1301 = vor.u32 1.1754944e-38, %v1300
    %v1302 = vsel %vm1299, %v1301, %v1297
    %v1303 = vmul.f32 1.0, %v1302
    %v1304 = vrcp.pop %v880
    %v1305 = vmul.f32 %v880, %v1304
    %v1306 = vsub.f32 1.0, %v1305
    %v1307 = vmul.f32 %v1304, %v1306
    %v1308 = vadd.f32 %v1304, %v1307
    %vm1309 = vweird.f32 %v880
    %vm1310 = vweird.f32 %v1304
    %vm1311 = vmor %vm1309, %vm1310
    %v1312 = vsel %vm1311, %v1304, %v1308
    %v1313 = vand.u32 2147483647, %v880
    %vm1314 = vcmp.eq.f32.partialorder %v1313, 8.507059e+37
    %v1315 = vand.u32 %v880, 2147483648
    %v1316 = vor.u32 1.1754944e-38, %v1315
    %v1317 = vsel %vm1314, %v1316, %v1312
    %v1318 = vmul.f32 1.0, %v1317
    %v1319 = vrcp.pop %v881
    %v1320 = vmul.f32 %v881, %v1319
    %v1321 = vsub.f32 1.0, %v1320
    %v1322 = vmul.f32 %v1319, %v1321
    %v1323 = vadd.f32 %v1319, %v1322
    %vm1324 = vweird.f32 %v881
    %vm1325 = vweird.f32 %v1319
    %vm1326 = vmor %vm1324, %vm1325
    %v1327 = vsel %vm1326, %v1319, %v1323
    %v1328 = vand.u32 2147483647, %v881
    %vm1329 = vcmp.eq.f32.partialorder %v1328, 8.507059e+37
    %v1330 = vand.u32 %v881, 2147483648
    %v1331 = vor.u32 1.1754944e-38, %v1330
    %v1332 = vsel %vm1329, %v1331, %v1327
    %v1333 = vmul.f32 1.0, %v1332
    %v1334 = vrcp.pop %v882
    %v1335 = vmul.f32 %v882, %v1334
    %v1336 = vsub.f32 1.0, %v1335
    %v1337 = vmul.f32 %v1334, %v1336
    %v1338 = vadd.f32 %v1334, %v1337
    %vm1339 = vweird.f32 %v882
    %vm1340 = vweird.f32 %v1334
    %vm1341 = vmor %vm1339, %vm1340
    %v1342 = vsel %vm1341, %v1334, %v1338
    %v1343 = vand.u32 2147483647, %v882
    %vm1344 = vcmp.eq.f32.partialorder %v1343, 8.507059e+37
    %v1345 = vand.u32 %v882, 2147483648
    %v1346 = vor.u32 1.1754944e-38, %v1345
    %v1347 = vsel %vm1344, %v1346, %v1342
    %v1348 = vmul.f32 1.0, %v1347
    %v1349 = vrcp.pop %v883
    %v1350 = vmul.f32 %v883, %v1349
    %v1351 = vsub.f32 1.0, %v1350
    %v1352 = vmul.f32 %v1349, %v1351
    %v1353 = vadd.f32 %v1349, %v1352
    %vm1354 = vweird.f32 %v883
    %vm1355 = vweird.f32 %v1349
    %vm1356 = vmor %vm1354, %vm1355
    %v1357 = vsel %vm1356, %v1349, %v1353
    %v1358 = vand.u32 2147483647, %v883
    %vm1359 = vcmp.eq.f32.partialorder %v1358, 8.507059e+37
    %v1360 = vand.u32 %v883, 2147483648
    %v1361 = vor.u32 1.1754944e-38, %v1360
    %v1362 = vsel %vm1359, %v1361, %v1357
    %v1363 = vmul.f32 1.0, %v1362
    %v1364 = vmul.f32 %v692, %v898
    %v1365 = vmul.f32 %v693, %v913
    %v1366 = vmul.f32 %v694, %v928
    %v1367 = vmul.f32 %v695, %v943
    %v1368 = vmul.f32 %v696, %v958
    %v1369 = vmul.f32 %v697, %v973
    %v1370 = vmul.f32 %v698, %v988
    %v1371 = vmul.f32 %v699, %v1003
    %v1372 = vmul.f32 %v700, %v1018
    %v1373 = vmul.f32 %v701, %v1033
    %v1374 = vmul.f32 %v702, %v1048
    %v1375 = vmul.f32 %v703, %v1063
    %v1376 = vmul.f32 %v704, %v1078
    %v1377 = vmul.f32 %v705, %v1093
    %v1378 = vmul.f32 %v706, %v1108
    %v1379 = vmul.f32 %v707, %v1123
    %v1380 = vmul.f32 %v708, %v1138
    %v1381 = vmul.f32 %v709, %v1153
    %v1382 = vmul.f32 %v710, %v1168
    %v1383 = vmul.f32 %v711, %v1183
    %v1384 = vmul.f32 %v712, %v1198
    %v1385 = vmul.f32 %v713, %v1213
    %v1386 = vmul.f32 %v714, %v1228
    %v1387 = vmul.f32 %v715, %v1243
    %v1388 = vmul.f32 %v716, %v1258
    %v1389 = vmul.f32 %v717, %v1273
    %v1390 = vmul.f32 %v718, %v1288
    %v1391 = vmul.f32 %v719, %v1303
    %v1392 = vmul.f32 %v720, %v1318
    %v1393 = vmul.f32 %v721, %v1333
    %v1394 = vmul.f32 %v722, %v1348
    %v1395 = vmul.f32 %v723, %v1363
    %v1396 = vld [vmem:[#allocation7] sm:$0xf]
    %v1397 = vld [vmem:[#allocation7 + $0x4] sm:$0xf]
    %v1398 = vld [vmem:[#allocation7 + $0x8] sm:$0xf]
    %v1399 = vld [vmem:[#allocation7 + $0xc] sm:$0xf]
    %v1400 = vpack.c.bf16 %v1365, %v1364
    %v1401 = vpack.c.bf16 %v1367, %v1366
    %v1402 = vpack.c.bf16 %v1369, %v1368
    %v1403 = vpack.c.bf16 %v1371, %v1370
    %v1404 = vpack.c.bf16 %v1373, %v1372
    %v1405 = vpack.c.bf16 %v1375, %v1374
    %v1406 = vpack.c.bf16 %v1377, %v1376
    %v1407 = vpack.c.bf16 %v1379, %v1378
    %v1408 = vpack.c.bf16 %v1381, %v1380
    %v1409 = vpack.c.bf16 %v1383, %v1382
    %v1410 = vpack.c.bf16 %v1385, %v1384
    %v1411 = vpack.c.bf16 %v1387, %v1386
    %v1412 = vpack.c.bf16 %v1389, %v1388
    %v1413 = vpack.c.bf16 %v1391, %v1390
    %v1414 = vpack.c.bf16 %v1393, %v1392
    %v1415 = vpack.c.bf16 %v1395, %v1394
    %v1420 = vunpack.c.l.b16 %v1396
    %v1421 = vunpack.c.l.b16 %v1397
    %v1422 = vunpack.c.l.b16 %v1398
    %v1423 = vunpack.c.l.b16 %v1399
    %v1424 = vpack.c.b16 %v1421, %v1420
    %v1425 = vpack.c.b16 %v1423, %v1422
    %v1429 = vsel %vm204, %v1400, 0
    %v1432 = vsel %vm204, %v1401, 0
    %v1435 = vsel %vm204, %v1402, 0
    %v1438 = vsel %vm204, %v1403, 0
    %v1441 = vsel %vm204, %v1404, 0
    %v1444 = vsel %vm204, %v1405, 0
    %v1447 = vsel %vm204, %v1406, 0
    %v1450 = vsel %vm204, %v1407, 0
    %v1453 = vsel %vm204, %v1408, 0
    %v1456 = vsel %vm204, %v1409, 0
    %v1459 = vsel %vm204, %v1410, 0
    %v1462 = vsel %vm204, %v1411, 0
    %v1465 = vsel %vm204, %v1412, 0
    %v1468 = vsel %vm204, %v1413, 0
    %v1471 = vsel %vm204, %v1414, 0
    %v1474 = vsel %vm204, %v1415, 0
    %1476 = vmatpush.bf16.msra.mxu0 0
    %1477 = vmatpush.bf16.msra.mxu0 0
    %1478 = vmatpush.bf16.msra.mxu0 0
    %1479 = vmatpush.bf16.msra.mxu0 0
    %1480 = vmatpush.bf16.msra.mxu0 0
    %1481 = vmatpush.bf16.msra.mxu0 0
    %1482 = vmatpush.bf16.msra.mxu0 %v1425
    %1483 = vmatpush.bf16.msra.mxu0 %v1424
    %1484 = vmatmul.bf16.gmra.mxu0 %v1429
    %v1485 = vpop.f32.mrf.mxu0
    %v1486 = vadd.f32 0.0, %v1485
    %v1487 = vpop.f32.mrf.mxu0
    %v1488 = vadd.f32 0.0, %v1487
    %1489 = vmatmul.bf16.gmra.mxu0 %v1432
    %v1490 = vpop.f32.mrf.mxu0
    %v1491 = vadd.f32 0.0, %v1490
    %v1492 = vpop.f32.mrf.mxu0
    %v1493 = vadd.f32 0.0, %v1492
    %1494 = vmatmul.bf16.gmra.mxu0 %v1435
    %v1495 = vpop.f32.mrf.mxu0
    %v1496 = vadd.f32 0.0, %v1495
    %v1497 = vpop.f32.mrf.mxu0
    %v1498 = vadd.f32 0.0, %v1497
    %1499 = vmatmul.bf16.gmra.mxu0 %v1438
    %v1500 = vpop.f32.mrf.mxu0
    %v1501 = vadd.f32 0.0, %v1500
    %v1502 = vpop.f32.mrf.mxu0
    %v1503 = vadd.f32 0.0, %v1502
    %1504 = vmatmul.bf16.gmra.mxu0 %v1441
    %v1505 = vpop.f32.mrf.mxu0
    %v1506 = vadd.f32 0.0, %v1505
    %v1507 = vpop.f32.mrf.mxu0
    %v1508 = vadd.f32 0.0, %v1507
    %1509 = vmatmul.bf16.gmra.mxu0 %v1444
    %v1510 = vpop.f32.mrf.mxu0
    %v1511 = vadd.f32 0.0, %v1510
    %v1512 = vpop.f32.mrf.mxu0
    %v1513 = vadd.f32 0.0, %v1512
    %1514 = vmatmul.bf16.gmra.mxu0 %v1447
    %v1515 = vpop.f32.mrf.mxu0
    %v1516 = vadd.f32 0.0, %v1515
    %v1517 = vpop.f32.mrf.mxu0
    %v1518 = vadd.f32 0.0, %v1517
    %1519 = vmatmul.bf16.gmra.mxu0 %v1450
    %v1520 = vpop.f32.mrf.mxu0
    %v1521 = vadd.f32 0.0, %v1520
    %v1522 = vpop.f32.mrf.mxu0
    %v1523 = vadd.f32 0.0, %v1522
    %1524 = vmatmul.bf16.gmra.mxu0 %v1453
    %v1525 = vpop.f32.mrf.mxu0
    %v1526 = vadd.f32 0.0, %v1525
    %v1527 = vpop.f32.mrf.mxu0
    %v1528 = vadd.f32 0.0, %v1527
    %1529 = vmatmul.bf16.gmra.mxu0 %v1456
    %v1530 = vpop.f32.mrf.mxu0
    %v1531 = vadd.f32 0.0, %v1530
    %v1532 = vpop.f32.mrf.mxu0
    %v1533 = vadd.f32 0.0, %v1532
    %1534 = vmatmul.bf16.gmra.mxu0 %v1459
    %v1535 = vpop.f32.mrf.mxu0
    %v1536 = vadd.f32 0.0, %v1535
    %v1537 = vpop.f32.mrf.mxu0
    %v1538 = vadd.f32 0.0, %v1537
    %1539 = vmatmul.bf16.gmra.mxu0 %v1462
    %v1540 = vpop.f32.mrf.mxu0
    %v1541 = vadd.f32 0.0, %v1540
    %v1542 = vpop.f32.mrf.mxu0
    %v1543 = vadd.f32 0.0, %v1542
    %1544 = vmatmul.bf16.gmra.mxu0 %v1465
    %v1545 = vpop.f32.mrf.mxu0
    %v1546 = vadd.f32 0.0, %v1545
    %v1547 = vpop.f32.mrf.mxu0
    %v1548 = vadd.f32 0.0, %v1547
    %1549 = vmatmul.bf16.gmra.mxu0 %v1468
    %v1550 = vpop.f32.mrf.mxu0
    %v1551 = vadd.f32 0.0, %v1550
    %v1552 = vpop.f32.mrf.mxu0
    %v1553 = vadd.f32 0.0, %v1552
    %1554 = vmatmul.bf16.gmra.mxu0 %v1471
    %v1555 = vpop.f32.mrf.mxu0
    %v1556 = vadd.f32 0.0, %v1555
    %v1557 = vpop.f32.mrf.mxu0
    %v1558 = vadd.f32 0.0, %v1557
    %1559 = vmatmul.bf16.gmra.mxu0 %v1474
    %v1560 = vpop.f32.mrf.mxu0
    %v1561 = vadd.f32 0.0, %v1560
    %v1562 = vpop.f32.mrf.mxu0
    %v1563 = vadd.f32 0.0, %v1562
    %1564 = vdwg.mxu0
    %v1567 = vrot.slane %v1486, 3
    %v1568 = vrot.slane %v1526, 3
    %1569 = vrot.lane.b32.xlu0 %v1567, 96
    %v1570 = vpop.permute.xlu0 %1569
    %1571 = vrot.lane.b32.xlu0 %v1568, 96
    %v1572 = vpop.permute.xlu0 %1571
    %v1575 = vadd.f32 %v1486, %v1570
    %v1576 = vadd.f32 %v1526, %v1572
    %vm1607 = vcmask 1042432
    %v1608 = vrot.slane %v1486, 5
    %v1609 = vrot.slane %v1488, 5
    %v1610 = vsel %vm1607, %v1608, %v1609
    %v1611 = vrot.slane %v1491, 5
    %v1612 = vsel %vm1607, %v1609, %v1611
    %v1613 = vrot.slane %v1493, 5
    %v1614 = vsel %vm1607, %v1611, %v1613
    %v1615 = vrot.slane %v1496, 5
    %v1616 = vsel %vm1607, %v1613, %v1615
    %v1617 = vrot.slane %v1498, 5
    %v1618 = vsel %vm1607, %v1615, %v1617
    %v1619 = vrot.slane %v1501, 5
    %v1620 = vsel %vm1607, %v1617, %v1619
    %v1621 = vrot.slane %v1503, 5
    %v1622 = vsel %vm1607, %v1619, %v1621
    %v1623 = vrot.slane %v1506, 5
    %v1624 = vsel %vm1607, %v1621, %v1623
    %v1625 = vrot.slane %v1508, 5
    %v1626 = vsel %vm1607, %v1623, %v1625
    %v1627 = vrot.slane %v1511, 5
    %v1628 = vsel %vm1607, %v1625, %v1627
    %v1629 = vrot.slane %v1513, 5
    %v1630 = vsel %vm1607, %v1627, %v1629
    %v1631 = vrot.slane %v1516, 5
    %v1632 = vsel %vm1607, %v1629, %v1631
    %v1633 = vrot.slane %v1518, 5
    %v1634 = vsel %vm1607, %v1631, %v1633
    %v1635 = vrot.slane %v1521, 5
    %v1636 = vsel %vm1607, %v1633, %v1635
    %v1637 = vrot.slane %v1523, 5
    %v1638 = vsel %vm1607, %v1635, %v1637
    %v1639 = vrot.slane %v1526, 5
    %v1640 = vrot.slane %v1528, 5
    %v1641 = vsel %vm1607, %v1639, %v1640
    %v1642 = vrot.slane %v1531, 5
    %v1643 = vsel %vm1607, %v1640, %v1642
    %v1644 = vrot.slane %v1533, 5
    %v1645 = vsel %vm1607, %v1642, %v1644
    %v1646 = vrot.slane %v1536, 5
    %v1647 = vsel %vm1607, %v1644, %v1646
    %v1648 = vrot.slane %v1538, 5
    %v1649 = vsel %vm1607, %v1646, %v1648
    %v1650 = vrot.slane %v1541, 5
    %v1651 = vsel %vm1607, %v1648, %v1650
    %v1652 = vrot.slane %v1543, 5
    %v1653 = vsel %vm1607, %v1650, %v1652
    %v1654 = vrot.slane %v1546, 5
    %v1655 = vsel %vm1607, %v1652, %v1654
    %v1656 = vrot.slane %v1548, 5
    %v1657 = vsel %vm1607, %v1654, %v1656
    %v1658 = vrot.slane %v1551, 5
    %v1659 = vsel %vm1607, %v1656, %v1658
    %v1660 = vrot.slane %v1553, 5
    %v1661 = vsel %vm1607, %v1658, %v1660
    %v1662 = vrot.slane %v1556, 5
    %v1663 = vsel %vm1607, %v1660, %v1662
    %v1664 = vrot.slane %v1558, 5
    %v1665 = vsel %vm1607, %v1662, %v1664
    %v1666 = vrot.slane %v1561, 5
    %v1667 = vsel %vm1607, %v1664, %v1666
    %v1668 = vrot.slane %v1563, 5
    %v1669 = vsel %vm1607, %v1666, %v1668
    %1670 = vrot.lane.b32.xlu0 %v1608, 32
    %v1671 = vpop.permute.xlu0 %1670
    %1672 = vrot.lane.b32.xlu0 %v1610, 32
    %v1673 = vpop.permute.xlu0 %1672
    %1674 = vrot.lane.b32.xlu0 %v1612, 32
    %v1675 = vpop.permute.xlu0 %1674
    %1676 = vrot.lane.b32.xlu0 %v1614, 32
    %v1677 = vpop.permute.xlu0 %1676
    %1678 = vrot.lane.b32.xlu0 %v1616, 32
    %v1679 = vpop.permute.xlu0 %1678
    %1680 = vrot.lane.b32.xlu0 %v1618, 32
    %v1681 = vpop.permute.xlu0 %1680
    %1682 = vrot.lane.b32.xlu0 %v1620, 32
    %v1683 = vpop.permute.xlu0 %1682
    %1684 = vrot.lane.b32.xlu0 %v1622, 32
    %v1685 = vpop.permute.xlu0 %1684
    %1686 = vrot.lane.b32.xlu0 %v1624, 32
    %v1687 = vpop.permute.xlu0 %1686
    %1688 = vrot.lane.b32.xlu0 %v1626, 32
    %v1689 = vpop.permute.xlu0 %1688
    %1690 = vrot.lane.b32.xlu0 %v1628, 32
    %v1691 = vpop.permute.xlu0 %1690
    %1692 = vrot.lane.b32.xlu0 %v1630, 32
    %v1693 = vpop.permute.xlu0 %1692
    %1694 = vrot.lane.b32.xlu0 %v1632, 32
    %v1695 = vpop.permute.xlu0 %1694
    %1696 = vrot.lane.b32.xlu0 %v1634, 32
    %v1697 = vpop.permute.xlu0 %1696
    %1698 = vrot.lane.b32.xlu0 %v1636, 32
    %v1699 = vpop.permute.xlu0 %1698
    %1700 = vrot.lane.b32.xlu0 %v1638, 32
    %v1701 = vpop.permute.xlu0 %1700
    %1702 = vrot.lane.b32.xlu0 %v1639, 32
    %v1703 = vpop.permute.xlu0 %1702
    %1704 = vrot.lane.b32.xlu0 %v1641, 32
    %v1705 = vpop.permute.xlu0 %1704
    %1706 = vrot.lane.b32.xlu0 %v1643, 32
    %v1707 = vpop.permute.xlu0 %1706
    %1708 = vrot.lane.b32.xlu0 %v1645, 32
    %v1709 = vpop.permute.xlu0 %1708
    %1710 = vrot.lane.b32.xlu0 %v1647, 32
    %v1711 = vpop.permute.xlu0 %1710
    %1712 = vrot.lane.b32.xlu0 %v1649, 32
    %v1713 = vpop.permute.xlu0 %1712
    %1714 = vrot.lane.b32.xlu0 %v1651, 32
    %v1715 = vpop.permute.xlu0 %1714
    %1716 = vrot.lane.b32.xlu0 %v1653, 32
    %v1717 = vpop.permute.xlu0 %1716
    %1718 = vrot.lane.b32.xlu0 %v1655, 32
    %v1719 = vpop.permute.xlu0 %1718
    %1720 = vrot.lane.b32.xlu0 %v1657, 32
    %v1721 = vpop.permute.xlu0 %1720
    %1722 = vrot.lane.b32.xlu0 %v1659, 32
    %v1723 = vpop.permute.xlu0 %1722
    %1724 = vrot.lane.b32.xlu0 %v1661, 32
    %v1725 = vpop.permute.xlu0 %1724
    %1726 = vrot.lane.b32.xlu0 %v1663, 32
    %v1727 = vpop.permute.xlu0 %1726
    %1728 = vrot.lane.b32.xlu0 %v1665, 32
    %v1729 = vpop.permute.xlu0 %1728
    %1730 = vrot.lane.b32.xlu0 %v1667, 32
    %v1731 = vpop.permute.xlu0 %1730
    %1732 = vrot.lane.b32.xlu0 %v1669, 32
    %v1733 = vpop.permute.xlu0 %1732
    %v1766 = vadd.f32 %v1486, %v1671
    %v1767 = vadd.f32 %v1488, %v1673
    %v1768 = vadd.f32 %v1491, %v1675
    %v1769 = vadd.f32 %v1493, %v1677
    %v1770 = vadd.f32 %v1496, %v1679
    %v1771 = vadd.f32 %v1498, %v1681
    %v1772 = vadd.f32 %v1501, %v1683
    %v1773 = vadd.f32 %v1503, %v1685
    %v1774 = vadd.f32 %v1506, %v1687
    %v1775 = vadd.f32 %v1508, %v1689
    %v1776 = vadd.f32 %v1511, %v1691
    %v1777 = vadd.f32 %v1513, %v1693
    %v1778 = vadd.f32 %v1516, %v1695
    %v1779 = vadd.f32 %v1518, %v1697
    %v1780 = vadd.f32 %v1521, %v1699
    %v1781 = vadd.f32 %v1523, %v1701
    %v1782 = vadd.f32 %v1526, %v1703
    %v1783 = vadd.f32 %v1528, %v1705
    %v1784 = vadd.f32 %v1531, %v1707
    %v1785 = vadd.f32 %v1533, %v1709
    %v1786 = vadd.f32 %v1536, %v1711
    %v1787 = vadd.f32 %v1538, %v1713
    %v1788 = vadd.f32 %v1541, %v1715
    %v1789 = vadd.f32 %v1543, %v1717
    %v1790 = vadd.f32 %v1546, %v1719
    %v1791 = vadd.f32 %v1548, %v1721
    %v1792 = vadd.f32 %v1551, %v1723
    %v1793 = vadd.f32 %v1553, %v1725
    %v1794 = vadd.f32 %v1556, %v1727
    %v1795 = vadd.f32 %v1558, %v1729
    %v1796 = vadd.f32 %v1561, %v1731
    %v1797 = vadd.f32 %v1563, %v1733
    %vm1798 = vcmask 1044480
    %v1799 = vrot.slane %v1488, 3
    %v1800 = vsel %vm1798, %v1567, %v1799
    %v1801 = vrot.slane %v1491, 3
    %v1802 = vsel %vm1798, %v1799, %v1801
    %v1803 = vrot.slane %v1493, 3
    %v1804 = vsel %vm1798, %v1801, %v1803
    %v1805 = vrot.slane %v1496, 3
    %v1806 = vsel %vm1798, %v1803, %v1805
    %v1807 = vrot.slane %v1498, 3
    %v1808 = vsel %vm1798, %v1805, %v1807
    %v1809 = vrot.slane %v1501, 3
    %v1810 = vsel %vm1798, %v1807, %v1809
    %v1811 = vrot.slane %v1503, 3
    %v1812 = vsel %vm1798, %v1809, %v1811
    %v1813 = vrot.slane %v1506, 3
    %v1814 = vsel %vm1798, %v1811, %v1813
    %v1815 = vrot.slane %v1508, 3
    %v1816 = vsel %vm1798, %v1813, %v1815
    %v1817 = vrot.slane %v1511, 3
    %v1818 = vsel %vm1798, %v1815, %v1817
    %v1819 = vrot.slane %v1513, 3
    %v1820 = vsel %vm1798, %v1817, %v1819
    %v1821 = vrot.slane %v1516, 3
    %v1822 = vsel %vm1798, %v1819, %v1821
    %v1823 = vrot.slane %v1518, 3
    %v1824 = vsel %vm1798, %v1821, %v1823
    %v1825 = vrot.slane %v1521, 3
    %v1826 = vsel %vm1798, %v1823, %v1825
    %v1827 = vrot.slane %v1523, 3
    %v1828 = vsel %vm1798, %v1825, %v1827
    %v1829 = vrot.slane %v1528, 3
    %v1830 = vsel %vm1798, %v1568, %v1829
    %v1831 = vrot.slane %v1531, 3
    %v1832 = vsel %vm1798, %v1829, %v1831
    %v1833 = vrot.slane %v1533, 3
    %v1834 = vsel %vm1798, %v1831, %v1833
    %v1835 = vrot.slane %v1536, 3
    %v1836 = vsel %vm1798, %v1833, %v1835
    %v1837 = vrot.slane %v1538, 3
    %v1838 = vsel %vm1798, %v1835, %v1837
    %v1839 = vrot.slane %v1541, 3
    %v1840 = vsel %vm1798, %v1837, %v1839
    %v1841 = vrot.slane %v1543, 3
    %v1842 = vsel %vm1798, %v1839, %v1841
    %v1843 = vrot.slane %v1546, 3
    %v1844 = vsel %vm1798, %v1841, %v1843
    %v1845 = vrot.slane %v1548, 3
    %v1846 = vsel %vm1798, %v1843, %v1845
    %v1847 = vrot.slane %v1551, 3
    %v1848 = vsel %vm1798, %v1845, %v1847
    %v1849 = vrot.slane %v1553, 3
    %v1850 = vsel %vm1798, %v1847, %v1849
    %v1851 = vrot.slane %v1556, 3
    %v1852 = vsel %vm1798, %v1849, %v1851
    %v1853 = vrot.slane %v1558, 3
    %v1854 = vsel %vm1798, %v1851, %v1853
    %v1855 = vrot.slane %v1561, 3
    %v1856 = vsel %vm1798, %v1853, %v1855
    %v1857 = vrot.slane %v1563, 3
    %v1858 = vsel %vm1798, %v1855, %v1857
    %1859 = vrot.lane.b32.xlu0 %v1800, 96
    %v1860 = vpop.permute.xlu0 %1859
    %1861 = vrot.lane.b32.xlu0 %v1802, 96
    %v1862 = vpop.permute.xlu0 %1861
    %1863 = vrot.lane.b32.xlu0 %v1804, 96
    %v1864 = vpop.permute.xlu0 %1863
    %1865 = vrot.lane.b32.xlu0 %v1806, 96
    %v1866 = vpop.permute.xlu0 %1865
    %1867 = vrot.lane.b32.xlu0 %v1808, 96
    %v1868 = vpop.permute.xlu0 %1867
    %1869 = vrot.lane.b32.xlu0 %v1810, 96
    %v1870 = vpop.permute.xlu0 %1869
    %1871 = vrot.lane.b32.xlu0 %v1812, 96
    %v1872 = vpop.permute.xlu0 %1871
    %1873 = vrot.lane.b32.xlu0 %v1814, 96
    %v1874 = vpop.permute.xlu0 %1873
    %1875 = vrot.lane.b32.xlu0 %v1816, 96
    %v1876 = vpop.permute.xlu0 %1875
    %1877 = vrot.lane.b32.xlu0 %v1818, 96
    %v1878 = vpop.permute.xlu0 %1877
    %1879 = vrot.lane.b32.xlu0 %v1820, 96
    %v1880 = vpop.permute.xlu0 %1879
    %1881 = vrot.lane.b32.xlu0 %v1822, 96
    %v1882 = vpop.permute.xlu0 %1881
    %1883 = vrot.lane.b32.xlu0 %v1824, 96
    %v1884 = vpop.permute.xlu0 %1883
    %1885 = vrot.lane.b32.xlu0 %v1826, 96
    %v1886 = vpop.permute.xlu0 %1885
    %1887 = vrot.lane.b32.xlu0 %v1828, 96
    %v1888 = vpop.permute.xlu0 %1887
    %1889 = vrot.lane.b32.xlu0 %v1827, 96
    %v1890 = vpop.permute.xlu0 %1889
    %1891 = vrot.lane.b32.xlu0 %v1830, 96
    %v1892 = vpop.permute.xlu0 %1891
    %1893 = vrot.lane.b32.xlu0 %v1832, 96
    %v1894 = vpop.permute.xlu0 %1893
    %1895 = vrot.lane.b32.xlu0 %v1834, 96
    %v1896 = vpop.permute.xlu0 %1895
    %1897 = vrot.lane.b32.xlu0 %v1836, 96
    %v1898 = vpop.permute.xlu0 %1897
    %1899 = vrot.lane.b32.xlu0 %v1838, 96
    %v1900 = vpop.permute.xlu0 %1899
    %1901 = vrot.lane.b32.xlu0 %v1840, 96
    %v1902 = vpop.permute.xlu0 %1901
    %1903 = vrot.lane.b32.xlu0 %v1842, 96
    %v1904 = vpop.permute.xlu0 %1903
    %1905 = vrot.lane.b32.xlu0 %v1844, 96
    %v1906 = vpop.permute.xlu0 %1905
    %1907 = vrot.lane.b32.xlu0 %v1846, 96
    %v1908 = vpop.permute.xlu0 %1907
    %1909 = vrot.lane.b32.xlu0 %v1848, 96
    %v1910 = vpop.permute.xlu0 %1909
    %1911 = vrot.lane.b32.xlu0 %v1850, 96
    %v1912 = vpop.permute.xlu0 %1911
    %1913 = vrot.lane.b32.xlu0 %v1852, 96
    %v1914 = vpop.permute.xlu0 %1913
    %1915 = vrot.lane.b32.xlu0 %v1854, 96
    %v1916 = vpop.permute.xlu0 %1915
    %1917 = vrot.lane.b32.xlu0 %v1856, 96
    %v1918 = vpop.permute.xlu0 %1917
    %1919 = vrot.lane.b32.xlu0 %v1858, 96
    %v1920 = vpop.permute.xlu0 %1919
    %1921 = vrot.lane.b32.xlu0 %v1857, 96
    %v1922 = vpop.permute.xlu0 %1921
    %v1955 = vadd.f32 %v1766, %v1860
    %v1956 = vadd.f32 %v1767, %v1862
    %v1957 = vadd.f32 %v1768, %v1864
    %v1958 = vadd.f32 %v1769, %v1866
    %v1959 = vadd.f32 %v1770, %v1868
    %v1960 = vadd.f32 %v1771, %v1870
    %v1961 = vadd.f32 %v1772, %v1872
    %v1962 = vadd.f32 %v1773, %v1874
    %v1963 = vadd.f32 %v1774, %v1876
    %v1964 = vadd.f32 %v1775, %v1878
    %v1965 = vadd.f32 %v1776, %v1880
    %v1966 = vadd.f32 %v1777, %v1882
    %v1967 = vadd.f32 %v1778, %v1884
    %v1968 = vadd.f32 %v1779, %v1886
    %v1969 = vadd.f32 %v1780, %v1888
    %v1970 = vadd.f32 %v1781, %v1890
    %v1971 = vadd.f32 %v1782, %v1892
    %v1972 = vadd.f32 %v1783, %v1894
    %v1973 = vadd.f32 %v1784, %v1896
    %v1974 = vadd.f32 %v1785, %v1898
    %v1975 = vadd.f32 %v1786, %v1900
    %v1976 = vadd.f32 %v1787, %v1902
    %v1977 = vadd.f32 %v1788, %v1904
    %v1978 = vadd.f32 %v1789, %v1906
    %v1979 = vadd.f32 %v1790, %v1908
    %v1980 = vadd.f32 %v1791, %v1910
    %v1981 = vadd.f32 %v1792, %v1912
    %v1982 = vadd.f32 %v1793, %v1914
    %v1983 = vadd.f32 %v1794, %v1916
    %v1984 = vadd.f32 %v1795, %v1918
    %v1985 = vadd.f32 %v1796, %v1920
    %v1986 = vadd.f32 %v1797, %v1922
    %1987 = vrot.lane.b32.xlu0 %v1637, 32
    %v1988 = vpop.permute.xlu0 %1987
    %1989 = vrot.lane.b32.xlu0 %v1668, 32
    %v1990 = vpop.permute.xlu0 %1989
    %v1993 = vadd.f32 %v1523, %v1988
    %v1994 = vadd.f32 %v1563, %v1990
    %v1995 = vsel %vm1607, %v1575, %v1955
    %v1996 = vsel %vm1607, %v1576, %v1971
    %v1997 = vsel %vm1798, %v1970, %v1993
    %v1998 = vsel %vm1798, %v1986, %v1994
    %v1999 = vxor.u32 %v1995, 2147483648
    %v2000 = vxor.u32 %v1956, 2147483648
    %v2001 = vxor.u32 %v1957, 2147483648
    %v2002 = vxor.u32 %v1958, 2147483648
    %v2003 = vxor.u32 %v1959, 2147483648
    %v2004 = vxor.u32 %v1960, 2147483648
    %v2005 = vxor.u32 %v1961, 2147483648
    %v2006 = vxor.u32 %v1962, 2147483648
    %v2007 = vxor.u32 %v1963, 2147483648
    %v2008 = vxor.u32 %v1964, 2147483648
    %v2009 = vxor.u32 %v1965, 2147483648
    %v2010 = vxor.u32 %v1966, 2147483648
    %v2011 = vxor.u32 %v1967, 2147483648
    %v2012 = vxor.u32 %v1968, 2147483648
    %v2013 = vxor.u32 %v1969, 2147483648
    %v2014 = vxor.u32 %v1997, 2147483648
    %v2015 = vxor.u32 %v1996, 2147483648
    %v2016 = vxor.u32 %v1972, 2147483648
    %v2017 = vxor.u32 %v1973, 2147483648
    %v2018 = vxor.u32 %v1974, 2147483648
    %v2019 = vxor.u32 %v1975, 2147483648
    %v2020 = vxor.u32 %v1976, 2147483648
    %v2021 = vxor.u32 %v1977, 2147483648
    %v2022 = vxor.u32 %v1978, 2147483648
    %v2023 = vxor.u32 %v1979, 2147483648
    %v2024 = vxor.u32 %v1980, 2147483648
    %v2025 = vxor.u32 %v1981, 2147483648
    %v2026 = vxor.u32 %v1982, 2147483648
    %v2027 = vxor.u32 %v1983, 2147483648
    %v2028 = vxor.u32 %v1984, 2147483648
    %v2029 = vxor.u32 %v1985, 2147483648
    %v2030 = vxor.u32 %v1998, 2147483648
    %v2031 = vmul.f32 %v1999, 1.442695
    %v2032 = vpow.pop %v2031
    %v2033 = vmul.f32 %v2000, 1.442695
    %v2034 = vpow.pop %v2033
    %v2035 = vmul.f32 %v2001, 1.442695
    %v2036 = vpow.pop %v2035
    %v2037 = vmul.f32 %v2002, 1.442695
    %v2038 = vpow.pop %v2037
    %v2039 = vmul.f32 %v2003, 1.442695
    %v2040 = vpow.pop %v2039
    %v2041 = vmul.f32 %v2004, 1.442695
    %v2042 = vpow.pop %v2041
    %v2043 = vmul.f32 %v2005, 1.442695
    %v2044 = vpow.pop %v2043
    %v2045 = vmul.f32 %v2006, 1.442695
    %v2046 = vpow.pop %v2045
    %v2047 = vmul.f32 %v2007, 1.442695
    %v2048 = vpow.pop %v2047
    %v2049 = vmul.f32 %v2008, 1.442695
    %v2050 = vpow.pop %v2049
    %v2051 = vmul.f32 %v2009, 1.442695
    %v2052 = vpow.pop %v2051
    %v2053 = vmul.f32 %v2010, 1.442695
    %v2054 = vpow.pop %v2053
    %v2055 = vmul.f32 %v2011, 1.442695
    %v2056 = vpow.pop %v2055
    %v2057 = vmul.f32 %v2012, 1.442695
    %v2058 = vpow.pop %v2057
    %v2059 = vmul.f32 %v2013, 1.442695
    %v2060 = vpow.pop %v2059
    %v2061 = vmul.f32 %v2014, 1.442695
    %v2062 = vpow.pop %v2061
    %v2063 = vmul.f32 %v2015, 1.442695
    %v2064 = vpow.pop %v2063
    %v2065 = vmul.f32 %v2016, 1.442695
    %v2066 = vpow.pop %v2065
    %v2067 = vmul.f32 %v2017, 1.442695
    %v2068 = vpow.pop %v2067
    %v2069 = vmul.f32 %v2018, 1.442695
    %v2070 = vpow.pop %v2069
    %v2071 = vmul.f32 %v2019, 1.442695
    %v2072 = vpow.pop %v2071
    %v2073 = vmul.f32 %v2020, 1.442695
    %v2074 = vpow.pop %v2073
    %v2075 = vmul.f32 %v2021, 1.442695
    %v2076 = vpow.pop %v2075
    %v2077 = vmul.f32 %v2022, 1.442695
    %v2078 = vpow.pop %v2077
    %v2079 = vmul.f32 %v2023, 1.442695
    %v2080 = vpow.pop %v2079
    %v2081 = vmul.f32 %v2024, 1.442695
    %v2082 = vpow.pop %v2081
    %v2083 = vmul.f32 %v2025, 1.442695
    %v2084 = vpow.pop %v2083
    %v2085 = vmul.f32 %v2026, 1.442695
    %v2086 = vpow.pop %v2085
    %v2087 = vmul.f32 %v2027, 1.442695
    %v2088 = vpow.pop %v2087
    %v2089 = vmul.f32 %v2028, 1.442695
    %v2090 = vpow.pop %v2089
    %v2091 = vmul.f32 %v2029, 1.442695
    %v2092 = vpow.pop %v2091
    %v2093 = vmul.f32 %v2030, 1.442695
    %v2094 = vpow.pop %v2093
    %v2095 = vadd.f32 %v2032, 1.0
    %v2096 = vadd.f32 %v2034, 1.0
    %v2097 = vadd.f32 %v2036, 1.0
    %v2098 = vadd.f32 %v2038, 1.0
    %v2099 = vadd.f32 %v2040, 1.0
    %v2100 = vadd.f32 %v2042, 1.0
    %v2101 = vadd.f32 %v2044, 1.0
    %v2102 = vadd.f32 %v2046, 1.0
    %v2103 = vadd.f32 %v2048, 1.0
    %v2104 = vadd.f32 %v2050, 1.0
    %v2105 = vadd.f32 %v2052, 1.0
    %v2106 = vadd.f32 %v2054, 1.0
    %v2107 = vadd.f32 %v2056, 1.0
    %v2108 = vadd.f32 %v2058, 1.0
    %v2109 = vadd.f32 %v2060, 1.0
    %v2110 = vadd.f32 %v2062, 1.0
    %v2111 = vadd.f32 %v2064, 1.0
    %v2112 = vadd.f32 %v2066, 1.0
    %v2113 = vadd.f32 %v2068, 1.0
    %v2114 = vadd.f32 %v2070, 1.0
    %v2115 = vadd.f32 %v2072, 1.0
    %v2116 = vadd.f32 %v2074, 1.0
    %v2117 = vadd.f32 %v2076, 1.0
    %v2118 = vadd.f32 %v2078, 1.0
    %v2119 = vadd.f32 %v2080, 1.0
    %v2120 = vadd.f32 %v2082, 1.0
    %v2121 = vadd.f32 %v2084, 1.0
    %v2122 = vadd.f32 %v2086, 1.0
    %v2123 = vadd.f32 %v2088, 1.0
    %v2124 = vadd.f32 %v2090, 1.0
    %v2125 = vadd.f32 %v2092, 1.0
    %v2126 = vadd.f32 %v2094, 1.0
    %v2127 = vrcp.pop %v2095
    %v2128 = vmul.f32 %v2095, %v2127
    %v2129 = vsub.f32 1.0, %v2128
    %v2130 = vmul.f32 %v2127, %v2129
    %v2131 = vadd.f32 %v2127, %v2130
    %vm2132 = vweird.f32 %v2095
    %vm2133 = vweird.f32 %v2127
    %vm2134 = vmor %vm2132, %vm2133
    %v2135 = vsel %vm2134, %v2127, %v2131
    %v2136 = vand.u32 2147483647, %v2095
    %vm2137 = vcmp.eq.f32.partialorder %v2136, 8.507059e+37
    %v2138 = vand.u32 %v2095, 2147483648
    %v2139 = vor.u32 1.1754944e-38, %v2138
    %v2140 = vsel %vm2137, %v2139, %v2135
    %v2141 = vmul.f32 1.0, %v2140
    %v2142 = vrcp.pop %v2096
    %v2143 = vmul.f32 %v2096, %v2142
    %v2144 = vsub.f32 1.0, %v2143
    %v2145 = vmul.f32 %v2142, %v2144
    %v2146 = vadd.f32 %v2142, %v2145
    %vm2147 = vweird.f32 %v2096
    %vm2148 = vweird.f32 %v2142
    %vm2149 = vmor %vm2147, %vm2148
    %v2150 = vsel %vm2149, %v2142, %v2146
    %v2151 = vand.u32 2147483647, %v2096
    %vm2152 = vcmp.eq.f32.partialorder %v2151, 8.507059e+37
    %v2153 = vand.u32 %v2096, 2147483648
    %v2154 = vor.u32 1.1754944e-38, %v2153
    %v2155 = vsel %vm2152, %v2154, %v2150
    %v2156 = vmul.f32 1.0, %v2155
    %v2157 = vrcp.pop %v2097
    %v2158 = vmul.f32 %v2097, %v2157
    %v2159 = vsub.f32 1.0, %v2158
    %v2160 = vmul.f32 %v2157, %v2159
    %v2161 = vadd.f32 %v2157, %v2160
    %vm2162 = vweird.f32 %v2097
    %vm2163 = vweird.f32 %v2157
    %vm2164 = vmor %vm2162, %vm2163
    %v2165 = vsel %vm2164, %v2157, %v2161
    %v2166 = vand.u32 2147483647, %v2097
    %vm2167 = vcmp.eq.f32.partialorder %v2166, 8.507059e+37
    %v2168 = vand.u32 %v2097, 2147483648
    %v2169 = vor.u32 1.1754944e-38, %v2168
    %v2170 = vsel %vm2167, %v2169, %v2165
    %v2171 = vmul.f32 1.0, %v2170
    %v2172 = vrcp.pop %v2098
    %v2173 = vmul.f32 %v2098, %v2172
    %v2174 = vsub.f32 1.0, %v2173
    %v2175 = vmul.f32 %v2172, %v2174
    %v2176 = vadd.f32 %v2172, %v2175
    %vm2177 = vweird.f32 %v2098
    %vm2178 = vweird.f32 %v2172
    %vm2179 = vmor %vm2177, %vm2178
    %v2180 = vsel %vm2179, %v2172, %v2176
    %v2181 = vand.u32 2147483647, %v2098
    %vm2182 = vcmp.eq.f32.partialorder %v2181, 8.507059e+37
    %v2183 = vand.u32 %v2098, 2147483648
    %v2184 = vor.u32 1.1754944e-38, %v2183
    %v2185 = vsel %vm2182, %v2184, %v2180
    %v2186 = vmul.f32 1.0, %v2185
    %v2187 = vrcp.pop %v2099
    %v2188 = vmul.f32 %v2099, %v2187
    %v2189 = vsub.f32 1.0, %v2188
    %v2190 = vmul.f32 %v2187, %v2189
    %v2191 = vadd.f32 %v2187, %v2190
    %vm2192 = vweird.f32 %v2099
    %vm2193 = vweird.f32 %v2187
    %vm2194 = vmor %vm2192, %vm2193
    %v2195 = vsel %vm2194, %v2187, %v2191
    %v2196 = vand.u32 2147483647, %v2099
    %vm2197 = vcmp.eq.f32.partialorder %v2196, 8.507059e+37
    %v2198 = vand.u32 %v2099, 2147483648
    %v2199 = vor.u32 1.1754944e-38, %v2198
    %v2200 = vsel %vm2197, %v2199, %v2195
    %v2201 = vmul.f32 1.0, %v2200
    %v2202 = vrcp.pop %v2100
    %v2203 = vmul.f32 %v2100, %v2202
    %v2204 = vsub.f32 1.0, %v2203
    %v2205 = vmul.f32 %v2202, %v2204
    %v2206 = vadd.f32 %v2202, %v2205
    %vm2207 = vweird.f32 %v2100
    %vm2208 = vweird.f32 %v2202
    %vm2209 = vmor %vm2207, %vm2208
    %v2210 = vsel %vm2209, %v2202, %v2206
    %v2211 = vand.u32 2147483647, %v2100
    %vm2212 = vcmp.eq.f32.partialorder %v2211, 8.507059e+37
    %v2213 = vand.u32 %v2100, 2147483648
    %v2214 = vor.u32 1.1754944e-38, %v2213
    %v2215 = vsel %vm2212, %v2214, %v2210
    %v2216 = vmul.f32 1.0, %v2215
    %v2217 = vrcp.pop %v2101
    %v2218 = vmul.f32 %v2101, %v2217
    %v2219 = vsub.f32 1.0, %v2218
    %v2220 = vmul.f32 %v2217, %v2219
    %v2221 = vadd.f32 %v2217, %v2220
    %vm2222 = vweird.f32 %v2101
    %vm2223 = vweird.f32 %v2217
    %vm2224 = vmor %vm2222, %vm2223
    %v2225 = vsel %vm2224, %v2217, %v2221
    %v2226 = vand.u32 2147483647, %v2101
    %vm2227 = vcmp.eq.f32.partialorder %v2226, 8.507059e+37
    %v2228 = vand.u32 %v2101, 2147483648
    %v2229 = vor.u32 1.1754944e-38, %v2228
    %v2230 = vsel %vm2227, %v2229, %v2225
    %v2231 = vmul.f32 1.0, %v2230
    %v2232 = vrcp.pop %v2102
    %v2233 = vmul.f32 %v2102, %v2232
    %v2234 = vsub.f32 1.0, %v2233
    %v2235 = vmul.f32 %v2232, %v2234
    %v2236 = vadd.f32 %v2232, %v2235
    %vm2237 = vweird.f32 %v2102
    %vm2238 = vweird.f32 %v2232
    %vm2239 = vmor %vm2237, %vm2238
    %v2240 = vsel %vm2239, %v2232, %v2236
    %v2241 = vand.u32 2147483647, %v2102
    %vm2242 = vcmp.eq.f32.partialorder %v2241, 8.507059e+37
    %v2243 = vand.u32 %v2102, 2147483648
    %v2244 = vor.u32 1.1754944e-38, %v2243
    %v2245 = vsel %vm2242, %v2244, %v2240
    %v2246 = vmul.f32 1.0, %v2245
    %v2247 = vrcp.pop %v2103
    %v2248 = vmul.f32 %v2103, %v2247
    %v2249 = vsub.f32 1.0, %v2248
    %v2250 = vmul.f32 %v2247, %v2249
    %v2251 = vadd.f32 %v2247, %v2250
    %vm2252 = vweird.f32 %v2103
    %vm2253 = vweird.f32 %v2247
    %vm2254 = vmor %vm2252, %vm2253
    %v2255 = vsel %vm2254, %v2247, %v2251
    %v2256 = vand.u32 2147483647, %v2103
    %vm2257 = vcmp.eq.f32.partialorder %v2256, 8.507059e+37
    %v2258 = vand.u32 %v2103, 2147483648
    %v2259 = vor.u32 1.1754944e-38, %v2258
    %v2260 = vsel %vm2257, %v2259, %v2255
    %v2261 = vmul.f32 1.0, %v2260
    %v2262 = vrcp.pop %v2104
    %v2263 = vmul.f32 %v2104, %v2262
    %v2264 = vsub.f32 1.0, %v2263
    %v2265 = vmul.f32 %v2262, %v2264
    %v2266 = vadd.f32 %v2262, %v2265
    %vm2267 = vweird.f32 %v2104
    %vm2268 = vweird.f32 %v2262
    %vm2269 = vmor %vm2267, %vm2268
    %v2270 = vsel %vm2269, %v2262, %v2266
    %v2271 = vand.u32 2147483647, %v2104
    %vm2272 = vcmp.eq.f32.partialorder %v2271, 8.507059e+37
    %v2273 = vand.u32 %v2104, 2147483648
    %v2274 = vor.u32 1.1754944e-38, %v2273
    %v2275 = vsel %vm2272, %v2274, %v2270
    %v2276 = vmul.f32 1.0, %v2275
    %v2277 = vrcp.pop %v2105
    %v2278 = vmul.f32 %v2105, %v2277
    %v2279 = vsub.f32 1.0, %v2278
    %v2280 = vmul.f32 %v2277, %v2279
    %v2281 = vadd.f32 %v2277, %v2280
    %vm2282 = vweird.f32 %v2105
    %vm2283 = vweird.f32 %v2277
    %vm2284 = vmor %vm2282, %vm2283
    %v2285 = vsel %vm2284, %v2277, %v2281
    %v2286 = vand.u32 2147483647, %v2105
    %vm2287 = vcmp.eq.f32.partialorder %v2286, 8.507059e+37
    %v2288 = vand.u32 %v2105, 2147483648
    %v2289 = vor.u32 1.1754944e-38, %v2288
    %v2290 = vsel %vm2287, %v2289, %v2285
    %v2291 = vmul.f32 1.0, %v2290
    %v2292 = vrcp.pop %v2106
    %v2293 = vmul.f32 %v2106, %v2292
    %v2294 = vsub.f32 1.0, %v2293
    %v2295 = vmul.f32 %v2292, %v2294
    %v2296 = vadd.f32 %v2292, %v2295
    %vm2297 = vweird.f32 %v2106
    %vm2298 = vweird.f32 %v2292
    %vm2299 = vmor %vm2297, %vm2298
    %v2300 = vsel %vm2299, %v2292, %v2296
    %v2301 = vand.u32 2147483647, %v2106
    %vm2302 = vcmp.eq.f32.partialorder %v2301, 8.507059e+37
    %v2303 = vand.u32 %v2106, 2147483648
    %v2304 = vor.u32 1.1754944e-38, %v2303
    %v2305 = vsel %vm2302, %v2304, %v2300
    %v2306 = vmul.f32 1.0, %v2305
    %v2307 = vrcp.pop %v2107
    %v2308 = vmul.f32 %v2107, %v2307
    %v2309 = vsub.f32 1.0, %v2308
    %v2310 = vmul.f32 %v2307, %v2309
    %v2311 = vadd.f32 %v2307, %v2310
    %vm2312 = vweird.f32 %v2107
    %vm2313 = vweird.f32 %v2307
    %vm2314 = vmor %vm2312, %vm2313
    %v2315 = vsel %vm2314, %v2307, %v2311
    %v2316 = vand.u32 2147483647, %v2107
    %vm2317 = vcmp.eq.f32.partialorder %v2316, 8.507059e+37
    %v2318 = vand.u32 %v2107, 2147483648
    %v2319 = vor.u32 1.1754944e-38, %v2318
    %v2320 = vsel %vm2317, %v2319, %v2315
    %v2321 = vmul.f32 1.0, %v2320
    %v2322 = vrcp.pop %v2108
    %v2323 = vmul.f32 %v2108, %v2322
    %v2324 = vsub.f32 1.0, %v2323
    %v2325 = vmul.f32 %v2322, %v2324
    %v2326 = vadd.f32 %v2322, %v2325
    %vm2327 = vweird.f32 %v2108
    %vm2328 = vweird.f32 %v2322
    %vm2329 = vmor %vm2327, %vm2328
    %v2330 = vsel %vm2329, %v2322, %v2326
    %v2331 = vand.u32 2147483647, %v2108
    %vm2332 = vcmp.eq.f32.partialorder %v2331, 8.507059e+37
    %v2333 = vand.u32 %v2108, 2147483648
    %v2334 = vor.u32 1.1754944e-38, %v2333
    %v2335 = vsel %vm2332, %v2334, %v2330
    %v2336 = vmul.f32 1.0, %v2335
    %v2337 = vrcp.pop %v2109
    %v2338 = vmul.f32 %v2109, %v2337
    %v2339 = vsub.f32 1.0, %v2338
    %v2340 = vmul.f32 %v2337, %v2339
    %v2341 = vadd.f32 %v2337, %v2340
    %vm2342 = vweird.f32 %v2109
    %vm2343 = vweird.f32 %v2337
    %vm2344 = vmor %vm2342, %vm2343
    %v2345 = vsel %vm2344, %v2337, %v2341
    %v2346 = vand.u32 2147483647, %v2109
    %vm2347 = vcmp.eq.f32.partialorder %v2346, 8.507059e+37
    %v2348 = vand.u32 %v2109, 2147483648
    %v2349 = vor.u32 1.1754944e-38, %v2348
    %v2350 = vsel %vm2347, %v2349, %v2345
    %v2351 = vmul.f32 1.0, %v2350
    %v2352 = vrcp.pop %v2110
    %v2353 = vmul.f32 %v2110, %v2352
    %v2354 = vsub.f32 1.0, %v2353
    %v2355 = vmul.f32 %v2352, %v2354
    %v2356 = vadd.f32 %v2352, %v2355
    %vm2357 = vweird.f32 %v2110
    %vm2358 = vweird.f32 %v2352
    %vm2359 = vmor %vm2357, %vm2358
    %v2360 = vsel %vm2359, %v2352, %v2356
    %v2361 = vand.u32 2147483647, %v2110
    %vm2362 = vcmp.eq.f32.partialorder %v2361, 8.507059e+37
    %v2363 = vand.u32 %v2110, 2147483648
    %v2364 = vor.u32 1.1754944e-38, %v2363
    %v2365 = vsel %vm2362, %v2364, %v2360
    %v2366 = vmul.f32 1.0, %v2365
    %v2367 = vrcp.pop %v2111
    %v2368 = vmul.f32 %v2111, %v2367
    %v2369 = vsub.f32 1.0, %v2368
    %v2370 = vmul.f32 %v2367, %v2369
    %v2371 = vadd.f32 %v2367, %v2370
    %vm2372 = vweird.f32 %v2111
    %vm2373 = vweird.f32 %v2367
    %vm2374 = vmor %vm2372, %vm2373
    %v2375 = vsel %vm2374, %v2367, %v2371
    %v2376 = vand.u32 2147483647, %v2111
    %vm2377 = vcmp.eq.f32.partialorder %v2376, 8.507059e+37
    %v2378 = vand.u32 %v2111, 2147483648
    %v2379 = vor.u32 1.1754944e-38, %v2378
    %v2380 = vsel %vm2377, %v2379, %v2375
    %v2381 = vmul.f32 1.0, %v2380
    %v2382 = vrcp.pop %v2112
    %v2383 = vmul.f32 %v2112, %v2382
    %v2384 = vsub.f32 1.0, %v2383
    %v2385 = vmul.f32 %v2382, %v2384
    %v2386 = vadd.f32 %v2382, %v2385
    %vm2387 = vweird.f32 %v2112
    %vm2388 = vweird.f32 %v2382
    %vm2389 = vmor %vm2387, %vm2388
    %v2390 = vsel %vm2389, %v2382, %v2386
    %v2391 = vand.u32 2147483647, %v2112
    %vm2392 = vcmp.eq.f32.partialorder %v2391, 8.507059e+37
    %v2393 = vand.u32 %v2112, 2147483648
    %v2394 = vor.u32 1.1754944e-38, %v2393
    %v2395 = vsel %vm2392, %v2394, %v2390
    %v2396 = vmul.f32 1.0, %v2395
    %v2397 = vrcp.pop %v2113
    %v2398 = vmul.f32 %v2113, %v2397
    %v2399 = vsub.f32 1.0, %v2398
    %v2400 = vmul.f32 %v2397, %v2399
    %v2401 = vadd.f32 %v2397, %v2400
    %vm2402 = vweird.f32 %v2113
    %vm2403 = vweird.f32 %v2397
    %vm2404 = vmor %vm2402, %vm2403
    %v2405 = vsel %vm2404, %v2397, %v2401
    %v2406 = vand.u32 2147483647, %v2113
    %vm2407 = vcmp.eq.f32.partialorder %v2406, 8.507059e+37
    %v2408 = vand.u32 %v2113, 2147483648
    %v2409 = vor.u32 1.1754944e-38, %v2408
    %v2410 = vsel %vm2407, %v2409, %v2405
    %v2411 = vmul.f32 1.0, %v2410
    %v2412 = vrcp.pop %v2114
    %v2413 = vmul.f32 %v2114, %v2412
    %v2414 = vsub.f32 1.0, %v2413
    %v2415 = vmul.f32 %v2412, %v2414
    %v2416 = vadd.f32 %v2412, %v2415
    %vm2417 = vweird.f32 %v2114
    %vm2418 = vweird.f32 %v2412
    %vm2419 = vmor %vm2417, %vm2418
    %v2420 = vsel %vm2419, %v2412, %v2416
    %v2421 = vand.u32 2147483647, %v2114
    %vm2422 = vcmp.eq.f32.partialorder %v2421, 8.507059e+37
    %v2423 = vand.u32 %v2114, 2147483648
    %v2424 = vor.u32 1.1754944e-38, %v2423
    %v2425 = vsel %vm2422, %v2424, %v2420
    %v2426 = vmul.f32 1.0, %v2425
    %v2427 = vrcp.pop %v2115
    %v2428 = vmul.f32 %v2115, %v2427
    %v2429 = vsub.f32 1.0, %v2428
    %v2430 = vmul.f32 %v2427, %v2429
    %v2431 = vadd.f32 %v2427, %v2430
    %vm2432 = vweird.f32 %v2115
    %vm2433 = vweird.f32 %v2427
    %vm2434 = vmor %vm2432, %vm2433
    %v2435 = vsel %vm2434, %v2427, %v2431
    %v2436 = vand.u32 2147483647, %v2115
    %vm2437 = vcmp.eq.f32.partialorder %v2436, 8.507059e+37
    %v2438 = vand.u32 %v2115, 2147483648
    %v2439 = vor.u32 1.1754944e-38, %v2438
    %v2440 = vsel %vm2437, %v2439, %v2435
    %v2441 = vmul.f32 1.0, %v2440
    %v2442 = vrcp.pop %v2116
    %v2443 = vmul.f32 %v2116, %v2442
    %v2444 = vsub.f32 1.0, %v2443
    %v2445 = vmul.f32 %v2442, %v2444
    %v2446 = vadd.f32 %v2442, %v2445
    %vm2447 = vweird.f32 %v2116
    %vm2448 = vweird.f32 %v2442
    %vm2449 = vmor %vm2447, %vm2448
    %v2450 = vsel %vm2449, %v2442, %v2446
    %v2451 = vand.u32 2147483647, %v2116
    %vm2452 = vcmp.eq.f32.partialorder %v2451, 8.507059e+37
    %v2453 = vand.u32 %v2116, 2147483648
    %v2454 = vor.u32 1.1754944e-38, %v2453
    %v2455 = vsel %vm2452, %v2454, %v2450
    %v2456 = vmul.f32 1.0, %v2455
    %v2457 = vrcp.pop %v2117
    %v2458 = vmul.f32 %v2117, %v2457
    %v2459 = vsub.f32 1.0, %v2458
    %v2460 = vmul.f32 %v2457, %v2459
    %v2461 = vadd.f32 %v2457, %v2460
    %vm2462 = vweird.f32 %v2117
    %vm2463 = vweird.f32 %v2457
    %vm2464 = vmor %vm2462, %vm2463
    %v2465 = vsel %vm2464, %v2457, %v2461
    %v2466 = vand.u32 2147483647, %v2117
    %vm2467 = vcmp.eq.f32.partialorder %v2466, 8.507059e+37
    %v2468 = vand.u32 %v2117, 2147483648
    %v2469 = vor.u32 1.1754944e-38, %v2468
    %v2470 = vsel %vm2467, %v2469, %v2465
    %v2471 = vmul.f32 1.0, %v2470
    %v2472 = vrcp.pop %v2118
    %v2473 = vmul.f32 %v2118, %v2472
    %v2474 = vsub.f32 1.0, %v2473
    %v2475 = vmul.f32 %v2472, %v2474
    %v2476 = vadd.f32 %v2472, %v2475
    %vm2477 = vweird.f32 %v2118
    %vm2478 = vweird.f32 %v2472
    %vm2479 = vmor %vm2477, %vm2478
    %v2480 = vsel %vm2479, %v2472, %v2476
    %v2481 = vand.u32 2147483647, %v2118
    %vm2482 = vcmp.eq.f32.partialorder %v2481, 8.507059e+37
    %v2483 = vand.u32 %v2118, 2147483648
    %v2484 = vor.u32 1.1754944e-38, %v2483
    %v2485 = vsel %vm2482, %v2484, %v2480
    %v2486 = vmul.f32 1.0, %v2485
    %v2487 = vrcp.pop %v2119
    %v2488 = vmul.f32 %v2119, %v2487
    %v2489 = vsub.f32 1.0, %v2488
    %v2490 = vmul.f32 %v2487, %v2489
    %v2491 = vadd.f32 %v2487, %v2490
    %vm2492 = vweird.f32 %v2119
    %vm2493 = vweird.f32 %v2487
    %vm2494 = vmor %vm2492, %vm2493
    %v2495 = vsel %vm2494, %v2487, %v2491
    %v2496 = vand.u32 2147483647, %v2119
    %vm2497 = vcmp.eq.f32.partialorder %v2496, 8.507059e+37
    %v2498 = vand.u32 %v2119, 2147483648
    %v2499 = vor.u32 1.1754944e-38, %v2498
    %v2500 = vsel %vm2497, %v2499, %v2495
    %v2501 = vmul.f32 1.0, %v2500
    %v2502 = vrcp.pop %v2120
    %v2503 = vmul.f32 %v2120, %v2502
    %v2504 = vsub.f32 1.0, %v2503
    %v2505 = vmul.f32 %v2502, %v2504
    %v2506 = vadd.f32 %v2502, %v2505
    %vm2507 = vweird.f32 %v2120
    %vm2508 = vweird.f32 %v2502
    %vm2509 = vmor %vm2507, %vm2508
    %v2510 = vsel %vm2509, %v2502, %v2506
    %v2511 = vand.u32 2147483647, %v2120
    %vm2512 = vcmp.eq.f32.partialorder %v2511, 8.507059e+37
    %v2513 = vand.u32 %v2120, 2147483648
    %v2514 = vor.u32 1.1754944e-38, %v2513
    %v2515 = vsel %vm2512, %v2514, %v2510
    %v2516 = vmul.f32 1.0, %v2515
    %v2517 = vrcp.pop %v2121
    %v2518 = vmul.f32 %v2121, %v2517
    %v2519 = vsub.f32 1.0, %v2518
    %v2520 = vmul.f32 %v2517, %v2519
    %v2521 = vadd.f32 %v2517, %v2520
    %vm2522 = vweird.f32 %v2121
    %vm2523 = vweird.f32 %v2517
    %vm2524 = vmor %vm2522, %vm2523
    %v2525 = vsel %vm2524, %v2517, %v2521
    %v2526 = vand.u32 2147483647, %v2121
    %vm2527 = vcmp.eq.f32.partialorder %v2526, 8.507059e+37
    %v2528 = vand.u32 %v2121, 2147483648
    %v2529 = vor.u32 1.1754944e-38, %v2528
    %v2530 = vsel %vm2527, %v2529, %v2525
    %v2531 = vmul.f32 1.0, %v2530
    %v2532 = vrcp.pop %v2122
    %v2533 = vmul.f32 %v2122, %v2532
    %v2534 = vsub.f32 1.0, %v2533
    %v2535 = vmul.f32 %v2532, %v2534
    %v2536 = vadd.f32 %v2532, %v2535
    %vm2537 = vweird.f32 %v2122
    %vm2538 = vweird.f32 %v2532
    %vm2539 = vmor %vm2537, %vm2538
    %v2540 = vsel %vm2539, %v2532, %v2536
    %v2541 = vand.u32 2147483647, %v2122
    %vm2542 = vcmp.eq.f32.partialorder %v2541, 8.507059e+37
    %v2543 = vand.u32 %v2122, 2147483648
    %v2544 = vor.u32 1.1754944e-38, %v2543
    %v2545 = vsel %vm2542, %v2544, %v2540
    %v2546 = vmul.f32 1.0, %v2545
    %v2547 = vrcp.pop %v2123
    %v2548 = vmul.f32 %v2123, %v2547
    %v2549 = vsub.f32 1.0, %v2548
    %v2550 = vmul.f32 %v2547, %v2549
    %v2551 = vadd.f32 %v2547, %v2550
    %vm2552 = vweird.f32 %v2123
    %vm2553 = vweird.f32 %v2547
    %vm2554 = vmor %vm2552, %vm2553
    %v2555 = vsel %vm2554, %v2547, %v2551
    %v2556 = vand.u32 2147483647, %v2123
    %vm2557 = vcmp.eq.f32.partialorder %v2556, 8.507059e+37
    %v2558 = vand.u32 %v2123, 2147483648
    %v2559 = vor.u32 1.1754944e-38, %v2558
    %v2560 = vsel %vm2557, %v2559, %v2555
    %v2561 = vmul.f32 1.0, %v2560
    %v2562 = vrcp.pop %v2124
    %v2563 = vmul.f32 %v2124, %v2562
    %v2564 = vsub.f32 1.0, %v2563
    %v2565 = vmul.f32 %v2562, %v2564
    %v2566 = vadd.f32 %v2562, %v2565
    %vm2567 = vweird.f32 %v2124
    %vm2568 = vweird.f32 %v2562
    %vm2569 = vmor %vm2567, %vm2568
    %v2570 = vsel %vm2569, %v2562, %v2566
    %v2571 = vand.u32 2147483647, %v2124
    %vm2572 = vcmp.eq.f32.partialorder %v2571, 8.507059e+37
    %v2573 = vand.u32 %v2124, 2147483648
    %v2574 = vor.u32 1.1754944e-38, %v2573
    %v2575 = vsel %vm2572, %v2574, %v2570
    %v2576 = vmul.f32 1.0, %v2575
    %v2577 = vrcp.pop %v2125
    %v2578 = vmul.f32 %v2125, %v2577
    %v2579 = vsub.f32 1.0, %v2578
    %v2580 = vmul.f32 %v2577, %v2579
    %v2581 = vadd.f32 %v2577, %v2580
    %vm2582 = vweird.f32 %v2125
    %vm2583 = vweird.f32 %v2577
    %vm2584 = vmor %vm2582, %vm2583
    %v2585 = vsel %vm2584, %v2577, %v2581
    %v2586 = vand.u32 2147483647, %v2125
    %vm2587 = vcmp.eq.f32.partialorder %v2586, 8.507059e+37
    %v2588 = vand.u32 %v2125, 2147483648
    %v2589 = vor.u32 1.1754944e-38, %v2588
    %v2590 = vsel %vm2587, %v2589, %v2585
    %v2591 = vmul.f32 1.0, %v2590
    %v2592 = vrcp.pop %v2126
    %v2593 = vmul.f32 %v2126, %v2592
    %v2594 = vsub.f32 1.0, %v2593
    %v2595 = vmul.f32 %v2592, %v2594
    %v2596 = vadd.f32 %v2592, %v2595
    %vm2597 = vweird.f32 %v2126
    %vm2598 = vweird.f32 %v2592
    %vm2599 = vmor %vm2597, %vm2598
    %v2600 = vsel %vm2599, %v2592, %v2596
    %v2601 = vand.u32 2147483647, %v2126
    %vm2602 = vcmp.eq.f32.partialorder %v2601, 8.507059e+37
    %v2603 = vand.u32 %v2126, 2147483648
    %v2604 = vor.u32 1.1754944e-38, %v2603
    %v2605 = vsel %vm2602, %v2604, %v2600
    %v2606 = vmul.f32 1.0, %v2605
    %v2607 = vmul.f32 %v1995, %v2141
    %v2608 = vmul.f32 %v1956, %v2156
    %v2609 = vmul.f32 %v1957, %v2171
    %v2610 = vmul.f32 %v1958, %v2186
    %v2611 = vmul.f32 %v1959, %v2201
    %v2612 = vmul.f32 %v1960, %v2216
    %v2613 = vmul.f32 %v1961, %v2231
    %v2614 = vmul.f32 %v1962, %v2246
    %v2615 = vmul.f32 %v1963, %v2261
    %v2616 = vmul.f32 %v1964, %v2276
    %v2617 = vmul.f32 %v1965, %v2291
    %v2618 = vmul.f32 %v1966, %v2306
    %v2619 = vmul.f32 %v1967, %v2321
    %v2620 = vmul.f32 %v1968, %v2336
    %v2621 = vmul.f32 %v1969, %v2351
    %v2622 = vmul.f32 %v1997, %v2366
    %v2623 = vmul.f32 %v1996, %v2381
    %v2624 = vmul.f32 %v1972, %v2396
    %v2625 = vmul.f32 %v1973, %v2411
    %v2626 = vmul.f32 %v1974, %v2426
    %v2627 = vmul.f32 %v1975, %v2441
    %v2628 = vmul.f32 %v1976, %v2456
    %v2629 = vmul.f32 %v1977, %v2471
    %v2630 = vmul.f32 %v1978, %v2486
    %v2631 = vmul.f32 %v1979, %v2501
    %v2632 = vmul.f32 %v1980, %v2516
    %v2633 = vmul.f32 %v1981, %v2531
    %v2634 = vmul.f32 %v1982, %v2546
    %v2635 = vmul.f32 %v1983, %v2561
    %v2636 = vmul.f32 %v1984, %v2576
    %v2637 = vmul.f32 %v1985, %v2591
    %v2638 = vmul.f32 %v1998, %v2606
    %v2639 = vld [vmem:[#allocation8] sm:$0xf]
    %v2640 = vld [vmem:[#allocation8 + $0x4] sm:$0xf]
    %v2641 = vld [vmem:[#allocation8 + $0x8] sm:$0xf]
    %v2642 = vld [vmem:[#allocation8 + $0xc] sm:$0xf]
    %v2643 = vpack.c.bf16 %v2608, %v2607
    %v2644 = vpack.c.bf16 %v2610, %v2609
    %v2645 = vpack.c.bf16 %v2612, %v2611
    %v2646 = vpack.c.bf16 %v2614, %v2613
    %v2647 = vpack.c.bf16 %v2616, %v2615
    %v2648 = vpack.c.bf16 %v2618, %v2617
    %v2649 = vpack.c.bf16 %v2620, %v2619
    %v2650 = vpack.c.bf16 %v2622, %v2621
    %v2651 = vpack.c.bf16 %v2624, %v2623
    %v2652 = vpack.c.bf16 %v2626, %v2625
    %v2653 = vpack.c.bf16 %v2628, %v2627
    %v2654 = vpack.c.bf16 %v2630, %v2629
    %v2655 = vpack.c.bf16 %v2632, %v2631
    %v2656 = vpack.c.bf16 %v2634, %v2633
    %v2657 = vpack.c.bf16 %v2636, %v2635
    %v2658 = vpack.c.bf16 %v2638, %v2637
    %2675 = vrot.lane.b32.xlu0 %v2643, 96
    %v2676 = vpop.permute.xlu0 %2675
    %2677 = vrot.lane.b32.xlu0 %v2644, 96
    %v2678 = vpop.permute.xlu0 %2677
    %2679 = vrot.lane.b32.xlu0 %v2645, 96
    %v2680 = vpop.permute.xlu0 %2679
    %2681 = vrot.lane.b32.xlu0 %v2646, 96
    %v2682 = vpop.permute.xlu0 %2681
    %2683 = vrot.lane.b32.xlu0 %v2647, 96
    %v2684 = vpop.permute.xlu0 %2683
    %2685 = vrot.lane.b32.xlu0 %v2648, 96
    %v2686 = vpop.permute.xlu0 %2685
    %2687 = vrot.lane.b32.xlu0 %v2649, 96
    %v2688 = vpop.permute.xlu0 %2687
    %2689 = vrot.lane.b32.xlu0 %v2650, 96
    %v2690 = vpop.permute.xlu0 %2689
    %2691 = vrot.lane.b32.xlu0 %v2651, 96
    %v2692 = vpop.permute.xlu0 %2691
    %2693 = vrot.lane.b32.xlu0 %v2652, 96
    %v2694 = vpop.permute.xlu0 %2693
    %2695 = vrot.lane.b32.xlu0 %v2653, 96
    %v2696 = vpop.permute.xlu0 %2695
    %2697 = vrot.lane.b32.xlu0 %v2654, 96
    %v2698 = vpop.permute.xlu0 %2697
    %2699 = vrot.lane.b32.xlu0 %v2655, 96
    %v2700 = vpop.permute.xlu0 %2699
    %2701 = vrot.lane.b32.xlu0 %v2656, 96
    %v2702 = vpop.permute.xlu0 %2701
    %2703 = vrot.lane.b32.xlu0 %v2657, 96
    %v2704 = vpop.permute.xlu0 %2703
    %2705 = vrot.lane.b32.xlu0 %v2658, 96
    %v2706 = vpop.permute.xlu0 %2705
    %v2711 = vunpack.c.l.b16 %v2639
    %v2712 = vunpack.c.l.b16 %v2640
    %v2713 = vunpack.c.l.b16 %v2641
    %v2714 = vunpack.c.l.b16 %v2642
    %v2715 = vpack.c.b16 %v2712, %v2711
    %v2716 = vpack.c.b16 %v2714, %v2713
    %v2720 = vsel %vm204, %v2676, 0
    %v2723 = vsel %vm204, %v2678, 0
    %v2726 = vsel %vm204, %v2680, 0
    %v2729 = vsel %vm204, %v2682, 0
    %v2732 = vsel %vm204, %v2684, 0
    %v2735 = vsel %vm204, %v2686, 0
    %v2738 = vsel %vm204, %v2688, 0
    %v2741 = vsel %vm204, %v2690, 0
    %v2744 = vsel %vm204, %v2692, 0
    %v2747 = vsel %vm204, %v2694, 0
    %v2750 = vsel %vm204, %v2696, 0
    %v2753 = vsel %vm204, %v2698, 0
    %v2756 = vsel %vm204, %v2700, 0
    %v2759 = vsel %vm204, %v2702, 0
    %v2762 = vsel %vm204, %v2704, 0
    %v2765 = vsel %vm204, %v2706, 0
    %2767 = vmatpush.bf16.msra.mxu0 0
    %2768 = vmatpush.bf16.msra.mxu0 0
    %2769 = vmatpush.bf16.msra.mxu0 0
    %2770 = vmatpush.bf16.msra.mxu0 0
    %2771 = vmatpush.bf16.msra.mxu0 0
    %2772 = vmatpush.bf16.msra.mxu0 0
    %2773 = vmatpush.bf16.msra.mxu0 %v2716
    %2774 = vmatpush.bf16.msra.mxu0 %v2715
    %2775 = vmatmul.bf16.gmra.mxu0 %v2720
    %v2776 = vpop.f32.mrf.mxu0
    %v2777 = vadd.f32 0.0, %v2776
    %v2778 = vpop.f32.mrf.mxu0
    %v2779 = vadd.f32 0.0, %v2778
    %2780 = vmatmul.bf16.gmra.mxu0 %v2723
    %v2781 = vpop.f32.mrf.mxu0
    %v2782 = vadd.f32 0.0, %v2781
    %v2783 = vpop.f32.mrf.mxu0
    %v2784 = vadd.f32 0.0, %v2783
    %2785 = vmatmul.bf16.gmra.mxu0 %v2726
    %v2786 = vpop.f32.mrf.mxu0
    %v2787 = vadd.f32 0.0, %v2786
    %v2788 = vpop.f32.mrf.mxu0
    %v2789 = vadd.f32 0.0, %v2788
    %2790 = vmatmul.bf16.gmra.mxu0 %v2729
    %v2791 = vpop.f32.mrf.mxu0
    %v2792 = vadd.f32 0.0, %v2791
    %v2793 = vpop.f32.mrf.mxu0
    %v2794 = vadd.f32 0.0, %v2793
    %2795 = vmatmul.bf16.gmra.mxu0 %v2732
    %v2796 = vpop.f32.mrf.mxu0
    %v2797 = vadd.f32 0.0, %v2796
    %v2798 = vpop.f32.mrf.mxu0
    %v2799 = vadd.f32 0.0, %v2798
    %2800 = vmatmul.bf16.gmra.mxu0 %v2735
    %v2801 = vpop.f32.mrf.mxu0
    %v2802 = vadd.f32 0.0, %v2801
    %v2803 = vpop.f32.mrf.mxu0
    %v2804 = vadd.f32 0.0, %v2803
    %2805 = vmatmul.bf16.gmra.mxu0 %v2738
    %v2806 = vpop.f32.mrf.mxu0
    %v2807 = vadd.f32 0.0, %v2806
    %v2808 = vpop.f32.mrf.mxu0
    %v2809 = vadd.f32 0.0, %v2808
    %2810 = vmatmul.bf16.gmra.mxu0 %v2741
    %v2811 = vpop.f32.mrf.mxu0
    %v2812 = vadd.f32 0.0, %v2811
    %v2813 = vpop.f32.mrf.mxu0
    %v2814 = vadd.f32 0.0, %v2813
    %2815 = vmatmul.bf16.gmra.mxu0 %v2744
    %v2816 = vpop.f32.mrf.mxu0
    %v2817 = vadd.f32 0.0, %v2816
    %v2818 = vpop.f32.mrf.mxu0
    %v2819 = vadd.f32 0.0, %v2818
    %2820 = vmatmul.bf16.gmra.mxu0 %v2747
    %v2821 = vpop.f32.mrf.mxu0
    %v2822 = vadd.f32 0.0, %v2821
    %v2823 = vpop.f32.mrf.mxu0
    %v2824 = vadd.f32 0.0, %v2823
    %2825 = vmatmul.bf16.gmra.mxu0 %v2750
    %v2826 = vpop.f32.mrf.mxu0
    %v2827 = vadd.f32 0.0, %v2826
    %v2828 = vpop.f32.mrf.mxu0
    %v2829 = vadd.f32 0.0, %v2828
    %2830 = vmatmul.bf16.gmra.mxu0 %v2753
    %v2831 = vpop.f32.mrf.mxu0
    %v2832 = vadd.f32 0.0, %v2831
    %v2833 = vpop.f32.mrf.mxu0
    %v2834 = vadd.f32 0.0, %v2833
    %2835 = vmatmul.bf16.gmra.mxu0 %v2756
    %v2836 = vpop.f32.mrf.mxu0
    %v2837 = vadd.f32 0.0, %v2836
    %v2838 = vpop.f32.mrf.mxu0
    %v2839 = vadd.f32 0.0, %v2838
    %2840 = vmatmul.bf16.gmra.mxu0 %v2759
    %v2841 = vpop.f32.mrf.mxu0
    %v2842 = vadd.f32 0.0, %v2841
    %v2843 = vpop.f32.mrf.mxu0
    %v2844 = vadd.f32 0.0, %v2843
    %2845 = vmatmul.bf16.gmra.mxu0 %v2762
    %v2846 = vpop.f32.mrf.mxu0
    %v2847 = vadd.f32 0.0, %v2846
    %v2848 = vpop.f32.mrf.mxu0
    %v2849 = vadd.f32 0.0, %v2848
    %2850 = vmatmul.bf16.gmra.mxu0 %v2765
    %v2851 = vpop.f32.mrf.mxu0
    %v2852 = vadd.f32 0.0, %v2851
    %v2853 = vpop.f32.mrf.mxu0
    %v2854 = vadd.f32 0.0, %v2853
    %2855 = vdwg.mxu0
    %v2858 = vrot.slane %v2777, 1
    %v2859 = vrot.slane %v2817, 1
    %2860 = vrot.lane.b32.xlu0 %v2858, 96
    %v2861 = vpop.permute.xlu0 %2860
    %2862 = vrot.lane.b32.xlu0 %v2859, 96
    %v2863 = vpop.permute.xlu0 %2862
    %v2866 = vadd.f32 %v2777, %v2861
    %v2867 = vadd.f32 %v2817, %v2863
    %vm2898 = vcmask 1040384
    %v2899 = vrot.slane %v2777, 7
    %v2900 = vrot.slane %v2779, 7
    %v2901 = vsel %vm2898, %v2899, %v2900
    %v2902 = vrot.slane %v2782, 7
    %v2903 = vsel %vm2898, %v2900, %v2902
    %v2904 = vrot.slane %v2784, 7
    %v2905 = vsel %vm2898, %v2902, %v2904
    %v2906 = vrot.slane %v2787, 7
    %v2907 = vsel %vm2898, %v2904, %v2906
    %v2908 = vrot.slane %v2789, 7
    %v2909 = vsel %vm2898, %v2906, %v2908
    %v2910 = vrot.slane %v2792, 7
    %v2911 = vsel %vm2898, %v2908, %v2910
    %v2912 = vrot.slane %v2794, 7
    %v2913 = vsel %vm2898, %v2910, %v2912
    %v2914 = vrot.slane %v2797, 7
    %v2915 = vsel %vm2898, %v2912, %v2914
    %v2916 = vrot.slane %v2799, 7
    %v2917 = vsel %vm2898, %v2914, %v2916
    %v2918 = vrot.slane %v2802, 7
    %v2919 = vsel %vm2898, %v2916, %v2918
    %v2920 = vrot.slane %v2804, 7
    %v2921 = vsel %vm2898, %v2918, %v2920
    %v2922 = vrot.slane %v2807, 7
    %v2923 = vsel %vm2898, %v2920, %v2922
    %v2924 = vrot.slane %v2809, 7
    %v2925 = vsel %vm2898, %v2922, %v2924
    %v2926 = vrot.slane %v2812, 7
    %v2927 = vsel %vm2898, %v2924, %v2926
    %v2928 = vrot.slane %v2814, 7
    %v2929 = vsel %vm2898, %v2926, %v2928
    %v2930 = vrot.slane %v2817, 7
    %v2931 = vrot.slane %v2819, 7
    %v2932 = vsel %vm2898, %v2930, %v2931
    %v2933 = vrot.slane %v2822, 7
    %v2934 = vsel %vm2898, %v2931, %v2933
    %v2935 = vrot.slane %v2824, 7
    %v2936 = vsel %vm2898, %v2933, %v2935
    %v2937 = vrot.slane %v2827, 7
    %v2938 = vsel %vm2898, %v2935, %v2937
    %v2939 = vrot.slane %v2829, 7
    %v2940 = vsel %vm2898, %v2937, %v2939
    %v2941 = vrot.slane %v2832, 7
    %v2942 = vsel %vm2898, %v2939, %v2941
    %v2943 = vrot.slane %v2834, 7
    %v2944 = vsel %vm2898, %v2941, %v2943
    %v2945 = vrot.slane %v2837, 7
    %v2946 = vsel %vm2898, %v2943, %v2945
    %v2947 = vrot.slane %v2839, 7
    %v2948 = vsel %vm2898, %v2945, %v2947
    %v2949 = vrot.slane %v2842, 7
    %v2950 = vsel %vm2898, %v2947, %v2949
    %v2951 = vrot.slane %v2844, 7
    %v2952 = vsel %vm2898, %v2949, %v2951
    %v2953 = vrot.slane %v2847, 7
    %v2954 = vsel %vm2898, %v2951, %v2953
    %v2955 = vrot.slane %v2849, 7
    %v2956 = vsel %vm2898, %v2953, %v2955
    %v2957 = vrot.slane %v2852, 7
    %v2958 = vsel %vm2898, %v2955, %v2957
    %v2959 = vrot.slane %v2854, 7
    %v2960 = vsel %vm2898, %v2957, %v2959
    %2961 = vrot.lane.b32.xlu0 %v2899, 32
    %v2962 = vpop.permute.xlu0 %2961
    %2963 = vrot.lane.b32.xlu0 %v2901, 32
    %v2964 = vpop.permute.xlu0 %2963
    %2965 = vrot.lane.b32.xlu0 %v2903, 32
    %v2966 = vpop.permute.xlu0 %2965
    %2967 = vrot.lane.b32.xlu0 %v2905, 32
    %v2968 = vpop.permute.xlu0 %2967
    %2969 = vrot.lane.b32.xlu0 %v2907, 32
    %v2970 = vpop.permute.xlu0 %2969
    %2971 = vrot.lane.b32.xlu0 %v2909, 32
    %v2972 = vpop.permute.xlu0 %2971
    %2973 = vrot.lane.b32.xlu0 %v2911, 32
    %v2974 = vpop.permute.xlu0 %2973
    %2975 = vrot.lane.b32.xlu0 %v2913, 32
    %v2976 = vpop.permute.xlu0 %2975
    %2977 = vrot.lane.b32.xlu0 %v2915, 32
    %v2978 = vpop.permute.xlu0 %2977
    %2979 = vrot.lane.b32.xlu0 %v2917, 32
    %v2980 = vpop.permute.xlu0 %2979
    %2981 = vrot.lane.b32.xlu0 %v2919, 32
    %v2982 = vpop.permute.xlu0 %2981
    %2983 = vrot.lane.b32.xlu0 %v2921, 32
    %v2984 = vpop.permute.xlu0 %2983
    %2985 = vrot.lane.b32.xlu0 %v2923, 32
    %v2986 = vpop.permute.xlu0 %2985
    %2987 = vrot.lane.b32.xlu0 %v2925, 32
    %v2988 = vpop.permute.xlu0 %2987
    %2989 = vrot.lane.b32.xlu0 %v2927, 32
    %v2990 = vpop.permute.xlu0 %2989
    %2991 = vrot.lane.b32.xlu0 %v2929, 32
    %v2992 = vpop.permute.xlu0 %2991
    %2993 = vrot.lane.b32.xlu0 %v2930, 32
    %v2994 = vpop.permute.xlu0 %2993
    %2995 = vrot.lane.b32.xlu0 %v2932, 32
    %v2996 = vpop.permute.xlu0 %2995
    %2997 = vrot.lane.b32.xlu0 %v2934, 32
    %v2998 = vpop.permute.xlu0 %2997
    %2999 = vrot.lane.b32.xlu0 %v2936, 32
    %v3000 = vpop.permute.xlu0 %2999
    %3001 = vrot.lane.b32.xlu0 %v2938, 32
    %v3002 = vpop.permute.xlu0 %3001
    %3003 = vrot.lane.b32.xlu0 %v2940, 32
    %v3004 = vpop.permute.xlu0 %3003
    %3005 = vrot.lane.b32.xlu0 %v2942, 32
    %v3006 = vpop.permute.xlu0 %3005
    %3007 = vrot.lane.b32.xlu0 %v2944, 32
    %v3008 = vpop.permute.xlu0 %3007
    %3009 = vrot.lane.b32.xlu0 %v2946, 32
    %v3010 = vpop.permute.xlu0 %3009
    %3011 = vrot.lane.b32.xlu0 %v2948, 32
    %v3012 = vpop.permute.xlu0 %3011
    %3013 = vrot.lane.b32.xlu0 %v2950, 32
    %v3014 = vpop.permute.xlu0 %3013
    %3015 = vrot.lane.b32.xlu0 %v2952, 32
    %v3016 = vpop.permute.xlu0 %3015
    %3017 = vrot.lane.b32.xlu0 %v2954, 32
    %v3018 = vpop.permute.xlu0 %3017
    %3019 = vrot.lane.b32.xlu0 %v2956, 32
    %v3020 = vpop.permute.xlu0 %3019
    %3021 = vrot.lane.b32.xlu0 %v2958, 32
    %v3022 = vpop.permute.xlu0 %3021
    %3023 = vrot.lane.b32.xlu0 %v2960, 32
    %v3024 = vpop.permute.xlu0 %3023
    %v3057 = vadd.f32 %v2777, %v2962
    %v3058 = vadd.f32 %v2779, %v2964
    %v3059 = vadd.f32 %v2782, %v2966
    %v3060 = vadd.f32 %v2784, %v2968
    %v3061 = vadd.f32 %v2787, %v2970
    %v3062 = vadd.f32 %v2789, %v2972
    %v3063 = vadd.f32 %v2792, %v2974
    %v3064 = vadd.f32 %v2794, %v2976
    %v3065 = vadd.f32 %v2797, %v2978
    %v3066 = vadd.f32 %v2799, %v2980
    %v3067 = vadd.f32 %v2802, %v2982
    %v3068 = vadd.f32 %v2804, %v2984
    %v3069 = vadd.f32 %v2807, %v2986
    %v3070 = vadd.f32 %v2809, %v2988
    %v3071 = vadd.f32 %v2812, %v2990
    %v3072 = vadd.f32 %v2814, %v2992
    %v3073 = vadd.f32 %v2817, %v2994
    %v3074 = vadd.f32 %v2819, %v2996
    %v3075 = vadd.f32 %v2822, %v2998
    %v3076 = vadd.f32 %v2824, %v3000
    %v3077 = vadd.f32 %v2827, %v3002
    %v3078 = vadd.f32 %v2829, %v3004
    %v3079 = vadd.f32 %v2832, %v3006
    %v3080 = vadd.f32 %v2834, %v3008
    %v3081 = vadd.f32 %v2837, %v3010
    %v3082 = vadd.f32 %v2839, %v3012
    %v3083 = vadd.f32 %v2842, %v3014
    %v3084 = vadd.f32 %v2844, %v3016
    %v3085 = vadd.f32 %v2847, %v3018
    %v3086 = vadd.f32 %v2849, %v3020
    %v3087 = vadd.f32 %v2852, %v3022
    %v3088 = vadd.f32 %v2854, %v3024
    %vm3089 = vcmask 1046528
    %v3090 = vrot.slane %v2779, 1
    %v3091 = vsel %vm3089, %v2858, %v3090
    %v3092 = vrot.slane %v2782, 1
    %v3093 = vsel %vm3089, %v3090, %v3092
    %v3094 = vrot.slane %v2784, 1
    %v3095 = vsel %vm3089, %v3092, %v3094
    %v3096 = vrot.slane %v2787, 1
    %v3097 = vsel %vm3089, %v3094, %v3096
    %v3098 = vrot.slane %v2789, 1
    %v3099 = vsel %vm3089, %v3096, %v3098
    %v3100 = vrot.slane %v2792, 1
    %v3101 = vsel %vm3089, %v3098, %v3100
    %v3102 = vrot.slane %v2794, 1
    %v3103 = vsel %vm3089, %v3100, %v3102
    %v3104 = vrot.slane %v2797, 1
    %v3105 = vsel %vm3089, %v3102, %v3104
    %v3106 = vrot.slane %v2799, 1
    %v3107 = vsel %vm3089, %v3104, %v3106
    %v3108 = vrot.slane %v2802, 1
    %v3109 = vsel %vm3089, %v3106, %v3108
    %v3110 = vrot.slane %v2804, 1
    %v3111 = vsel %vm3089, %v3108, %v3110
    %v3112 = vrot.slane %v2807, 1
    %v3113 = vsel %vm3089, %v3110, %v3112
    %v3114 = vrot.slane %v2809, 1
    %v3115 = vsel %vm3089, %v3112, %v3114
    %v3116 = vrot.slane %v2812, 1
    %v3117 = vsel %vm3089, %v3114, %v3116
    %v3118 = vrot.slane %v2814, 1
    %v3119 = vsel %vm3089, %v3116, %v3118
    %v3120 = vrot.slane %v2819, 1
    %v3121 = vsel %vm3089, %v2859, %v3120
    %v3122 = vrot.slane %v2822, 1
    %v3123 = vsel %vm3089, %v3120, %v3122
    %v3124 = vrot.slane %v2824, 1
    %v3125 = vsel %vm3089, %v3122, %v3124
    %v3126 = vrot.slane %v2827, 1
    %v3127 = vsel %vm3089, %v3124, %v3126
    %v3128 = vrot.slane %v2829, 1
    %v3129 = vsel %vm3089, %v3126, %v3128
    %v3130 = vrot.slane %v2832, 1
    %v3131 = vsel %vm3089, %v3128, %v3130
    %v3132 = vrot.slane %v2834, 1
    %v3133 = vsel %vm3089, %v3130, %v3132
    %v3134 = vrot.slane %v2837, 1
    %v3135 = vsel %vm3089, %v3132, %v3134
    %v3136 = vrot.slane %v2839, 1
    %v3137 = vsel %vm3089, %v3134, %v3136
    %v3138 = vrot.slane %v2842, 1
    %v3139 = vsel %vm3089, %v3136, %v3138
    %v3140 = vrot.slane %v2844, 1
    %v3141 = vsel %vm3089, %v3138, %v3140
    %v3142 = vrot.slane %v2847, 1
    %v3143 = vsel %vm3089, %v3140, %v3142
    %v3144 = vrot.slane %v2849, 1
    %v3145 = vsel %vm3089, %v3142, %v3144
    %v3146 = vrot.slane %v2852, 1
    %v3147 = vsel %vm3089, %v3144, %v3146
    %v3148 = vrot.slane %v2854, 1
    %v3149 = vsel %vm3089, %v3146, %v3148
    %3150 = vrot.lane.b32.xlu0 %v3091, 96
    %v3151 = vpop.permute.xlu0 %3150
    %3152 = vrot.lane.b32.xlu0 %v3093, 96
    %v3153 = vpop.permute.xlu0 %3152
    %3154 = vrot.lane.b32.xlu0 %v3095, 96
    %v3155 = vpop.permute.xlu0 %3154
    %3156 = vrot.lane.b32.xlu0 %v3097, 96
    %v3157 = vpop.permute.xlu0 %3156
    %3158 = vrot.lane.b32.xlu0 %v3099, 96
    %v3159 = vpop.permute.xlu0 %3158
    %3160 = vrot.lane.b32.xlu0 %v3101, 96
    %v3161 = vpop.permute.xlu0 %3160
    %3162 = vrot.lane.b32.xlu0 %v3103, 96
    %v3163 = vpop.permute.xlu0 %3162
    %3164 = vrot.lane.b32.xlu0 %v3105, 96
    %v3165 = vpop.permute.xlu0 %3164
    %3166 = vrot.lane.b32.xlu0 %v3107, 96
    %v3167 = vpop.permute.xlu0 %3166
    %3168 = vrot.lane.b32.xlu0 %v3109, 96
    %v3169 = vpop.permute.xlu0 %3168
    %3170 = vrot.lane.b32.xlu0 %v3111, 96
    %v3171 = vpop.permute.xlu0 %3170
    %3172 = vrot.lane.b32.xlu0 %v3113, 96
    %v3173 = vpop.permute.xlu0 %3172
    %3174 = vrot.lane.b32.xlu0 %v3115, 96
    %v3175 = vpop.permute.xlu0 %3174
    %3176 = vrot.lane.b32.xlu0 %v3117, 96
    %v3177 = vpop.permute.xlu0 %3176
    %3178 = vrot.lane.b32.xlu0 %v3119, 96
    %v3179 = vpop.permute.xlu0 %3178
    %3180 = vrot.lane.b32.xlu0 %v3118, 96
    %v3181 = vpop.permute.xlu0 %3180
    %3182 = vrot.lane.b32.xlu0 %v3121, 96
    %v3183 = vpop.permute.xlu0 %3182
    %3184 = vrot.lane.b32.xlu0 %v3123, 96
    %v3185 = vpop.permute.xlu0 %3184
    %3186 = vrot.lane.b32.xlu0 %v3125, 96
    %v3187 = vpop.permute.xlu0 %3186
    %3188 = vrot.lane.b32.xlu0 %v3127, 96
    %v3189 = vpop.permute.xlu0 %3188
    %3190 = vrot.lane.b32.xlu0 %v3129, 96
    %v3191 = vpop.permute.xlu0 %3190
    %3192 = vrot.lane.b32.xlu0 %v3131, 96
    %v3193 = vpop.permute.xlu0 %3192
    %3194 = vrot.lane.b32.xlu0 %v3133, 96
    %v3195 = vpop.permute.xlu0 %3194
    %3196 = vrot.lane.b32.xlu0 %v3135, 96
    %v3197 = vpop.permute.xlu0 %3196
    %3198 = vrot.lane.b32.xlu0 %v3137, 96
    %v3199 = vpop.permute.xlu0 %3198
    %3200 = vrot.lane.b32.xlu0 %v3139, 96
    %v3201 = vpop.permute.xlu0 %3200
    %3202 = vrot.lane.b32.xlu0 %v3141, 96
    %v3203 = vpop.permute.xlu0 %3202
    %3204 = vrot.lane.b32.xlu0 %v3143, 96
    %v3205 = vpop.permute.xlu0 %3204
    %3206 = vrot.lane.b32.xlu0 %v3145, 96
    %v3207 = vpop.permute.xlu0 %3206
    %3208 = vrot.lane.b32.xlu0 %v3147, 96
    %v3209 = vpop.permute.xlu0 %3208
    %3210 = vrot.lane.b32.xlu0 %v3149, 96
    %v3211 = vpop.permute.xlu0 %3210
    %3212 = vrot.lane.b32.xlu0 %v3148, 96
    %v3213 = vpop.permute.xlu0 %3212
    %v3246 = vadd.f32 %v3057, %v3151
    %v3247 = vadd.f32 %v3058, %v3153
    %v3248 = vadd.f32 %v3059, %v3155
    %v3249 = vadd.f32 %v3060, %v3157
    %v3250 = vadd.f32 %v3061, %v3159
    %v3251 = vadd.f32 %v3062, %v3161
    %v3252 = vadd.f32 %v3063, %v3163
    %v3253 = vadd.f32 %v3064, %v3165
    %v3254 = vadd.f32 %v3065, %v3167
    %v3255 = vadd.f32 %v3066, %v3169
    %v3256 = vadd.f32 %v3067, %v3171
    %v3257 = vadd.f32 %v3068, %v3173
    %v3258 = vadd.f32 %v3069, %v3175
    %v3259 = vadd.f32 %v3070, %v3177
    %v3260 = vadd.f32 %v3071, %v3179
    %v3261 = vadd.f32 %v3072, %v3181
    %v3262 = vadd.f32 %v3073, %v3183
    %v3263 = vadd.f32 %v3074, %v3185
    %v3264 = vadd.f32 %v3075, %v3187
    %v3265 = vadd.f32 %v3076, %v3189
    %v3266 = vadd.f32 %v3077, %v3191
    %v3267 = vadd.f32 %v3078, %v3193
    %v3268 = vadd.f32 %v3079, %v3195
    %v3269 = vadd.f32 %v3080, %v3197
    %v3270 = vadd.f32 %v3081, %v3199
    %v3271 = vadd.f32 %v3082, %v3201
    %v3272 = vadd.f32 %v3083, %v3203
    %v3273 = vadd.f32 %v3084, %v3205
    %v3274 = vadd.f32 %v3085, %v3207
    %v3275 = vadd.f32 %v3086, %v3209
    %v3276 = vadd.f32 %v3087, %v3211
    %v3277 = vadd.f32 %v3088, %v3213
    %3278 = vrot.lane.b32.xlu0 %v2928, 32
    %v3279 = vpop.permute.xlu0 %3278
    %3280 = vrot.lane.b32.xlu0 %v2959, 32
    %v3281 = vpop.permute.xlu0 %3280
    %v3284 = vadd.f32 %v2814, %v3279
    %v3285 = vadd.f32 %v2854, %v3281
    %v3286 = vsel %vm2898, %v2866, %v3246
    %v3287 = vsel %vm2898, %v2867, %v3262
    %v3288 = vsel %vm3089, %v3261, %v3284
    %v3289 = vsel %vm3089, %v3277, %v3285
    %v3290 = vld [vmem:[#allocation5] sm:$0x1]
    %v3291 = vld [vmem:[#allocation5 + $0x1] sm:$0x1]
    %v3294 = vperm.slane %v3290, 0
    %v3295 = vperm.slane %v3291, 0
    %3296 = vrot.lane.b32.xlu0 %v3294, 32
    %v3297 = vpop.permute.xlu0 %3296
    %3298 = vrot.lane.b32.xlu0 %v3295, 32
    %v3299 = vpop.permute.xlu0 %3298
    %v3302 = vmul.f32 %v3286, %v3297
    %v3303 = vmul.f32 %v3247, %v3297
    %v3304 = vmul.f32 %v3248, %v3297
    %v3305 = vmul.f32 %v3249, %v3297
    %v3306 = vmul.f32 %v3250, %v3297
    %v3307 = vmul.f32 %v3251, %v3297
    %v3308 = vmul.f32 %v3252, %v3297
    %v3309 = vmul.f32 %v3253, %v3297
    %v3310 = vmul.f32 %v3254, %v3297
    %v3311 = vmul.f32 %v3255, %v3297
    %v3312 = vmul.f32 %v3256, %v3297
    %v3313 = vmul.f32 %v3257, %v3297
    %v3314 = vmul.f32 %v3258, %v3297
    %v3315 = vmul.f32 %v3259, %v3297
    %v3316 = vmul.f32 %v3260, %v3297
    %v3317 = vmul.f32 %v3288, %v3297
    %v3318 = vmul.f32 %v3287, %v3299
    %v3319 = vmul.f32 %v3263, %v3299
    %v3320 = vmul.f32 %v3264, %v3299
    %v3321 = vmul.f32 %v3265, %v3299
    %v3322 = vmul.f32 %v3266, %v3299
    %v3323 = vmul.f32 %v3267, %v3299
    %v3324 = vmul.f32 %v3268, %v3299
    %v3325 = vmul.f32 %v3269, %v3299
    %v3326 = vmul.f32 %v3270, %v3299
    %v3327 = vmul.f32 %v3271, %v3299
    %v3328 = vmul.f32 %v3272, %v3299
    %v3329 = vmul.f32 %v3273, %v3299
    %v3330 = vmul.f32 %v3274, %v3299
    %v3331 = vmul.f32 %v3275, %v3299
    %v3332 = vmul.f32 %v3276, %v3299
    %v3333 = vmul.f32 %v3289, %v3299
    %v3334 = vxor.u32 %v3302, 2147483648
    %v3335 = vxor.u32 %v3303, 2147483648
    %v3336 = vxor.u32 %v3304, 2147483648
    %v3337 = vxor.u32 %v3305, 2147483648
    %v3338 = vxor.u32 %v3306, 2147483648
    %v3339 = vxor.u32 %v3307, 2147483648
    %v3340 = vxor.u32 %v3308, 2147483648
    %v3341 = vxor.u32 %v3309, 2147483648
    %v3342 = vxor.u32 %v3310, 2147483648
    %v3343 = vxor.u32 %v3311, 2147483648
    %v3344 = vxor.u32 %v3312, 2147483648
    %v3345 = vxor.u32 %v3313, 2147483648
    %v3346 = vxor.u32 %v3314, 2147483648
    %v3347 = vxor.u32 %v3315, 2147483648
    %v3348 = vxor.u32 %v3316, 2147483648
    %v3349 = vxor.u32 %v3317, 2147483648
    %v3350 = vxor.u32 %v3318, 2147483648
    %v3351 = vxor.u32 %v3319, 2147483648
    %v3352 = vxor.u32 %v3320, 2147483648
    %v3353 = vxor.u32 %v3321, 2147483648
    %v3354 = vxor.u32 %v3322, 2147483648
    %v3355 = vxor.u32 %v3323, 2147483648
    %v3356 = vxor.u32 %v3324, 2147483648
    %v3357 = vxor.u32 %v3325, 2147483648
    %v3358 = vxor.u32 %v3326, 2147483648
    %v3359 = vxor.u32 %v3327, 2147483648
    %v3360 = vxor.u32 %v3328, 2147483648
    %v3361 = vxor.u32 %v3329, 2147483648
    %v3362 = vxor.u32 %v3330, 2147483648
    %v3363 = vxor.u32 %v3331, 2147483648
    %v3364 = vxor.u32 %v3332, 2147483648
    %v3365 = vxor.u32 %v3333, 2147483648
    %v3366 = vmul.f32 %v3334, 1.442695
    %v3367 = vpow.pop %v3366
    %v3368 = vmul.f32 %v3335, 1.442695
    %v3369 = vpow.pop %v3368
    %v3370 = vmul.f32 %v3336, 1.442695
    %v3371 = vpow.pop %v3370
    %v3372 = vmul.f32 %v3337, 1.442695
    %v3373 = vpow.pop %v3372
    %v3374 = vmul.f32 %v3338, 1.442695
    %v3375 = vpow.pop %v3374
    %v3376 = vmul.f32 %v3339, 1.442695
    %v3377 = vpow.pop %v3376
    %v3378 = vmul.f32 %v3340, 1.442695
    %v3379 = vpow.pop %v3378
    %v3380 = vmul.f32 %v3341, 1.442695
    %v3381 = vpow.pop %v3380
    %v3382 = vmul.f32 %v3342, 1.442695
    %v3383 = vpow.pop %v3382
    %v3384 = vmul.f32 %v3343, 1.442695
    %v3385 = vpow.pop %v3384
    %v3386 = vmul.f32 %v3344, 1.442695
    %v3387 = vpow.pop %v3386
    %v3388 = vmul.f32 %v3345, 1.442695
    %v3389 = vpow.pop %v3388
    %v3390 = vmul.f32 %v3346, 1.442695
    %v3391 = vpow.pop %v3390
    %v3392 = vmul.f32 %v3347, 1.442695
    %v3393 = vpow.pop %v3392
    %v3394 = vmul.f32 %v3348, 1.442695
    %v3395 = vpow.pop %v3394
    %v3396 = vmul.f32 %v3349, 1.442695
    %v3397 = vpow.pop %v3396
    %v3398 = vmul.f32 %v3350, 1.442695
    %v3399 = vpow.pop %v3398
    %v3400 = vmul.f32 %v3351, 1.442695
    %v3401 = vpow.pop %v3400
    %v3402 = vmul.f32 %v3352, 1.442695
    %v3403 = vpow.pop %v3402
    %v3404 = vmul.f32 %v3353, 1.442695
    %v3405 = vpow.pop %v3404
    %v3406 = vmul.f32 %v3354, 1.442695
    %v3407 = vpow.pop %v3406
    %v3408 = vmul.f32 %v3355, 1.442695
    %v3409 = vpow.pop %v3408
    %v3410 = vmul.f32 %v3356, 1.442695
    %v3411 = vpow.pop %v3410
    %v3412 = vmul.f32 %v3357, 1.442695
    %v3413 = vpow.pop %v3412
    %v3414 = vmul.f32 %v3358, 1.442695
    %v3415 = vpow.pop %v3414
    %v3416 = vmul.f32 %v3359, 1.442695
    %v3417 = vpow.pop %v3416
    %v3418 = vmul.f32 %v3360, 1.442695
    %v3419 = vpow.pop %v3418
    %v3420 = vmul.f32 %v3361, 1.442695
    %v3421 = vpow.pop %v3420
    %v3422 = vmul.f32 %v3362, 1.442695
    %v3423 = vpow.pop %v3422
    %v3424 = vmul.f32 %v3363, 1.442695
    %v3425 = vpow.pop %v3424
    %v3426 = vmul.f32 %v3364, 1.442695
    %v3427 = vpow.pop %v3426
    %v3428 = vmul.f32 %v3365, 1.442695
    %v3429 = vpow.pop %v3428
    %v3430 = vadd.f32 %v3367, 1.0
    %v3431 = vadd.f32 %v3369, 1.0
    %v3432 = vadd.f32 %v3371, 1.0
    %v3433 = vadd.f32 %v3373, 1.0
    %v3434 = vadd.f32 %v3375, 1.0
    %v3435 = vadd.f32 %v3377, 1.0
    %v3436 = vadd.f32 %v3379, 1.0
    %v3437 = vadd.f32 %v3381, 1.0
    %v3438 = vadd.f32 %v3383, 1.0
    %v3439 = vadd.f32 %v3385, 1.0
    %v3440 = vadd.f32 %v3387, 1.0
    %v3441 = vadd.f32 %v3389, 1.0
    %v3442 = vadd.f32 %v3391, 1.0
    %v3443 = vadd.f32 %v3393, 1.0
    %v3444 = vadd.f32 %v3395, 1.0
    %v3445 = vadd.f32 %v3397, 1.0
    %v3446 = vadd.f32 %v3399, 1.0
    %v3447 = vadd.f32 %v3401, 1.0
    %v3448 = vadd.f32 %v3403, 1.0
    %v3449 = vadd.f32 %v3405, 1.0
    %v3450 = vadd.f32 %v3407, 1.0
    %v3451 = vadd.f32 %v3409, 1.0
    %v3452 = vadd.f32 %v3411, 1.0
    %v3453 = vadd.f32 %v3413, 1.0
    %v3454 = vadd.f32 %v3415, 1.0
    %v3455 = vadd.f32 %v3417, 1.0
    %v3456 = vadd.f32 %v3419, 1.0
    %v3457 = vadd.f32 %v3421, 1.0
    %v3458 = vadd.f32 %v3423, 1.0
    %v3459 = vadd.f32 %v3425, 1.0
    %v3460 = vadd.f32 %v3427, 1.0
    %v3461 = vadd.f32 %v3429, 1.0
    %v3462 = vrcp.pop %v3430
    %v3463 = vmul.f32 %v3430, %v3462
    %v3464 = vsub.f32 1.0, %v3463
    %v3465 = vmul.f32 %v3462, %v3464
    %v3466 = vadd.f32 %v3462, %v3465
    %vm3467 = vweird.f32 %v3430
    %vm3468 = vweird.f32 %v3462
    %vm3469 = vmor %vm3467, %vm3468
    %v3470 = vsel %vm3469, %v3462, %v3466
    %v3471 = vand.u32 2147483647, %v3430
    %vm3472 = vcmp.eq.f32.partialorder %v3471, 8.507059e+37
    %v3473 = vand.u32 %v3430, 2147483648
    %v3474 = vor.u32 1.1754944e-38, %v3473
    %v3475 = vsel %vm3472, %v3474, %v3470
    %v3476 = vmul.f32 1.0, %v3475
    %v3477 = vrcp.pop %v3431
    %v3478 = vmul.f32 %v3431, %v3477
    %v3479 = vsub.f32 1.0, %v3478
    %v3480 = vmul.f32 %v3477, %v3479
    %v3481 = vadd.f32 %v3477, %v3480
    %vm3482 = vweird.f32 %v3431
    %vm3483 = vweird.f32 %v3477
    %vm3484 = vmor %vm3482, %vm3483
    %v3485 = vsel %vm3484, %v3477, %v3481
    %v3486 = vand.u32 2147483647, %v3431
    %vm3487 = vcmp.eq.f32.partialorder %v3486, 8.507059e+37
    %v3488 = vand.u32 %v3431, 2147483648
    %v3489 = vor.u32 1.1754944e-38, %v3488
    %v3490 = vsel %vm3487, %v3489, %v3485
    %v3491 = vmul.f32 1.0, %v3490
    %v3492 = vrcp.pop %v3432
    %v3493 = vmul.f32 %v3432, %v3492
    %v3494 = vsub.f32 1.0, %v3493
    %v3495 = vmul.f32 %v3492, %v3494
    %v3496 = vadd.f32 %v3492, %v3495
    %vm3497 = vweird.f32 %v3432
    %vm3498 = vweird.f32 %v3492
    %vm3499 = vmor %vm3497, %vm3498
    %v3500 = vsel %vm3499, %v3492, %v3496
    %v3501 = vand.u32 2147483647, %v3432
    %vm3502 = vcmp.eq.f32.partialorder %v3501, 8.507059e+37
    %v3503 = vand.u32 %v3432, 2147483648
    %v3504 = vor.u32 1.1754944e-38, %v3503
    %v3505 = vsel %vm3502, %v3504, %v3500
    %v3506 = vmul.f32 1.0, %v3505
    %v3507 = vrcp.pop %v3433
    %v3508 = vmul.f32 %v3433, %v3507
    %v3509 = vsub.f32 1.0, %v3508
    %v3510 = vmul.f32 %v3507, %v3509
    %v3511 = vadd.f32 %v3507, %v3510
    %vm3512 = vweird.f32 %v3433
    %vm3513 = vweird.f32 %v3507
    %vm3514 = vmor %vm3512, %vm3513
    %v3515 = vsel %vm3514, %v3507, %v3511
    %v3516 = vand.u32 2147483647, %v3433
    %vm3517 = vcmp.eq.f32.partialorder %v3516, 8.507059e+37
    %v3518 = vand.u32 %v3433, 2147483648
    %v3519 = vor.u32 1.1754944e-38, %v3518
    %v3520 = vsel %vm3517, %v3519, %v3515
    %v3521 = vmul.f32 1.0, %v3520
    %v3522 = vrcp.pop %v3434
    %v3523 = vmul.f32 %v3434, %v3522
    %v3524 = vsub.f32 1.0, %v3523
    %v3525 = vmul.f32 %v3522, %v3524
    %v3526 = vadd.f32 %v3522, %v3525
    %vm3527 = vweird.f32 %v3434
    %vm3528 = vweird.f32 %v3522
    %vm3529 = vmor %vm3527, %vm3528
    %v3530 = vsel %vm3529, %v3522, %v3526
    %v3531 = vand.u32 2147483647, %v3434
    %vm3532 = vcmp.eq.f32.partialorder %v3531, 8.507059e+37
    %v3533 = vand.u32 %v3434, 2147483648
    %v3534 = vor.u32 1.1754944e-38, %v3533
    %v3535 = vsel %vm3532, %v3534, %v3530
    %v3536 = vmul.f32 1.0, %v3535
    %v3537 = vrcp.pop %v3435
    %v3538 = vmul.f32 %v3435, %v3537
    %v3539 = vsub.f32 1.0, %v3538
    %v3540 = vmul.f32 %v3537, %v3539
    %v3541 = vadd.f32 %v3537, %v3540
    %vm3542 = vweird.f32 %v3435
    %vm3543 = vweird.f32 %v3537
    %vm3544 = vmor %vm3542, %vm3543
    %v3545 = vsel %vm3544, %v3537, %v3541
    %v3546 = vand.u32 2147483647, %v3435
    %vm3547 = vcmp.eq.f32.partialorder %v3546, 8.507059e+37
    %v3548 = vand.u32 %v3435, 2147483648
    %v3549 = vor.u32 1.1754944e-38, %v3548
    %v3550 = vsel %vm3547, %v3549, %v3545
    %v3551 = vmul.f32 1.0, %v3550
    %v3552 = vrcp.pop %v3436
    %v3553 = vmul.f32 %v3436, %v3552
    %v3554 = vsub.f32 1.0, %v3553
    %v3555 = vmul.f32 %v3552, %v3554
    %v3556 = vadd.f32 %v3552, %v3555
    %vm3557 = vweird.f32 %v3436
    %vm3558 = vweird.f32 %v3552
    %vm3559 = vmor %vm3557, %vm3558
    %v3560 = vsel %vm3559, %v3552, %v3556
    %v3561 = vand.u32 2147483647, %v3436
    %vm3562 = vcmp.eq.f32.partialorder %v3561, 8.507059e+37
    %v3563 = vand.u32 %v3436, 2147483648
    %v3564 = vor.u32 1.1754944e-38, %v3563
    %v3565 = vsel %vm3562, %v3564, %v3560
    %v3566 = vmul.f32 1.0, %v3565
    %v3567 = vrcp.pop %v3437
    %v3568 = vmul.f32 %v3437, %v3567
    %v3569 = vsub.f32 1.0, %v3568
    %v3570 = vmul.f32 %v3567, %v3569
    %v3571 = vadd.f32 %v3567, %v3570
    %vm3572 = vweird.f32 %v3437
    %vm3573 = vweird.f32 %v3567
    %vm3574 = vmor %vm3572, %vm3573
    %v3575 = vsel %vm3574, %v3567, %v3571
    %v3576 = vand.u32 2147483647, %v3437
    %vm3577 = vcmp.eq.f32.partialorder %v3576, 8.507059e+37
    %v3578 = vand.u32 %v3437, 2147483648
    %v3579 = vor.u32 1.1754944e-38, %v3578
    %v3580 = vsel %vm3577, %v3579, %v3575
    %v3581 = vmul.f32 1.0, %v3580
    %v3582 = vrcp.pop %v3438
    %v3583 = vmul.f32 %v3438, %v3582
    %v3584 = vsub.f32 1.0, %v3583
    %v3585 = vmul.f32 %v3582, %v3584
    %v3586 = vadd.f32 %v3582, %v3585
    %vm3587 = vweird.f32 %v3438
    %vm3588 = vweird.f32 %v3582
    %vm3589 = vmor %vm3587, %vm3588
    %v3590 = vsel %vm3589, %v3582, %v3586
    %v3591 = vand.u32 2147483647, %v3438
    %vm3592 = vcmp.eq.f32.partialorder %v3591, 8.507059e+37
    %v3593 = vand.u32 %v3438, 2147483648
    %v3594 = vor.u32 1.1754944e-38, %v3593
    %v3595 = vsel %vm3592, %v3594, %v3590
    %v3596 = vmul.f32 1.0, %v3595
    %v3597 = vrcp.pop %v3439
    %v3598 = vmul.f32 %v3439, %v3597
    %v3599 = vsub.f32 1.0, %v3598
    %v3600 = vmul.f32 %v3597, %v3599
    %v3601 = vadd.f32 %v3597, %v3600
    %vm3602 = vweird.f32 %v3439
    %vm3603 = vweird.f32 %v3597
    %vm3604 = vmor %vm3602, %vm3603
    %v3605 = vsel %vm3604, %v3597, %v3601
    %v3606 = vand.u32 2147483647, %v3439
    %vm3607 = vcmp.eq.f32.partialorder %v3606, 8.507059e+37
    %v3608 = vand.u32 %v3439, 2147483648
    %v3609 = vor.u32 1.1754944e-38, %v3608
    %v3610 = vsel %vm3607, %v3609, %v3605
    %v3611 = vmul.f32 1.0, %v3610
    %v3612 = vrcp.pop %v3440
    %v3613 = vmul.f32 %v3440, %v3612
    %v3614 = vsub.f32 1.0, %v3613
    %v3615 = vmul.f32 %v3612, %v3614
    %v3616 = vadd.f32 %v3612, %v3615
    %vm3617 = vweird.f32 %v3440
    %vm3618 = vweird.f32 %v3612
    %vm3619 = vmor %vm3617, %vm3618
    %v3620 = vsel %vm3619, %v3612, %v3616
    %v3621 = vand.u32 2147483647, %v3440
    %vm3622 = vcmp.eq.f32.partialorder %v3621, 8.507059e+37
    %v3623 = vand.u32 %v3440, 2147483648
    %v3624 = vor.u32 1.1754944e-38, %v3623
    %v3625 = vsel %vm3622, %v3624, %v3620
    %v3626 = vmul.f32 1.0, %v3625
    %v3627 = vrcp.pop %v3441
    %v3628 = vmul.f32 %v3441, %v3627
    %v3629 = vsub.f32 1.0, %v3628
    %v3630 = vmul.f32 %v3627, %v3629
    %v3631 = vadd.f32 %v3627, %v3630
    %vm3632 = vweird.f32 %v3441
    %vm3633 = vweird.f32 %v3627
    %vm3634 = vmor %vm3632, %vm3633
    %v3635 = vsel %vm3634, %v3627, %v3631
    %v3636 = vand.u32 2147483647, %v3441
    %vm3637 = vcmp.eq.f32.partialorder %v3636, 8.507059e+37
    %v3638 = vand.u32 %v3441, 2147483648
    %v3639 = vor.u32 1.1754944e-38, %v3638
    %v3640 = vsel %vm3637, %v3639, %v3635
    %v3641 = vmul.f32 1.0, %v3640
    %v3642 = vrcp.pop %v3442
    %v3643 = vmul.f32 %v3442, %v3642
    %v3644 = vsub.f32 1.0, %v3643
    %v3645 = vmul.f32 %v3642, %v3644
    %v3646 = vadd.f32 %v3642, %v3645
    %vm3647 = vweird.f32 %v3442
    %vm3648 = vweird.f32 %v3642
    %vm3649 = vmor %vm3647, %vm3648
    %v3650 = vsel %vm3649, %v3642, %v3646
    %v3651 = vand.u32 2147483647, %v3442
    %vm3652 = vcmp.eq.f32.partialorder %v3651, 8.507059e+37
    %v3653 = vand.u32 %v3442, 2147483648
    %v3654 = vor.u32 1.1754944e-38, %v3653
    %v3655 = vsel %vm3652, %v3654, %v3650
    %v3656 = vmul.f32 1.0, %v3655
    %v3657 = vrcp.pop %v3443
    %v3658 = vmul.f32 %v3443, %v3657
    %v3659 = vsub.f32 1.0, %v3658
    %v3660 = vmul.f32 %v3657, %v3659
    %v3661 = vadd.f32 %v3657, %v3660
    %vm3662 = vweird.f32 %v3443
    %vm3663 = vweird.f32 %v3657
    %vm3664 = vmor %vm3662, %vm3663
    %v3665 = vsel %vm3664, %v3657, %v3661
    %v3666 = vand.u32 2147483647, %v3443
    %vm3667 = vcmp.eq.f32.partialorder %v3666, 8.507059e+37
    %v3668 = vand.u32 %v3443, 2147483648
    %v3669 = vor.u32 1.1754944e-38, %v3668
    %v3670 = vsel %vm3667, %v3669, %v3665
    %v3671 = vmul.f32 1.0, %v3670
    %v3672 = vrcp.pop %v3444
    %v3673 = vmul.f32 %v3444, %v3672
    %v3674 = vsub.f32 1.0, %v3673
    %v3675 = vmul.f32 %v3672, %v3674
    %v3676 = vadd.f32 %v3672, %v3675
    %vm3677 = vweird.f32 %v3444
    %vm3678 = vweird.f32 %v3672
    %vm3679 = vmor %vm3677, %vm3678
    %v3680 = vsel %vm3679, %v3672, %v3676
    %v3681 = vand.u32 2147483647, %v3444
    %vm3682 = vcmp.eq.f32.partialorder %v3681, 8.507059e+37
    %v3683 = vand.u32 %v3444, 2147483648
    %v3684 = vor.u32 1.1754944e-38, %v3683
    %v3685 = vsel %vm3682, %v3684, %v3680
    %v3686 = vmul.f32 1.0, %v3685
    %v3687 = vrcp.pop %v3445
    %v3688 = vmul.f32 %v3445, %v3687
    %v3689 = vsub.f32 1.0, %v3688
    %v3690 = vmul.f32 %v3687, %v3689
    %v3691 = vadd.f32 %v3687, %v3690
    %vm3692 = vweird.f32 %v3445
    %vm3693 = vweird.f32 %v3687
    %vm3694 = vmor %vm3692, %vm3693
    %v3695 = vsel %vm3694, %v3687, %v3691
    %v3696 = vand.u32 2147483647, %v3445
    %vm3697 = vcmp.eq.f32.partialorder %v3696, 8.507059e+37
    %v3698 = vand.u32 %v3445, 2147483648
    %v3699 = vor.u32 1.1754944e-38, %v3698
    %v3700 = vsel %vm3697, %v3699, %v3695
    %v3701 = vmul.f32 1.0, %v3700
    %v3702 = vrcp.pop %v3446
    %v3703 = vmul.f32 %v3446, %v3702
    %v3704 = vsub.f32 1.0, %v3703
    %v3705 = vmul.f32 %v3702, %v3704
    %v3706 = vadd.f32 %v3702, %v3705
    %vm3707 = vweird.f32 %v3446
    %vm3708 = vweird.f32 %v3702
    %vm3709 = vmor %vm3707, %vm3708
    %v3710 = vsel %vm3709, %v3702, %v3706
    %v3711 = vand.u32 2147483647, %v3446
    %vm3712 = vcmp.eq.f32.partialorder %v3711, 8.507059e+37
    %v3713 = vand.u32 %v3446, 2147483648
    %v3714 = vor.u32 1.1754944e-38, %v3713
    %v3715 = vsel %vm3712, %v3714, %v3710
    %v3716 = vmul.f32 1.0, %v3715
    %v3717 = vrcp.pop %v3447
    %v3718 = vmul.f32 %v3447, %v3717
    %v3719 = vsub.f32 1.0, %v3718
    %v3720 = vmul.f32 %v3717, %v3719
    %v3721 = vadd.f32 %v3717, %v3720
    %vm3722 = vweird.f32 %v3447
    %vm3723 = vweird.f32 %v3717
    %vm3724 = vmor %vm3722, %vm3723
    %v3725 = vsel %vm3724, %v3717, %v3721
    %v3726 = vand.u32 2147483647, %v3447
    %vm3727 = vcmp.eq.f32.partialorder %v3726, 8.507059e+37
    %v3728 = vand.u32 %v3447, 2147483648
    %v3729 = vor.u32 1.1754944e-38, %v3728
    %v3730 = vsel %vm3727, %v3729, %v3725
    %v3731 = vmul.f32 1.0, %v3730
    %v3732 = vrcp.pop %v3448
    %v3733 = vmul.f32 %v3448, %v3732
    %v3734 = vsub.f32 1.0, %v3733
    %v3735 = vmul.f32 %v3732, %v3734
    %v3736 = vadd.f32 %v3732, %v3735
    %vm3737 = vweird.f32 %v3448
    %vm3738 = vweird.f32 %v3732
    %vm3739 = vmor %vm3737, %vm3738
    %v3740 = vsel %vm3739, %v3732, %v3736
    %v3741 = vand.u32 2147483647, %v3448
    %vm3742 = vcmp.eq.f32.partialorder %v3741, 8.507059e+37
    %v3743 = vand.u32 %v3448, 2147483648
    %v3744 = vor.u32 1.1754944e-38, %v3743
    %v3745 = vsel %vm3742, %v3744, %v3740
    %v3746 = vmul.f32 1.0, %v3745
    %v3747 = vrcp.pop %v3449
    %v3748 = vmul.f32 %v3449, %v3747
    %v3749 = vsub.f32 1.0, %v3748
    %v3750 = vmul.f32 %v3747, %v3749
    %v3751 = vadd.f32 %v3747, %v3750
    %vm3752 = vweird.f32 %v3449
    %vm3753 = vweird.f32 %v3747
    %vm3754 = vmor %vm3752, %vm3753
    %v3755 = vsel %vm3754, %v3747, %v3751
    %v3756 = vand.u32 2147483647, %v3449
    %vm3757 = vcmp.eq.f32.partialorder %v3756, 8.507059e+37
    %v3758 = vand.u32 %v3449, 2147483648
    %v3759 = vor.u32 1.1754944e-38, %v3758
    %v3760 = vsel %vm3757, %v3759, %v3755
    %v3761 = vmul.f32 1.0, %v3760
    %v3762 = vrcp.pop %v3450
    %v3763 = vmul.f32 %v3450, %v3762
    %v3764 = vsub.f32 1.0, %v3763
    %v3765 = vmul.f32 %v3762, %v3764
    %v3766 = vadd.f32 %v3762, %v3765
    %vm3767 = vweird.f32 %v3450
    %vm3768 = vweird.f32 %v3762
    %vm3769 = vmor %vm3767, %vm3768
    %v3770 = vsel %vm3769, %v3762, %v3766
    %v3771 = vand.u32 2147483647, %v3450
    %vm3772 = vcmp.eq.f32.partialorder %v3771, 8.507059e+37
    %v3773 = vand.u32 %v3450, 2147483648
    %v3774 = vor.u32 1.1754944e-38, %v3773
    %v3775 = vsel %vm3772, %v3774, %v3770
    %v3776 = vmul.f32 1.0, %v3775
    %v3777 = vrcp.pop %v3451
    %v3778 = vmul.f32 %v3451, %v3777
    %v3779 = vsub.f32 1.0, %v3778
    %v3780 = vmul.f32 %v3777, %v3779
    %v3781 = vadd.f32 %v3777, %v3780
    %vm3782 = vweird.f32 %v3451
    %vm3783 = vweird.f32 %v3777
    %vm3784 = vmor %vm3782, %vm3783
    %v3785 = vsel %vm3784, %v3777, %v3781
    %v3786 = vand.u32 2147483647, %v3451
    %vm3787 = vcmp.eq.f32.partialorder %v3786, 8.507059e+37
    %v3788 = vand.u32 %v3451, 2147483648
    %v3789 = vor.u32 1.1754944e-38, %v3788
    %v3790 = vsel %vm3787, %v3789, %v3785
    %v3791 = vmul.f32 1.0, %v3790
    %v3792 = vrcp.pop %v3452
    %v3793 = vmul.f32 %v3452, %v3792
    %v3794 = vsub.f32 1.0, %v3793
    %v3795 = vmul.f32 %v3792, %v3794
    %v3796 = vadd.f32 %v3792, %v3795
    %vm3797 = vweird.f32 %v3452
    %vm3798 = vweird.f32 %v3792
    %vm3799 = vmor %vm3797, %vm3798
    %v3800 = vsel %vm3799, %v3792, %v3796
    %v3801 = vand.u32 2147483647, %v3452
    %vm3802 = vcmp.eq.f32.partialorder %v3801, 8.507059e+37
    %v3803 = vand.u32 %v3452, 2147483648
    %v3804 = vor.u32 1.1754944e-38, %v3803
    %v3805 = vsel %vm3802, %v3804, %v3800
    %v3806 = vmul.f32 1.0, %v3805
    %v3807 = vrcp.pop %v3453
    %v3808 = vmul.f32 %v3453, %v3807
    %v3809 = vsub.f32 1.0, %v3808
    %v3810 = vmul.f32 %v3807, %v3809
    %v3811 = vadd.f32 %v3807, %v3810
    %vm3812 = vweird.f32 %v3453
    %vm3813 = vweird.f32 %v3807
    %vm3814 = vmor %vm3812, %vm3813
    %v3815 = vsel %vm3814, %v3807, %v3811
    %v3816 = vand.u32 2147483647, %v3453
    %vm3817 = vcmp.eq.f32.partialorder %v3816, 8.507059e+37
    %v3818 = vand.u32 %v3453, 2147483648
    %v3819 = vor.u32 1.1754944e-38, %v3818
    %v3820 = vsel %vm3817, %v3819, %v3815
    %v3821 = vmul.f32 1.0, %v3820
    %v3822 = vrcp.pop %v3454
    %v3823 = vmul.f32 %v3454, %v3822
    %v3824 = vsub.f32 1.0, %v3823
    %v3825 = vmul.f32 %v3822, %v3824
    %v3826 = vadd.f32 %v3822, %v3825
    %vm3827 = vweird.f32 %v3454
    %vm3828 = vweird.f32 %v3822
    %vm3829 = vmor %vm3827, %vm3828
    %v3830 = vsel %vm3829, %v3822, %v3826
    %v3831 = vand.u32 2147483647, %v3454
    %vm3832 = vcmp.eq.f32.partialorder %v3831, 8.507059e+37
    %v3833 = vand.u32 %v3454, 2147483648
    %v3834 = vor.u32 1.1754944e-38, %v3833
    %v3835 = vsel %vm3832, %v3834, %v3830
    %v3836 = vmul.f32 1.0, %v3835
    %v3837 = vrcp.pop %v3455
    %v3838 = vmul.f32 %v3455, %v3837
    %v3839 = vsub.f32 1.0, %v3838
    %v3840 = vmul.f32 %v3837, %v3839
    %v3841 = vadd.f32 %v3837, %v3840
    %vm3842 = vweird.f32 %v3455
    %vm3843 = vweird.f32 %v3837
    %vm3844 = vmor %vm3842, %vm3843
    %v3845 = vsel %vm3844, %v3837, %v3841
    %v3846 = vand.u32 2147483647, %v3455
    %vm3847 = vcmp.eq.f32.partialorder %v3846, 8.507059e+37
    %v3848 = vand.u32 %v3455, 2147483648
    %v3849 = vor.u32 1.1754944e-38, %v3848
    %v3850 = vsel %vm3847, %v3849, %v3845
    %v3851 = vmul.f32 1.0, %v3850
    %v3852 = vrcp.pop %v3456
    %v3853 = vmul.f32 %v3456, %v3852
    %v3854 = vsub.f32 1.0, %v3853
    %v3855 = vmul.f32 %v3852, %v3854
    %v3856 = vadd.f32 %v3852, %v3855
    %vm3857 = vweird.f32 %v3456
    %vm3858 = vweird.f32 %v3852
    %vm3859 = vmor %vm3857, %vm3858
    %v3860 = vsel %vm3859, %v3852, %v3856
    %v3861 = vand.u32 2147483647, %v3456
    %vm3862 = vcmp.eq.f32.partialorder %v3861, 8.507059e+37
    %v3863 = vand.u32 %v3456, 2147483648
    %v3864 = vor.u32 1.1754944e-38, %v3863
    %v3865 = vsel %vm3862, %v3864, %v3860
    %v3866 = vmul.f32 1.0, %v3865
    %v3867 = vrcp.pop %v3457
    %v3868 = vmul.f32 %v3457, %v3867
    %v3869 = vsub.f32 1.0, %v3868
    %v3870 = vmul.f32 %v3867, %v3869
    %v3871 = vadd.f32 %v3867, %v3870
    %vm3872 = vweird.f32 %v3457
    %vm3873 = vweird.f32 %v3867
    %vm3874 = vmor %vm3872, %vm3873
    %v3875 = vsel %vm3874, %v3867, %v3871
    %v3876 = vand.u32 2147483647, %v3457
    %vm3877 = vcmp.eq.f32.partialorder %v3876, 8.507059e+37
    %v3878 = vand.u32 %v3457, 2147483648
    %v3879 = vor.u32 1.1754944e-38, %v3878
    %v3880 = vsel %vm3877, %v3879, %v3875
    %v3881 = vmul.f32 1.0, %v3880
    %v3882 = vrcp.pop %v3458
    %v3883 = vmul.f32 %v3458, %v3882
    %v3884 = vsub.f32 1.0, %v3883
    %v3885 = vmul.f32 %v3882, %v3884
    %v3886 = vadd.f32 %v3882, %v3885
    %vm3887 = vweird.f32 %v3458
    %vm3888 = vweird.f32 %v3882
    %vm3889 = vmor %vm3887, %vm3888
    %v3890 = vsel %vm3889, %v3882, %v3886
    %v3891 = vand.u32 2147483647, %v3458
    %vm3892 = vcmp.eq.f32.partialorder %v3891, 8.507059e+37
    %v3893 = vand.u32 %v3458, 2147483648
    %v3894 = vor.u32 1.1754944e-38, %v3893
    %v3895 = vsel %vm3892, %v3894, %v3890
    %v3896 = vmul.f32 1.0, %v3895
    %v3897 = vrcp.pop %v3459
    %v3898 = vmul.f32 %v3459, %v3897
    %v3899 = vsub.f32 1.0, %v3898
    %v3900 = vmul.f32 %v3897, %v3899
    %v3901 = vadd.f32 %v3897, %v3900
    %vm3902 = vweird.f32 %v3459
    %vm3903 = vweird.f32 %v3897
    %vm3904 = vmor %vm3902, %vm3903
    %v3905 = vsel %vm3904, %v3897, %v3901
    %v3906 = vand.u32 2147483647, %v3459
    %vm3907 = vcmp.eq.f32.partialorder %v3906, 8.507059e+37
    %v3908 = vand.u32 %v3459, 2147483648
    %v3909 = vor.u32 1.1754944e-38, %v3908
    %v3910 = vsel %vm3907, %v3909, %v3905
    %v3911 = vmul.f32 1.0, %v3910
    %v3912 = vrcp.pop %v3460
    %v3913 = vmul.f32 %v3460, %v3912
    %v3914 = vsub.f32 1.0, %v3913
    %v3915 = vmul.f32 %v3912, %v3914
    %v3916 = vadd.f32 %v3912, %v3915
    %vm3917 = vweird.f32 %v3460
    %vm3918 = vweird.f32 %v3912
    %vm3919 = vmor %vm3917, %vm3918
    %v3920 = vsel %vm3919, %v3912, %v3916
    %v3921 = vand.u32 2147483647, %v3460
    %vm3922 = vcmp.eq.f32.partialorder %v3921, 8.507059e+37
    %v3923 = vand.u32 %v3460, 2147483648
    %v3924 = vor.u32 1.1754944e-38, %v3923
    %v3925 = vsel %vm3922, %v3924, %v3920
    %v3926 = vmul.f32 1.0, %v3925
    %v3927 = vrcp.pop %v3461
    %v3928 = vmul.f32 %v3461, %v3927
    %v3929 = vsub.f32 1.0, %v3928
    %v3930 = vmul.f32 %v3927, %v3929
    %v3931 = vadd.f32 %v3927, %v3930
    %vm3932 = vweird.f32 %v3461
    %vm3933 = vweird.f32 %v3927
    %vm3934 = vmor %vm3932, %vm3933
    %v3935 = vsel %vm3934, %v3927, %v3931
    %v3936 = vand.u32 2147483647, %v3461
    %vm3937 = vcmp.eq.f32.partialorder %v3936, 8.507059e+37
    %v3938 = vand.u32 %v3461, 2147483648
    %v3939 = vor.u32 1.1754944e-38, %v3938
    %v3940 = vsel %vm3937, %v3939, %v3935
    %v3941 = vmul.f32 1.0, %v3940
    %v3942 = vmul.f32 %v3302, %v3476
    %v3943 = vmul.f32 %v3303, %v3491
    %v3944 = vmul.f32 %v3304, %v3506
    %v3945 = vmul.f32 %v3305, %v3521
    %v3946 = vmul.f32 %v3306, %v3536
    %v3947 = vmul.f32 %v3307, %v3551
    %v3948 = vmul.f32 %v3308, %v3566
    %v3949 = vmul.f32 %v3309, %v3581
    %v3950 = vmul.f32 %v3310, %v3596
    %v3951 = vmul.f32 %v3311, %v3611
    %v3952 = vmul.f32 %v3312, %v3626
    %v3953 = vmul.f32 %v3313, %v3641
    %v3954 = vmul.f32 %v3314, %v3656
    %v3955 = vmul.f32 %v3315, %v3671
    %v3956 = vmul.f32 %v3316, %v3686
    %v3957 = vmul.f32 %v3317, %v3701
    %v3958 = vmul.f32 %v3318, %v3716
    %v3959 = vmul.f32 %v3319, %v3731
    %v3960 = vmul.f32 %v3320, %v3746
    %v3961 = vmul.f32 %v3321, %v3761
    %v3962 = vmul.f32 %v3322, %v3776
    %v3963 = vmul.f32 %v3323, %v3791
    %v3964 = vmul.f32 %v3324, %v3806
    %v3965 = vmul.f32 %v3325, %v3821
    %v3966 = vmul.f32 %v3326, %v3836
    %v3967 = vmul.f32 %v3327, %v3851
    %v3968 = vmul.f32 %v3328, %v3866
    %v3969 = vmul.f32 %v3329, %v3881
    %v3970 = vmul.f32 %v3330, %v3896
    %v3971 = vmul.f32 %v3331, %v3911
    %v3972 = vmul.f32 %v3332, %v3926
    %v3973 = vmul.f32 %v3333, %v3941
    %v3974 = vld [vmem:[#allocation10] sm:$0xf]
    %v3975 = vld [vmem:[#allocation10 + $0x4] sm:$0xf]
    %v3976 = vld [vmem:[#allocation10 + $0x8] sm:$0xf]
    %v3977 = vld [vmem:[#allocation10 + $0xc] sm:$0xf]
    %v3978 = vpack.c.bf16 %v3943, %v3942
    %v3979 = vpack.c.bf16 %v3945, %v3944
    %v3980 = vpack.c.bf16 %v3947, %v3946
    %v3981 = vpack.c.bf16 %v3949, %v3948
    %v3982 = vpack.c.bf16 %v3951, %v3950
    %v3983 = vpack.c.bf16 %v3953, %v3952
    %v3984 = vpack.c.bf16 %v3955, %v3954
    %v3985 = vpack.c.bf16 %v3957, %v3956
    %v3986 = vpack.c.bf16 %v3959, %v3958
    %v3987 = vpack.c.bf16 %v3961, %v3960
    %v3988 = vpack.c.bf16 %v3963, %v3962
    %v3989 = vpack.c.bf16 %v3965, %v3964
    %v3990 = vpack.c.bf16 %v3967, %v3966
    %v3991 = vpack.c.bf16 %v3969, %v3968
    %v3992 = vpack.c.bf16 %v3971, %v3970
    %v3993 = vpack.c.bf16 %v3973, %v3972
    %4010 = vrot.lane.b32.xlu0 %v3978, 96
    %v4011 = vpop.permute.xlu0 %4010
    %4012 = vrot.lane.b32.xlu0 %v3979, 96
    %v4013 = vpop.permute.xlu0 %4012
    %4014 = vrot.lane.b32.xlu0 %v3980, 96
    %v4015 = vpop.permute.xlu0 %4014
    %4016 = vrot.lane.b32.xlu0 %v3981, 96
    %v4017 = vpop.permute.xlu0 %4016
    %4018 = vrot.lane.b32.xlu0 %v3982, 96
    %v4019 = vpop.permute.xlu0 %4018
    %4020 = vrot.lane.b32.xlu0 %v3983, 96
    %v4021 = vpop.permute.xlu0 %4020
    %4022 = vrot.lane.b32.xlu0 %v3984, 96
    %v4023 = vpop.permute.xlu0 %4022
    %4024 = vrot.lane.b32.xlu0 %v3985, 96
    %v4025 = vpop.permute.xlu0 %4024
    %4026 = vrot.lane.b32.xlu0 %v3986, 96
    %v4027 = vpop.permute.xlu0 %4026
    %4028 = vrot.lane.b32.xlu0 %v3987, 96
    %v4029 = vpop.permute.xlu0 %4028
    %4030 = vrot.lane.b32.xlu0 %v3988, 96
    %v4031 = vpop.permute.xlu0 %4030
    %4032 = vrot.lane.b32.xlu0 %v3989, 96
    %v4033 = vpop.permute.xlu0 %4032
    %4034 = vrot.lane.b32.xlu0 %v3990, 96
    %v4035 = vpop.permute.xlu0 %4034
    %4036 = vrot.lane.b32.xlu0 %v3991, 96
    %v4037 = vpop.permute.xlu0 %4036
    %4038 = vrot.lane.b32.xlu0 %v3992, 96
    %v4039 = vpop.permute.xlu0 %4038
    %4040 = vrot.lane.b32.xlu0 %v3993, 96
    %v4041 = vpop.permute.xlu0 %4040
    %v4046 = vunpack.c.l.b16 %v3974
    %v4047 = vunpack.c.l.b16 %v3975
    %v4048 = vunpack.c.l.b16 %v3976
    %v4049 = vunpack.c.l.b16 %v3977
    %v4050 = vpack.c.b16 %v4047, %v4046
    %v4051 = vpack.c.b16 %v4049, %v4048
    %v4055 = vsel %vm204, %v4011, 0
    %v4058 = vsel %vm204, %v4013, 0
    %v4061 = vsel %vm204, %v4015, 0
    %v4064 = vsel %vm204, %v4017, 0
    %v4067 = vsel %vm204, %v4019, 0
    %v4070 = vsel %vm204, %v4021, 0
    %v4073 = vsel %vm204, %v4023, 0
    %v4076 = vsel %vm204, %v4025, 0
    %v4079 = vsel %vm204, %v4027, 0
    %v4082 = vsel %vm204, %v4029, 0
    %v4085 = vsel %vm204, %v4031, 0
    %v4088 = vsel %vm204, %v4033, 0
    %v4091 = vsel %vm204, %v4035, 0
    %v4094 = vsel %vm204, %v4037, 0
    %v4097 = vsel %vm204, %v4039, 0
    %v4100 = vsel %vm204, %v4041, 0
    %4102 = vmatpush.bf16.msra.mxu0 0
    %4103 = vmatpush.bf16.msra.mxu0 0
    %4104 = vmatpush.bf16.msra.mxu0 0
    %4105 = vmatpush.bf16.msra.mxu0 0
    %4106 = vmatpush.bf16.msra.mxu0 0
    %4107 = vmatpush.bf16.msra.mxu0 0
    %4108 = vmatpush.bf16.msra.mxu0 %v4051
    %4109 = vmatpush.bf16.msra.mxu0 %v4050
    %4110 = vmatmul.bf16.gmra.mxu0 %v4055
    %v4111 = vpop.f32.mrf.mxu0
    %v4112 = vadd.f32 0.0, %v4111
    %v4113 = vpop.f32.mrf.mxu0
    %v4114 = vadd.f32 0.0, %v4113
    %4115 = vmatmul.bf16.gmra.mxu0 %v4058
    %v4116 = vpop.f32.mrf.mxu0
    %v4117 = vadd.f32 0.0, %v4116
    %v4118 = vpop.f32.mrf.mxu0
    %v4119 = vadd.f32 0.0, %v4118
    %4120 = vmatmul.bf16.gmra.mxu0 %v4061
    %v4121 = vpop.f32.mrf.mxu0
    %v4122 = vadd.f32 0.0, %v4121
    %v4123 = vpop.f32.mrf.mxu0
    %v4124 = vadd.f32 0.0, %v4123
    %4125 = vmatmul.bf16.gmra.mxu0 %v4064
    %v4126 = vpop.f32.mrf.mxu0
    %v4127 = vadd.f32 0.0, %v4126
    %v4128 = vpop.f32.mrf.mxu0
    %v4129 = vadd.f32 0.0, %v4128
    %4130 = vmatmul.bf16.gmra.mxu0 %v4067
    %v4131 = vpop.f32.mrf.mxu0
    %v4132 = vadd.f32 0.0, %v4131
    %v4133 = vpop.f32.mrf.mxu0
    %v4134 = vadd.f32 0.0, %v4133
    %4135 = vmatmul.bf16.gmra.mxu0 %v4070
    %v4136 = vpop.f32.mrf.mxu0
    %v4137 = vadd.f32 0.0, %v4136
    %v4138 = vpop.f32.mrf.mxu0
    %v4139 = vadd.f32 0.0, %v4138
    %4140 = vmatmul.bf16.gmra.mxu0 %v4073
    %v4141 = vpop.f32.mrf.mxu0
    %v4142 = vadd.f32 0.0, %v4141
    %v4143 = vpop.f32.mrf.mxu0
    %v4144 = vadd.f32 0.0, %v4143
    %4145 = vmatmul.bf16.gmra.mxu0 %v4076
    %v4146 = vpop.f32.mrf.mxu0
    %v4147 = vadd.f32 0.0, %v4146
    %v4148 = vpop.f32.mrf.mxu0
    %v4149 = vadd.f32 0.0, %v4148
    %4150 = vmatmul.bf16.gmra.mxu0 %v4079
    %v4151 = vpop.f32.mrf.mxu0
    %v4152 = vadd.f32 0.0, %v4151
    %v4153 = vpop.f32.mrf.mxu0
    %v4154 = vadd.f32 0.0, %v4153
    %4155 = vmatmul.bf16.gmra.mxu0 %v4082
    %v4156 = vpop.f32.mrf.mxu0
    %v4157 = vadd.f32 0.0, %v4156
    %v4158 = vpop.f32.mrf.mxu0
    %v4159 = vadd.f32 0.0, %v4158
    %4160 = vmatmul.bf16.gmra.mxu0 %v4085
    %v4161 = vpop.f32.mrf.mxu0
    %v4162 = vadd.f32 0.0, %v4161
    %v4163 = vpop.f32.mrf.mxu0
    %v4164 = vadd.f32 0.0, %v4163
    %4165 = vmatmul.bf16.gmra.mxu0 %v4088
    %v4166 = vpop.f32.mrf.mxu0
    %v4167 = vadd.f32 0.0, %v4166
    %v4168 = vpop.f32.mrf.mxu0
    %v4169 = vadd.f32 0.0, %v4168
    %4170 = vmatmul.bf16.gmra.mxu0 %v4091
    %v4171 = vpop.f32.mrf.mxu0
    %v4172 = vadd.f32 0.0, %v4171
    %v4173 = vpop.f32.mrf.mxu0
    %v4174 = vadd.f32 0.0, %v4173
    %4175 = vmatmul.bf16.gmra.mxu0 %v4094
    %v4176 = vpop.f32.mrf.mxu0
    %v4177 = vadd.f32 0.0, %v4176
    %v4178 = vpop.f32.mrf.mxu0
    %v4179 = vadd.f32 0.0, %v4178
    %4180 = vmatmul.bf16.gmra.mxu0 %v4097
    %v4181 = vpop.f32.mrf.mxu0
    %v4182 = vadd.f32 0.0, %v4181
    %v4183 = vpop.f32.mrf.mxu0
    %v4184 = vadd.f32 0.0, %v4183
    %4185 = vmatmul.bf16.gmra.mxu0 %v4100
    %v4186 = vpop.f32.mrf.mxu0
    %v4187 = vadd.f32 0.0, %v4186
    %v4188 = vpop.f32.mrf.mxu0
    %v4189 = vadd.f32 0.0, %v4188
    %4190 = vdwg.mxu0
    %v4193 = vrot.slane %v4112, 1
    %v4194 = vrot.slane %v4152, 1
    %4195 = vrot.lane.b32.xlu0 %v4193, 96
    %v4196 = vpop.permute.xlu0 %4195
    %4197 = vrot.lane.b32.xlu0 %v4194, 96
    %v4198 = vpop.permute.xlu0 %4197
    %v4201 = vadd.f32 %v4112, %v4196
    %v4202 = vadd.f32 %v4152, %v4198
    %v4233 = vrot.slane %v4112, 7
    %v4234 = vrot.slane %v4114, 7
    %v4235 = vsel %vm2898, %v4233, %v4234
    %v4236 = vrot.slane %v4117, 7
    %v4237 = vsel %vm2898, %v4234, %v4236
    %v4238 = vrot.slane %v4119, 7
    %v4239 = vsel %vm2898, %v4236, %v4238
    %v4240 = vrot.slane %v4122, 7
    %v4241 = vsel %vm2898, %v4238, %v4240
    %v4242 = vrot.slane %v4124, 7
    %v4243 = vsel %vm2898, %v4240, %v4242
    %v4244 = vrot.slane %v4127, 7
    %v4245 = vsel %vm2898, %v4242, %v4244
    %v4246 = vrot.slane %v4129, 7
    %v4247 = vsel %vm2898, %v4244, %v4246
    %v4248 = vrot.slane %v4132, 7
    %v4249 = vsel %vm2898, %v4246, %v4248
    %v4250 = vrot.slane %v4134, 7
    %v4251 = vsel %vm2898, %v4248, %v4250
    %v4252 = vrot.slane %v4137, 7
    %v4253 = vsel %vm2898, %v4250, %v4252
    %v4254 = vrot.slane %v4139, 7
    %v4255 = vsel %vm2898, %v4252, %v4254
    %v4256 = vrot.slane %v4142, 7
    %v4257 = vsel %vm2898, %v4254, %v4256
    %v4258 = vrot.slane %v4144, 7
    %v4259 = vsel %vm2898, %v4256, %v4258
    %v4260 = vrot.slane %v4147, 7
    %v4261 = vsel %vm2898, %v4258, %v4260
    %v4262 = vrot.slane %v4149, 7
    %v4263 = vsel %vm2898, %v4260, %v4262
    %v4264 = vrot.slane %v4152, 7
    %v4265 = vrot.slane %v4154, 7
    %v4266 = vsel %vm2898, %v4264, %v4265
    %v4267 = vrot.slane %v4157, 7
    %v4268 = vsel %vm2898, %v4265, %v4267
    %v4269 = vrot.slane %v4159, 7
    %v4270 = vsel %vm2898, %v4267, %v4269
    %v4271 = vrot.slane %v4162, 7
    %v4272 = vsel %vm2898, %v4269, %v4271
    %v4273 = vrot.slane %v4164, 7
    %v4274 = vsel %vm2898, %v4271, %v4273
    %v4275 = vrot.slane %v4167, 7
    %v4276 = vsel %vm2898, %v4273, %v4275
    %v4277 = vrot.slane %v4169, 7
    %v4278 = vsel %vm2898, %v4275, %v4277
    %v4279 = vrot.slane %v4172, 7
    %v4280 = vsel %vm2898, %v4277, %v4279
    %v4281 = vrot.slane %v4174, 7
    %v4282 = vsel %vm2898, %v4279, %v4281
    %v4283 = vrot.slane %v4177, 7
    %v4284 = vsel %vm2898, %v4281, %v4283
    %v4285 = vrot.slane %v4179, 7
    %v4286 = vsel %vm2898, %v4283, %v4285
    %v4287 = vrot.slane %v4182, 7
    %v4288 = vsel %vm2898, %v4285, %v4287
    %v4289 = vrot.slane %v4184, 7
    %v4290 = vsel %vm2898, %v4287, %v4289
    %v4291 = vrot.slane %v4187, 7
    %v4292 = vsel %vm2898, %v4289, %v4291
    %v4293 = vrot.slane %v4189, 7
    %v4294 = vsel %vm2898, %v4291, %v4293
    %4295 = vrot.lane.b32.xlu0 %v4233, 32
    %v4296 = vpop.permute.xlu0 %4295
    %4297 = vrot.lane.b32.xlu0 %v4235, 32
    %v4298 = vpop.permute.xlu0 %4297
    %4299 = vrot.lane.b32.xlu0 %v4237, 32
    %v4300 = vpop.permute.xlu0 %4299
    %4301 = vrot.lane.b32.xlu0 %v4239, 32
    %v4302 = vpop.permute.xlu0 %4301
    %4303 = vrot.lane.b32.xlu0 %v4241, 32
    %v4304 = vpop.permute.xlu0 %4303
    %4305 = vrot.lane.b32.xlu0 %v4243, 32
    %v4306 = vpop.permute.xlu0 %4305
    %4307 = vrot.lane.b32.xlu0 %v4245, 32
    %v4308 = vpop.permute.xlu0 %4307
    %4309 = vrot.lane.b32.xlu0 %v4247, 32
    %v4310 = vpop.permute.xlu0 %4309
    %4311 = vrot.lane.b32.xlu0 %v4249, 32
    %v4312 = vpop.permute.xlu0 %4311
    %4313 = vrot.lane.b32.xlu0 %v4251, 32
    %v4314 = vpop.permute.xlu0 %4313
    %4315 = vrot.lane.b32.xlu0 %v4253, 32
    %v4316 = vpop.permute.xlu0 %4315
    %4317 = vrot.lane.b32.xlu0 %v4255, 32
    %v4318 = vpop.permute.xlu0 %4317
    %4319 = vrot.lane.b32.xlu0 %v4257, 32
    %v4320 = vpop.permute.xlu0 %4319
    %4321 = vrot.lane.b32.xlu0 %v4259, 32
    %v4322 = vpop.permute.xlu0 %4321
    %4323 = vrot.lane.b32.xlu0 %v4261, 32
    %v4324 = vpop.permute.xlu0 %4323
    %4325 = vrot.lane.b32.xlu0 %v4263, 32
    %v4326 = vpop.permute.xlu0 %4325
    %4327 = vrot.lane.b32.xlu0 %v4264, 32
    %v4328 = vpop.permute.xlu0 %4327
    %4329 = vrot.lane.b32.xlu0 %v4266, 32
    %v4330 = vpop.permute.xlu0 %4329
    %4331 = vrot.lane.b32.xlu0 %v4268, 32
    %v4332 = vpop.permute.xlu0 %4331
    %4333 = vrot.lane.b32.xlu0 %v4270, 32
    %v4334 = vpop.permute.xlu0 %4333
    %4335 = vrot.lane.b32.xlu0 %v4272, 32
    %v4336 = vpop.permute.xlu0 %4335
    %4337 = vrot.lane.b32.xlu0 %v4274, 32
    %v4338 = vpop.permute.xlu0 %4337
    %4339 = vrot.lane.b32.xlu0 %v4276, 32
    %v4340 = vpop.permute.xlu0 %4339
    %4341 = vrot.lane.b32.xlu0 %v4278, 32
    %v4342 = vpop.permute.xlu0 %4341
    %4343 = vrot.lane.b32.xlu0 %v4280, 32
    %v4344 = vpop.permute.xlu0 %4343
    %4345 = vrot.lane.b32.xlu0 %v4282, 32
    %v4346 = vpop.permute.xlu0 %4345
    %4347 = vrot.lane.b32.xlu0 %v4284, 32
    %v4348 = vpop.permute.xlu0 %4347
    %4349 = vrot.lane.b32.xlu0 %v4286, 32
    %v4350 = vpop.permute.xlu0 %4349
    %4351 = vrot.lane.b32.xlu0 %v4288, 32
    %v4352 = vpop.permute.xlu0 %4351
    %4353 = vrot.lane.b32.xlu0 %v4290, 32
    %v4354 = vpop.permute.xlu0 %4353
    %4355 = vrot.lane.b32.xlu0 %v4292, 32
    %v4356 = vpop.permute.xlu0 %4355
    %4357 = vrot.lane.b32.xlu0 %v4294, 32
    %v4358 = vpop.permute.xlu0 %4357
    %v4391 = vadd.f32 %v4112, %v4296
    %v4392 = vadd.f32 %v4114, %v4298
    %v4393 = vadd.f32 %v4117, %v4300
    %v4394 = vadd.f32 %v4119, %v4302
    %v4395 = vadd.f32 %v4122, %v4304
    %v4396 = vadd.f32 %v4124, %v4306
    %v4397 = vadd.f32 %v4127, %v4308
    %v4398 = vadd.f32 %v4129, %v4310
    %v4399 = vadd.f32 %v4132, %v4312
    %v4400 = vadd.f32 %v4134, %v4314
    %v4401 = vadd.f32 %v4137, %v4316
    %v4402 = vadd.f32 %v4139, %v4318
    %v4403 = vadd.f32 %v4142, %v4320
    %v4404 = vadd.f32 %v4144, %v4322
    %v4405 = vadd.f32 %v4147, %v4324
    %v4406 = vadd.f32 %v4149, %v4326
    %v4407 = vadd.f32 %v4152, %v4328
    %v4408 = vadd.f32 %v4154, %v4330
    %v4409 = vadd.f32 %v4157, %v4332
    %v4410 = vadd.f32 %v4159, %v4334
    %v4411 = vadd.f32 %v4162, %v4336
    %v4412 = vadd.f32 %v4164, %v4338
    %v4413 = vadd.f32 %v4167, %v4340
    %v4414 = vadd.f32 %v4169, %v4342
    %v4415 = vadd.f32 %v4172, %v4344
    %v4416 = vadd.f32 %v4174, %v4346
    %v4417 = vadd.f32 %v4177, %v4348
    %v4418 = vadd.f32 %v4179, %v4350
    %v4419 = vadd.f32 %v4182, %v4352
    %v4420 = vadd.f32 %v4184, %v4354
    %v4421 = vadd.f32 %v4187, %v4356
    %v4422 = vadd.f32 %v4189, %v4358
    %v4423 = vrot.slane %v4114, 1
    %v4424 = vsel %vm3089, %v4193, %v4423
    %v4425 = vrot.slane %v4117, 1
    %v4426 = vsel %vm3089, %v4423, %v4425
    %v4427 = vrot.slane %v4119, 1
    %v4428 = vsel %vm3089, %v4425, %v4427
    %v4429 = vrot.slane %v4122, 1
    %v4430 = vsel %vm3089, %v4427, %v4429
    %v4431 = vrot.slane %v4124, 1
    %v4432 = vsel %vm3089, %v4429, %v4431
    %v4433 = vrot.slane %v4127, 1
    %v4434 = vsel %vm3089, %v4431, %v4433
    %v4435 = vrot.slane %v4129, 1
    %v4436 = vsel %vm3089, %v4433, %v4435
    %v4437 = vrot.slane %v4132, 1
    %v4438 = vsel %vm3089, %v4435, %v4437
    %v4439 = vrot.slane %v4134, 1
    %v4440 = vsel %vm3089, %v4437, %v4439
    %v4441 = vrot.slane %v4137, 1
    %v4442 = vsel %vm3089, %v4439, %v4441
    %v4443 = vrot.slane %v4139, 1
    %v4444 = vsel %vm3089, %v4441, %v4443
    %v4445 = vrot.slane %v4142, 1
    %v4446 = vsel %vm3089, %v4443, %v4445
    %v4447 = vrot.slane %v4144, 1
    %v4448 = vsel %vm3089, %v4445, %v4447
    %v4449 = vrot.slane %v4147, 1
    %v4450 = vsel %vm3089, %v4447, %v4449
    %v4451 = vrot.slane %v4149, 1
    %v4452 = vsel %vm3089, %v4449, %v4451
    %v4453 = vrot.slane %v4154, 1
    %v4454 = vsel %vm3089, %v4194, %v4453
    %v4455 = vrot.slane %v4157, 1
    %v4456 = vsel %vm3089, %v4453, %v4455
    %v4457 = vrot.slane %v4159, 1
    %v4458 = vsel %vm3089, %v4455, %v4457
    %v4459 = vrot.slane %v4162, 1
    %v4460 = vsel %vm3089, %v4457, %v4459
    %v4461 = vrot.slane %v4164, 1
    %v4462 = vsel %vm3089, %v4459, %v4461
    %v4463 = vrot.slane %v4167, 1
    %v4464 = vsel %vm3089, %v4461, %v4463
    %v4465 = vrot.slane %v4169, 1
    %v4466 = vsel %vm3089, %v4463, %v4465
    %v4467 = vrot.slane %v4172, 1
    %v4468 = vsel %vm3089, %v4465, %v4467
    %v4469 = vrot.slane %v4174, 1
    %v4470 = vsel %vm3089, %v4467, %v4469
    %v4471 = vrot.slane %v4177, 1
    %v4472 = vsel %vm3089, %v4469, %v4471
    %v4473 = vrot.slane %v4179, 1
    %v4474 = vsel %vm3089, %v4471, %v4473
    %v4475 = vrot.slane %v4182, 1
    %v4476 = vsel %vm3089, %v4473, %v4475
    %v4477 = vrot.slane %v4184, 1
    %v4478 = vsel %vm3089, %v4475, %v4477
    %v4479 = vrot.slane %v4187, 1
    %v4480 = vsel %vm3089, %v4477, %v4479
    %v4481 = vrot.slane %v4189, 1
    %v4482 = vsel %vm3089, %v4479, %v4481
    %4483 = vrot.lane.b32.xlu0 %v4424, 96
    %v4484 = vpop.permute.xlu0 %4483
    %4485 = vrot.lane.b32.xlu0 %v4426, 96
    %v4486 = vpop.permute.xlu0 %4485
    %4487 = vrot.lane.b32.xlu0 %v4428, 96
    %v4488 = vpop.permute.xlu0 %4487
    %4489 = vrot.lane.b32.xlu0 %v4430, 96
    %v4490 = vpop.permute.xlu0 %4489
    %4491 = vrot.lane.b32.xlu0 %v4432, 96
    %v4492 = vpop.permute.xlu0 %4491
    %4493 = vrot.lane.b32.xlu0 %v4434, 96
    %v4494 = vpop.permute.xlu0 %4493
    %4495 = vrot.lane.b32.xlu0 %v4436, 96
    %v4496 = vpop.permute.xlu0 %4495
    %4497 = vrot.lane.b32.xlu0 %v4438, 96
    %v4498 = vpop.permute.xlu0 %4497
    %4499 = vrot.lane.b32.xlu0 %v4440, 96
    %v4500 = vpop.permute.xlu0 %4499
    %4501 = vrot.lane.b32.xlu0 %v4442, 96
    %v4502 = vpop.permute.xlu0 %4501
    %4503 = vrot.lane.b32.xlu0 %v4444, 96
    %v4504 = vpop.permute.xlu0 %4503
    %4505 = vrot.lane.b32.xlu0 %v4446, 96
    %v4506 = vpop.permute.xlu0 %4505
    %4507 = vrot.lane.b32.xlu0 %v4448, 96
    %v4508 = vpop.permute.xlu0 %4507
    %4509 = vrot.lane.b32.xlu0 %v4450, 96
    %v4510 = vpop.permute.xlu0 %4509
    %4511 = vrot.lane.b32.xlu0 %v4452, 96
    %v4512 = vpop.permute.xlu0 %4511
    %4513 = vrot.lane.b32.xlu0 %v4451, 96
    %v4514 = vpop.permute.xlu0 %4513
    %4515 = vrot.lane.b32.xlu0 %v4454, 96
    %v4516 = vpop.permute.xlu0 %4515
    %4517 = vrot.lane.b32.xlu0 %v4456, 96
    %v4518 = vpop.permute.xlu0 %4517
    %4519 = vrot.lane.b32.xlu0 %v4458, 96
    %v4520 = vpop.permute.xlu0 %4519
    %4521 = vrot.lane.b32.xlu0 %v4460, 96
    %v4522 = vpop.permute.xlu0 %4521
    %4523 = vrot.lane.b32.xlu0 %v4462, 96
    %v4524 = vpop.permute.xlu0 %4523
    %4525 = vrot.lane.b32.xlu0 %v4464, 96
    %v4526 = vpop.permute.xlu0 %4525
    %4527 = vrot.lane.b32.xlu0 %v4466, 96
    %v4528 = vpop.permute.xlu0 %4527
    %4529 = vrot.lane.b32.xlu0 %v4468, 96
    %v4530 = vpop.permute.xlu0 %4529
    %4531 = vrot.lane.b32.xlu0 %v4470, 96
    %v4532 = vpop.permute.xlu0 %4531
    %4533 = vrot.lane.b32.xlu0 %v4472, 96
    %v4534 = vpop.permute.xlu0 %4533
    %4535 = vrot.lane.b32.xlu0 %v4474, 96
    %v4536 = vpop.permute.xlu0 %4535
    %4537 = vrot.lane.b32.xlu0 %v4476, 96
    %v4538 = vpop.permute.xlu0 %4537
    %4539 = vrot.lane.b32.xlu0 %v4478, 96
    %v4540 = vpop.permute.xlu0 %4539
    %4541 = vrot.lane.b32.xlu0 %v4480, 96
    %v4542 = vpop.permute.xlu0 %4541
    %4543 = vrot.lane.b32.xlu0 %v4482, 96
    %v4544 = vpop.permute.xlu0 %4543
    %4545 = vrot.lane.b32.xlu0 %v4481, 96
    %v4546 = vpop.permute.xlu0 %4545
    %v4579 = vadd.f32 %v4391, %v4484
    %v4580 = vadd.f32 %v4392, %v4486
    %v4581 = vadd.f32 %v4393, %v4488
    %v4582 = vadd.f32 %v4394, %v4490
    %v4583 = vadd.f32 %v4395, %v4492
    %v4584 = vadd.f32 %v4396, %v4494
    %v4585 = vadd.f32 %v4397, %v4496
    %v4586 = vadd.f32 %v4398, %v4498
    %v4587 = vadd.f32 %v4399, %v4500
    %v4588 = vadd.f32 %v4400, %v4502
    %v4589 = vadd.f32 %v4401, %v4504
    %v4590 = vadd.f32 %v4402, %v4506
    %v4591 = vadd.f32 %v4403, %v4508
    %v4592 = vadd.f32 %v4404, %v4510
    %v4593 = vadd.f32 %v4405, %v4512
    %v4594 = vadd.f32 %v4406, %v4514
    %v4595 = vadd.f32 %v4407, %v4516
    %v4596 = vadd.f32 %v4408, %v4518
    %v4597 = vadd.f32 %v4409, %v4520
    %v4598 = vadd.f32 %v4410, %v4522
    %v4599 = vadd.f32 %v4411, %v4524
    %v4600 = vadd.f32 %v4412, %v4526
    %v4601 = vadd.f32 %v4413, %v4528
    %v4602 = vadd.f32 %v4414, %v4530
    %v4603 = vadd.f32 %v4415, %v4532
    %v4604 = vadd.f32 %v4416, %v4534
    %v4605 = vadd.f32 %v4417, %v4536
    %v4606 = vadd.f32 %v4418, %v4538
    %v4607 = vadd.f32 %v4419, %v4540
    %v4608 = vadd.f32 %v4420, %v4542
    %v4609 = vadd.f32 %v4421, %v4544
    %v4610 = vadd.f32 %v4422, %v4546
    %4611 = vrot.lane.b32.xlu0 %v4262, 32
    %v4612 = vpop.permute.xlu0 %4611
    %4613 = vrot.lane.b32.xlu0 %v4293, 32
    %v4614 = vpop.permute.xlu0 %4613
    %v4617 = vadd.f32 %v4149, %v4612
    %v4618 = vadd.f32 %v4189, %v4614
    %v4619 = vsel %vm2898, %v4201, %v4579
    %v4620 = vsel %vm2898, %v4202, %v4595
    %v4621 = vsel %vm3089, %v4594, %v4617
    %v4622 = vsel %vm3089, %v4610, %v4618
    %v4623 = vunpack.c.l.bf16 %v724
    %v4624 = vunpack.c.l.bf16 %v725
    %v4625 = vunpack.c.l.bf16 %v726
    %v4626 = vunpack.c.l.bf16 %v727
    %v4627 = vunpack.c.l.bf16 %v728
    %v4628 = vunpack.c.l.bf16 %v729
    %v4629 = vunpack.c.l.bf16 %v730
    %v4630 = vunpack.c.l.bf16 %v731
    %v4631 = vunpack.c.l.bf16 %v732
    %v4632 = vunpack.c.l.bf16 %v733
    %v4633 = vunpack.c.l.bf16 %v734
    %v4634 = vunpack.c.l.bf16 %v735
    %v4635 = vunpack.c.l.bf16 %v736
    %v4636 = vunpack.c.l.bf16 %v737
    %v4637 = vunpack.c.l.bf16 %v738
    %v4638 = vunpack.c.l.bf16 %v739
    %v4639 = vunpack.c.l.bf16 %v740
    %v4640 = vunpack.c.l.bf16 %v741
    %v4641 = vunpack.c.l.bf16 %v742
    %v4642 = vunpack.c.l.bf16 %v743
    %v4643 = vunpack.c.l.bf16 %v744
    %v4644 = vunpack.c.l.bf16 %v745
    %v4645 = vunpack.c.l.bf16 %v746
    %v4646 = vunpack.c.l.bf16 %v747
    %v4647 = vunpack.c.l.bf16 %v748
    %v4648 = vunpack.c.l.bf16 %v749
    %v4649 = vunpack.c.l.bf16 %v750
    %v4650 = vunpack.c.l.bf16 %v751
    %v4651 = vunpack.c.l.bf16 %v752
    %v4652 = vunpack.c.l.bf16 %v753
    %v4653 = vunpack.c.l.bf16 %v754
    %v4654 = vunpack.c.l.bf16 %v755
    %4687 = vrot.lane.b32.xlu0 %v4623, 32
    %v4688 = vpop.permute.xlu0 %4687
    %4689 = vrot.lane.b32.xlu0 %v4624, 32
    %v4690 = vpop.permute.xlu0 %4689
    %4691 = vrot.lane.b32.xlu0 %v4625, 32
    %v4692 = vpop.permute.xlu0 %4691
    %4693 = vrot.lane.b32.xlu0 %v4626, 32
    %v4694 = vpop.permute.xlu0 %4693
    %4695 = vrot.lane.b32.xlu0 %v4627, 32
    %v4696 = vpop.permute.xlu0 %4695
    %4697 = vrot.lane.b32.xlu0 %v4628, 32
    %v4698 = vpop.permute.xlu0 %4697
    %4699 = vrot.lane.b32.xlu0 %v4629, 32
    %v4700 = vpop.permute.xlu0 %4699
    %4701 = vrot.lane.b32.xlu0 %v4630, 32
    %v4702 = vpop.permute.xlu0 %4701
    %4703 = vrot.lane.b32.xlu0 %v4631, 32
    %v4704 = vpop.permute.xlu0 %4703
    %4705 = vrot.lane.b32.xlu0 %v4632, 32
    %v4706 = vpop.permute.xlu0 %4705
    %4707 = vrot.lane.b32.xlu0 %v4633, 32
    %v4708 = vpop.permute.xlu0 %4707
    %4709 = vrot.lane.b32.xlu0 %v4634, 32
    %v4710 = vpop.permute.xlu0 %4709
    %4711 = vrot.lane.b32.xlu0 %v4635, 32
    %v4712 = vpop.permute.xlu0 %4711
    %4713 = vrot.lane.b32.xlu0 %v4636, 32
    %v4714 = vpop.permute.xlu0 %4713
    %4715 = vrot.lane.b32.xlu0 %v4637, 32
    %v4716 = vpop.permute.xlu0 %4715
    %4717 = vrot.lane.b32.xlu0 %v4638, 32
    %v4718 = vpop.permute.xlu0 %4717
    %4719 = vrot.lane.b32.xlu0 %v4639, 32
    %v4720 = vpop.permute.xlu0 %4719
    %4721 = vrot.lane.b32.xlu0 %v4640, 32
    %v4722 = vpop.permute.xlu0 %4721
    %4723 = vrot.lane.b32.xlu0 %v4641, 32
    %v4724 = vpop.permute.xlu0 %4723
    %4725 = vrot.lane.b32.xlu0 %v4642, 32
    %v4726 = vpop.permute.xlu0 %4725
    %4727 = vrot.lane.b32.xlu0 %v4643, 32
    %v4728 = vpop.permute.xlu0 %4727
    %4729 = vrot.lane.b32.xlu0 %v4644, 32
    %v4730 = vpop.permute.xlu0 %4729
    %4731 = vrot.lane.b32.xlu0 %v4645, 32
    %v4732 = vpop.permute.xlu0 %4731
    %4733 = vrot.lane.b32.xlu0 %v4646, 32
    %v4734 = vpop.permute.xlu0 %4733
    %4735 = vrot.lane.b32.xlu0 %v4647, 32
    %v4736 = vpop.permute.xlu0 %4735
    %4737 = vrot.lane.b32.xlu0 %v4648, 32
    %v4738 = vpop.permute.xlu0 %4737
    %4739 = vrot.lane.b32.xlu0 %v4649, 32
    %v4740 = vpop.permute.xlu0 %4739
    %4741 = vrot.lane.b32.xlu0 %v4650, 32
    %v4742 = vpop.permute.xlu0 %4741
    %4743 = vrot.lane.b32.xlu0 %v4651, 32
    %v4744 = vpop.permute.xlu0 %4743
    %4745 = vrot.lane.b32.xlu0 %v4652, 32
    %v4746 = vpop.permute.xlu0 %4745
    %4747 = vrot.lane.b32.xlu0 %v4653, 32
    %v4748 = vpop.permute.xlu0 %4747
    %4749 = vrot.lane.b32.xlu0 %v4654, 32
    %v4750 = vpop.permute.xlu0 %4749
    %v4783 = vadd.f32 %v4619, %v4688
    %v4784 = vadd.f32 %v4580, %v4690
    %v4785 = vadd.f32 %v4581, %v4692
    %v4786 = vadd.f32 %v4582, %v4694
    %v4787 = vadd.f32 %v4583, %v4696
    %v4788 = vadd.f32 %v4584, %v4698
    %v4789 = vadd.f32 %v4585, %v4700
    %v4790 = vadd.f32 %v4586, %v4702
    %v4791 = vadd.f32 %v4587, %v4704
    %v4792 = vadd.f32 %v4588, %v4706
    %v4793 = vadd.f32 %v4589, %v4708
    %v4794 = vadd.f32 %v4590, %v4710
    %v4795 = vadd.f32 %v4591, %v4712
    %v4796 = vadd.f32 %v4592, %v4714
    %v4797 = vadd.f32 %v4593, %v4716
    %v4798 = vadd.f32 %v4621, %v4718
    %v4799 = vadd.f32 %v4620, %v4720
    %v4800 = vadd.f32 %v4596, %v4722
    %v4801 = vadd.f32 %v4597, %v4724
    %v4802 = vadd.f32 %v4598, %v4726
    %v4803 = vadd.f32 %v4599, %v4728
    %v4804 = vadd.f32 %v4600, %v4730
    %v4805 = vadd.f32 %v4601, %v4732
    %v4806 = vadd.f32 %v4602, %v4734
    %v4807 = vadd.f32 %v4603, %v4736
    %v4808 = vadd.f32 %v4604, %v4738
    %v4809 = vadd.f32 %v4605, %v4740
    %v4810 = vadd.f32 %v4606, %v4742
    %v4811 = vadd.f32 %v4607, %v4744
    %v4812 = vadd.f32 %v4608, %v4746
    %v4813 = vadd.f32 %v4609, %v4748
    %v4814 = vadd.f32 %v4622, %v4750
    %v4815 = vmul.f32 %v4783, 0.70710677
    %v4816 = vmul.f32 %v4784, 0.70710677
    %v4817 = vmul.f32 %v4785, 0.70710677
    %v4818 = vmul.f32 %v4786, 0.70710677
    %v4819 = vmul.f32 %v4787, 0.70710677
    %v4820 = vmul.f32 %v4788, 0.70710677
    %v4821 = vmul.f32 %v4789, 0.70710677
    %v4822 = vmul.f32 %v4790, 0.70710677
    %v4823 = vmul.f32 %v4791, 0.70710677
    %v4824 = vmul.f32 %v4792, 0.70710677
    %v4825 = vmul.f32 %v4793, 0.70710677
    %v4826 = vmul.f32 %v4794, 0.70710677
    %v4827 = vmul.f32 %v4795, 0.70710677
    %v4828 = vmul.f32 %v4796, 0.70710677
    %v4829 = vmul.f32 %v4797, 0.70710677
    %v4830 = vmul.f32 %v4798, 0.70710677
    %v4831 = vmul.f32 %v4799, 0.70710677
    %v4832 = vmul.f32 %v4800, 0.70710677
    %v4833 = vmul.f32 %v4801, 0.70710677
    %v4834 = vmul.f32 %v4802, 0.70710677
    %v4835 = vmul.f32 %v4803, 0.70710677
    %v4836 = vmul.f32 %v4804, 0.70710677
    %v4837 = vmul.f32 %v4805, 0.70710677
    %v4838 = vmul.f32 %v4806, 0.70710677
    %v4839 = vmul.f32 %v4807, 0.70710677
    %v4840 = vmul.f32 %v4808, 0.70710677
    %v4841 = vmul.f32 %v4809, 0.70710677
    %v4842 = vmul.f32 %v4810, 0.70710677
    %v4843 = vmul.f32 %v4811, 0.70710677
    %v4844 = vmul.f32 %v4812, 0.70710677
    %v4845 = vmul.f32 %v4813, 0.70710677
    %v4846 = vmul.f32 %v4814, 0.70710677
    %4879 = vrot.lane.b32.xlu0 %v4815, 96
    %v4880 = vpop.permute.xlu0 %4879
    %4881 = vrot.lane.b32.xlu0 %v4816, 96
    %v4882 = vpop.permute.xlu0 %4881
    %4883 = vrot.lane.b32.xlu0 %v4817, 96
    %v4884 = vpop.permute.xlu0 %4883
    %4885 = vrot.lane.b32.xlu0 %v4818, 96
    %v4886 = vpop.permute.xlu0 %4885
    %4887 = vrot.lane.b32.xlu0 %v4819, 96
    %v4888 = vpop.permute.xlu0 %4887
    %4889 = vrot.lane.b32.xlu0 %v4820, 96
    %v4890 = vpop.permute.xlu0 %4889
    %4891 = vrot.lane.b32.xlu0 %v4821, 96
    %v4892 = vpop.permute.xlu0 %4891
    %4893 = vrot.lane.b32.xlu0 %v4822, 96
    %v4894 = vpop.permute.xlu0 %4893
    %4895 = vrot.lane.b32.xlu0 %v4823, 96
    %v4896 = vpop.permute.xlu0 %4895
    %4897 = vrot.lane.b32.xlu0 %v4824, 96
    %v4898 = vpop.permute.xlu0 %4897
    %4899 = vrot.lane.b32.xlu0 %v4825, 96
    %v4900 = vpop.permute.xlu0 %4899
    %4901 = vrot.lane.b32.xlu0 %v4826, 96
    %v4902 = vpop.permute.xlu0 %4901
    %4903 = vrot.lane.b32.xlu0 %v4827, 96
    %v4904 = vpop.permute.xlu0 %4903
    %4905 = vrot.lane.b32.xlu0 %v4828, 96
    %v4906 = vpop.permute.xlu0 %4905
    %4907 = vrot.lane.b32.xlu0 %v4829, 96
    %v4908 = vpop.permute.xlu0 %4907
    %4909 = vrot.lane.b32.xlu0 %v4830, 96
    %v4910 = vpop.permute.xlu0 %4909
    %4911 = vrot.lane.b32.xlu0 %v4831, 96
    %v4912 = vpop.permute.xlu0 %4911
    %4913 = vrot.lane.b32.xlu0 %v4832, 96
    %v4914 = vpop.permute.xlu0 %4913
    %4915 = vrot.lane.b32.xlu0 %v4833, 96
    %v4916 = vpop.permute.xlu0 %4915
    %4917 = vrot.lane.b32.xlu0 %v4834, 96
    %v4918 = vpop.permute.xlu0 %4917
    %4919 = vrot.lane.b32.xlu0 %v4835, 96
    %v4920 = vpop.permute.xlu0 %4919
    %4921 = vrot.lane.b32.xlu0 %v4836, 96
    %v4922 = vpop.permute.xlu0 %4921
    %4923 = vrot.lane.b32.xlu0 %v4837, 96
    %v4924 = vpop.permute.xlu0 %4923
    %4925 = vrot.lane.b32.xlu0 %v4838, 96
    %v4926 = vpop.permute.xlu0 %4925
    %4927 = vrot.lane.b32.xlu0 %v4839, 96
    %v4928 = vpop.permute.xlu0 %4927
    %4929 = vrot.lane.b32.xlu0 %v4840, 96
    %v4930 = vpop.permute.xlu0 %4929
    %4931 = vrot.lane.b32.xlu0 %v4841, 96
    %v4932 = vpop.permute.xlu0 %4931
    %4933 = vrot.lane.b32.xlu0 %v4842, 96
    %v4934 = vpop.permute.xlu0 %4933
    %4935 = vrot.lane.b32.xlu0 %v4843, 96
    %v4936 = vpop.permute.xlu0 %4935
    %4937 = vrot.lane.b32.xlu0 %v4844, 96
    %v4938 = vpop.permute.xlu0 %4937
    %4939 = vrot.lane.b32.xlu0 %v4845, 96
    %v4940 = vpop.permute.xlu0 %4939
    %4941 = vrot.lane.b32.xlu0 %v4846, 96
    %v4942 = vpop.permute.xlu0 %4941
    %4975 = vxpose.xlu0.b32.start [1/16] %v4880, 128
    %4976 = vxpose.xlu0.b32.cont [2/16] %v4882, 128
    %4977 = vxpose.xlu0.b32.cont [3/16] %v4884, 128
    %4978 = vxpose.xlu0.b32.cont [4/16] %v4886, 128
    %4979 = vxpose.xlu0.b32.cont [5/16] %v4888, 128
    %4980 = vxpose.xlu0.b32.cont [6/16] %v4890, 128
    %4981 = vxpose.xlu0.b32.cont [7/16] %v4892, 128
    %4982 = vxpose.xlu0.b32.cont [8/16] %v4894, 128
    %4983 = vxpose.xlu0.b32.cont [9/16] %v4896, 128
    %4984 = vxpose.xlu0.b32.cont [10/16] %v4898, 128
    %4985 = vxpose.xlu0.b32.cont [11/16] %v4900, 128
    %4986 = vxpose.xlu0.b32.cont [12/16] %v4902, 128
    %4987 = vxpose.xlu0.b32.cont [13/16] %v4904, 128
    %4988 = vxpose.xlu0.b32.cont [14/16] %v4906, 128
    %4989 = vxpose.xlu0.b32.cont [15/16] %v4908, 128
    %4990 = vxpose.xlu0.b32.end [16/16] %v4910, 128
    %v4991 = vpop.trf.xlu0
    %v4992 = vpop.trf.xlu0
    %v4993 = vpop.trf.xlu0
    %v4994 = vpop.trf.xlu0
    %v4995 = vpop.trf.xlu0
    %v4996 = vpop.trf.xlu0
    %v4997 = vpop.trf.xlu0
    %v4998 = vpop.trf.xlu0
    %v4999 = vpop.trf.xlu0
    %v5000 = vpop.trf.xlu0
    %v5001 = vpop.trf.xlu0
    %v5002 = vpop.trf.xlu0
    %v5003 = vpop.trf.xlu0
    %v5004 = vpop.trf.xlu0
    %v5005 = vpop.trf.xlu0
    %v5006 = vpop.trf.xlu0
    %5007 = vxpose.xlu0.b32.start [1/16] %v4912, 128
    %5008 = vxpose.xlu0.b32.cont [2/16] %v4914, 128
    %5009 = vxpose.xlu0.b32.cont [3/16] %v4916, 128
    %5010 = vxpose.xlu0.b32.cont [4/16] %v4918, 128
    %5011 = vxpose.xlu0.b32.cont [5/16] %v4920, 128
    %5012 = vxpose.xlu0.b32.cont [6/16] %v4922, 128
    %5013 = vxpose.xlu0.b32.cont [7/16] %v4924, 128
    %5014 = vxpose.xlu0.b32.cont [8/16] %v4926, 128
    %5015 = vxpose.xlu0.b32.cont [9/16] %v4928, 128
    %5016 = vxpose.xlu0.b32.cont [10/16] %v4930, 128
    %5017 = vxpose.xlu0.b32.cont [11/16] %v4932, 128
    %5018 = vxpose.xlu0.b32.cont [12/16] %v4934, 128
    %5019 = vxpose.xlu0.b32.cont [13/16] %v4936, 128
    %5020 = vxpose.xlu0.b32.cont [14/16] %v4938, 128
    %5021 = vxpose.xlu0.b32.cont [15/16] %v4940, 128
    %5022 = vxpose.xlu0.b32.end [16/16] %v4942, 128
    %v5023 = vpop.trf.xlu0
    %v5024 = vpop.trf.xlu0
    %v5025 = vpop.trf.xlu0
    %v5026 = vpop.trf.xlu0
    %v5027 = vpop.trf.xlu0
    %v5028 = vpop.trf.xlu0
    %v5029 = vpop.trf.xlu0
    %v5030 = vpop.trf.xlu0
    %v5031 = vpop.trf.xlu0
    %v5032 = vpop.trf.xlu0
    %v5033 = vpop.trf.xlu0
    %v5034 = vpop.trf.xlu0
    %v5035 = vpop.trf.xlu0
    %v5036 = vpop.trf.xlu0
    %v5037 = vpop.trf.xlu0
    %v5038 = vpop.trf.xlu0
    %5039 = vst [vmem:[#allocation11] sm:$0xff] %v4991
    %5040 = vst [vmem:[#allocation11 + $0x8] sm:$0xff] %v4992
    %5041 = vst [vmem:[#allocation11 + $0x10] sm:$0xff] %v4993
    %5042 = vst [vmem:[#allocation11 + $0x18] sm:$0xff] %v4994
    %5043 = vst [vmem:[#allocation11 + $0x20] sm:$0xff] %v5023
    %5044 = vst [vmem:[#allocation11 + $0x28] sm:$0xff] %v5024
    %5045 = vst [vmem:[#allocation11 + $0x30] sm:$0xff] %v5025
    %5046 = vst [vmem:[#allocation11 + $0x38] sm:$0xff] %v5026
    // Predicated region
    $region42: #{tpu_custom_call.1} parent=1 // pred_check
      _
    $region43: #{tpu_custom_call.1} parent=1 // pred_check_branch
      %5048 = sbr.rel (0) target = $region45
    $region44: #{tpu_custom_call.1} parent=1 // pred_region
      %5050 = vsyncadd [#allocation4], 0
      %s5051 = sshll.u32 [#allocation11], 4
      %s5052 = int_to_ptr.vmem [resolvable:$true] %s5051
      %s5053 = sshll.u32 %s5, 4
      %s5054 = int_to_ptr.hbm [resolvable:$true] %s5053
      %5059 = dma.vmem_to_hbm [thread:$0]  %s5052, 1024, %s5054, [#allocation4], 128, 128, 8
    $region45: #{tpu_custom_call.1} parent=1 // pred_fallthru
      _
    // Predicated region
    $region46: #{tpu_custom_call.1} parent=1 // pred_check
      _
    $region47: #{tpu_custom_call.1} parent=1 // pred_check_branch
      %5061 = sbr.rel (0) target = $region49
    $region48: #{tpu_custom_call.1} parent=1 // pred_region
      %5063 = dma.done [#allocation4], 1024
    $region49: #{tpu_custom_call.1} parent=1 // pred_fallthru
      _
    %5064 = vsyncpa [#allocation3], 1
    %5065 = vsyncpa [#allocation6], 1
    %5066 = vsyncpa [#allocation9], 1
    %5067 = vsyncpa [#allocation4], 1

</llo_original>
